<compile_context>
chip_gen: v6e
topology: v6e:2x2x1
jax: 0.10.0
libtpu: 0.0.40
codegen_flags: <defaults>
</compile_context>

<pallas_src>
import math

import numpy as np

import jax
import jax.numpy as jnp
from jax.experimental import pallas as pl
from jax.experimental.pallas import tpu as pltpu


# ------------------------------ Fused Pallas kernel ------------------------------ #

def _fused_forward_kernel(p1_ref, w1_ref, b1_ref,
                          s2_ref, w2_ref, b2_ref,
                          s3_ref, w3_ref, b3_ref,
                          f1w_ref, f1b_ref, f2w_ref, f2b_ref, f3w_ref, f3b_ref,
                          o_ref):
    f32 = jnp.float32

    # --- conv1 + ReLU: pre-built patch matrix (R1, k*k*Cin) @ (k*k*Cin, 32) -------------------
    h1 = jnp.dot(p1_ref[...], w1_ref[...], preferred_element_type=f32)
    h1 = jnp.maximum(h1 + b1_ref[...], 0.0)                                   # (R1, 32)

    # --- conv2 + ReLU: per-tap 0/1 selection matmul (in-kernel im2col) + weight matmul --------
    acc2 = None
    for t in range(s2_ref.shape[0]):                                          # 16 taps (4x4)
        patch = jnp.dot(s2_ref[t], h1, preferred_element_type=f32)            # (R2, 32)
        part = jnp.dot(patch, w2_ref[t], preferred_element_type=f32)          # (R2, 64)
        acc2 = part if acc2 is None else acc2 + part
    h2 = jnp.maximum(acc2 + b2_ref[...], 0.0)                                 # (R2, 64)

    # --- conv3 + ReLU --------------------------------------------------------------------------
    acc3 = None
    for t in range(s3_ref.shape[0]):                                          # 9 taps (3x3)
        patch = jnp.dot(s3_ref[t], h2, preferred_element_type=f32)            # (R3, 64)
        part = jnp.dot(patch, w3_ref[t], preferred_element_type=f32)          # (R3, 64)
        acc3 = part if acc3 is None else acc3 + part
    h3 = jnp.maximum(acc3 + b3_ref[...], 0.0)                                 # (R3, 64), rows = (ho, wo, n)

    # --- FC head: fc1 consumes h3 as per-spatial-position blocks.  The fc1 weight rows were
    #     permuted at prepare_params() time so this exactly reproduces torch's NCHW .view(). ----
    batch = o_ref.shape[0]
    acc_fc1 = None
    for p in range(f1w_ref.shape[0]):                                         # 4 positions (2x2)
        rows = h3[p * batch:(p + 1) * batch, :]                               # (N, 64)
        part = jnp.dot(rows, f1w_ref[p], preferred_element_type=f32)          # (N, 128)
        acc_fc1 = part if acc_fc1 is None else acc_fc1 + part
    h4 = jnp.maximum(acc_fc1 + f1b_ref[...], 0.0)                             # (N, 128)
    h5 = jnp.maximum(jnp.dot(h4, f2w_ref[...], preferred_element_type=f32) + f2b_ref[...], 0.0)
    o_ref[...] = jnp.dot(h5, f3w_ref[...], preferred_element_type=f32) + f3b_ref[...]


# ------------------------------ XLA-side glue (inside jit) ------------------------------ #

def _im2col_conv1(x, k=8, stride=4):
    """x: (N, C, H, W) NCHW -> patch matrix (Ho*Wo*N, k*k*C).

    Rows ordered (ho, wo, n); columns ordered (kh, kw, c) to match the prepared conv1 weight.
    Runs as fused XLA ops inside the jit (the patch matrix is ~200 KB at batch=2)."""
    n, c, h, w = x.shape
    ho = (h - k) // stride + 1
    wo = (w - k) // stride + 1
    cols = []
    for kh in range(k):
        for kw in range(k):
            sl = jax.lax.slice(
                x, (0, 0, kh, kw),
                (n, c, kh + stride * (ho - 1) + 1, kw + stride * (wo - 1) + 1),
                (1, 1, stride, stride))                                       # (N, C, Ho, Wo)
            cols.append(sl)
    p = jnp.stack(cols, axis=0)                                               # (k*k, N, C, Ho, Wo)
    p = p.transpose(3, 4, 1, 0, 2)                                            # (Ho, Wo, N, k*k, C)
    return p.reshape(ho * wo * n, k * k * c)


def _selection_matrices(h_in, w_in, k, stride, batch):
    """0/1 matrices S[t] of shape (Ho*Wo*batch, h_in*w_in*batch): row-gather for conv tap t.

    Row/col order is (ho, wo, n) / (hi, wi, n), matching the in-kernel activation layout."""
    h_out = (h_in - k) // stride + 1
    w_out = (w_in - k) // stride + 1
    s = np.zeros((k * k, h_out * w_out * batch, h_in * w_in * batch), np.float32)
    for kh in range(k):
        for kw in range(k):
            t = kh * k + kw
            for ho in range(h_out):
                for wo in range(w_out):
                    for n in range(batch):
                        r_out = (ho * w_out + wo) * batch + n
                        r_in = ((ho * stride + kh) * w_in + (wo * stride + kw)) * batch + n
                        s[t, r_out, r_in] = 1.0
    return jnp.asarray(s)


def prepare_params(params, batch):
    """One-time conversion of torch-layout params into kernel-ready operands."""
    def conv_weight(w):
        cout, cin, k, _ = w.shape
        # (Cout, Cin, kh, kw) -> (kh*kw, Cin, Cout); tap index t = kh*k + kw.
        return jnp.transpose(w, (2, 3, 1, 0)).reshape(k * k, cin, cout)

    kp = {}
    w1 = conv_weight(params["c1_w"])                                  # (64, Cin, 32)
    kp["w1m"] = w1.reshape(-1, w1.shape[-1])                          # (k*k*Cin, 32); K = (kh, kw, c)
    kp["b1"] = params["c1_b"].reshape(1, -1)
    kp["w2m"] = conv_weight(params["c2_w"])                           # (16, 32, 64)
    kp["b2"] = params["c2_b"].reshape(1, -1)
    kp["w3m"] = conv_weight(params["c3_w"])                           # (9, 64, 64)
    kp["b3"] = params["c3_b"].reshape(1, -1)

    # In-kernel im2col as selection matmuls (structural constants for a given batch size).
    kp["s2"] = _selection_matrices(10, 10, 4, 2, batch)               # (16, 4*4*B, 10*10*B)
    kp["s3"] = _selection_matrices(4, 4, 3, 1, batch)                 # (9,  2*2*B, 4*4*B)

    # fc1: torch flattens the conv output NCHW -> input index = c*4 + p  (p = h*2 + w).
    # The kernel sees h3 rows ordered (p, n) with channels on lanes, so regroup the 256 input
    # rows into 4 per-position (64, 128) blocks: f1w[p, c, :] = f1_w[c*4 + p, :].
    f1 = params["f1_w"]                                               # (256, 128) in (in, out)
    kp["f1w"] = f1.reshape(64, 4, f1.shape[1]).transpose(1, 0, 2)     # (4, 64, 128)
    kp["f1b"] = params["f1_b"].reshape(1, -1)
    kp["f2w"] = params["f2_w"]                                        # (128, 64)
    kp["f2b"] = params["f2_b"].reshape(1, -1)
    kp["f3w"] = params["f3_w"]                                        # (64, num_outputs)
    kp["f3b"] = params["f3_b"].reshape(1, -1)
    return kp


@jax.jit
def three_by_three_forward(kparams, x):
    """ThreeByThree.forward fused into one Pallas kernel. x: (N, C, 44, 44) NCHW float32."""
    batch = x.shape[0]
    num_outputs = kparams["f3b"].shape[-1]
    assert kparams["s2"].shape[1] == 4 * 4 * batch, "prepare_params() batch mismatch"

    p1 = _im2col_conv1(x)                                             # (10*10*B, 8*8*C)

    operands = (p1,
                kparams["w1m"], kparams["b1"],
                kparams["s2"], kparams["w2m"], kparams["b2"],
                kparams["s3"], kparams["w3m"], kparams["b3"],
                kparams["f1w"], kparams["f1b"],
                kparams["f2w"], kparams["f2b"],
                kparams["f3w"], kparams["f3b"])

    # Whole-array blocks (single grid step): everything is VMEM-resident for the fused kernel.
    in_specs = [pl.BlockSpec(a.shape, lambda i, nd=a.ndim: (0,) * nd) for a in operands]

    # Advisory cost estimate for XLA's scheduler.
    r1, k1 = p1.shape
    c1 = kparams["w1m"].shape[-1]
    t2, r2, _ = kparams["s2"].shape
    c2 = kparams["w2m"].shape[-1]
    t3, r3, _ = kparams["s3"].shape
    c3 = kparams["w3m"].shape[-1]
    d1 = kparams["f1w"].shape[-1]
    d2 = kparams["f2w"].shape[-1]
    flops = 2 * (r1 * k1 * c1
                 + t2 * (r2 * r1 * c1 + r2 * c1 * c2)
                 + t3 * (r3 * r2 * c2 + r3 * c2 * c3)
                 + kparams["f1w"].shape[0] * batch * c3 * d1
                 + batch * d1 * d2 + batch * d2 * num_outputs)
    bytes_accessed = sum(int(math.prod(a.shape)) * 4 for a in operands) + batch * num_outputs * 4

    return pl.pallas_call(
        _fused_forward_kernel,
        out_shape=jax.ShapeDtypeStruct((batch, num_outputs), jnp.float32),
        grid=(1,),
        in_specs=in_specs,
        out_specs=pl.BlockSpec((batch, num_outputs), lambda i: (0, 0)),
        compiler_params=pltpu.CompilerParams(dimension_semantics=("arbitrary",)),
        cost_estimate=pl.CostEstimate(flops=flops, transcendentals=0,
                                      bytes_accessed=bytes_accessed),
    )(*operands)


# ------------------------------ Model init (torch layout) ------------------------------ #

def init_params(key, num_channels, num_outputs):
    def uniform(key, shape, fan_in):
        bound = 1.0 / jnp.sqrt(jnp.float32(fan_in))
        return jax.random.uniform(key, shape, jnp.float32, -bound, bound)

    ks = jax.random.split(key, 12)
    p = {}
    # ConvFrontEnd (OIHW, like torch)
    p["c1_w"] = uniform(ks[0], (32, num_channels, 8, 8), num_channels * 8 * 8)
    p["c1_b"] = uniform(ks[1], (32,), num_channels * 8 * 8)
    p["c2_w"] = uniform(ks[2], (64, 32, 4, 4), 32 * 4 * 4)
    p["c2_b"] = uniform(ks[3], (64,), 32 * 4 * 4)
    p["c3_w"] = uniform(ks[4], (64, 64, 3, 3), 64 * 3 * 3)
    p["c3_b"] = uniform(ks[5], (64,), 64 * 3 * 3)
    # FCThree (stored as (in, out) for matmul; torch stores (out, in))
    p["f1_w"] = uniform(ks[6], (256, 128), 256)
    p["f1_b"] = uniform(ks[7], (128,), 256)
    p["f2_w"] = uniform(ks[8], (128, 64), 128)
    p["f2_b"] = uniform(ks[9], (64,), 128)
    p["f3_w"] = uniform(ks[10], (64, num_outputs), 64)
    p["f3_b"] = uniform(ks[11], (num_outputs,), 64)
    return p


# ------------------------------ Pure-JAX reference ------------------------------ #

def reference_forward(params, x):
    def conv(x, w, b, s):
        y = jax.lax.conv_general_dilated(
            x, w, window_strides=(s, s), padding="VALID",
            dimension_numbers=("NCHW", "OIHW", "NCHW"))
        return jax.nn.relu(y + b.reshape(1, -1, 1, 1))

    h = conv(x, params["c1_w"], params["c1_b"], 4)
    h = conv(h, params["c2_w"], params["c2_b"], 2)
    h = conv(h, params["c3_w"], params["c3_b"], 1)
    h = h.reshape(x.shape[0], 256)                    # torch .view ordering (NCHW flatten)
    h = jax.nn.relu(h @ params["f1_w"] + params["f1_b"])
    h = jax.nn.relu(h @ params["f2_w"] + params["f2_b"])
    return h @ params["f3_w"] + params["f3_b"]


# ----------------------------------- Main ----------------------------------- #

if __name__ == "__main__":
    key = jax.random.PRNGKey(0)
    k_param, k_x = jax.random.split(key)

    batch = 2
    num_channels = 4
    num_outputs = 5
    # Spatial size 44 is forced by the architecture: 44 -conv8/4-> 10 -conv4/2-> 4 -conv3/1-> 2
    x = jax.random.normal(k_x, (batch, num_channels, 44, 44), dtype=jnp.float32)

    params = init_params(k_param, num_channels, num_outputs)
    kparams = prepare_params(params, batch)           # one-time weight re-layout + selection mats

    out = jax.block_until_ready(three_by_three_forward(kparams, x))
    assert out.shape == (batch, num_outputs), out.shape

    ref = jax.block_until_ready(reference_forward(params, x))
    max_err = float(jnp.max(jnp.abs(out - ref)))
    assert jnp.allclose(out, ref, atol=1e-3, rtol=1e-3), max_err

    print("KERNEL_OK")
</pallas_src>

<mosaic_0001>
module attributes {stable_mosaic.version = 11 : i64} {
  func.func @_fused_forward_kernel(%arg0: i32, %arg1: memref<200x256xf32, #tpu.memory_space<vmem>>, %arg2: memref<256x32xf32, #tpu.memory_space<vmem>>, %arg3: memref<1x32xf32, #tpu.memory_space<vmem>>, %arg4: memref<16x32x200xf32, #tpu.memory_space<vmem>>, %arg5: memref<16x32x64xf32, #tpu.memory_space<vmem>>, %arg6: memref<1x64xf32, #tpu.memory_space<vmem>>, %arg7: memref<9x8x32xf32, #tpu.memory_space<vmem>>, %arg8: memref<9x64x64xf32, #tpu.memory_space<vmem>>, %arg9: memref<1x64xf32, #tpu.memory_space<vmem>>, %arg10: memref<4x64x128xf32, #tpu.memory_space<vmem>>, %arg11: memref<1x128xf32, #tpu.memory_space<vmem>>, %arg12: memref<128x64xf32, #tpu.memory_space<vmem>>, %arg13: memref<1x64xf32, #tpu.memory_space<vmem>>, %arg14: memref<64x5xf32, #tpu.memory_space<vmem>>, %arg15: memref<1x5xf32, #tpu.memory_space<vmem>>, %arg16: memref<2x5xf32, #tpu.memory_space<vmem>>) attributes {dimension_semantics = [#tpu.dimension_semantics<arbitrary>], iteration_bounds = array<i64: 1>, scalar_prefetch = 0 : i64, scratch_operands = 0 : i64, tpu.core_type = #tpu.core_type<tc>, window_params = [{pipeline_mode = #tpu.pipeline_mode<synchronous>, transform_indices = @transform_0, window_bounds = array<i64: 200, 256>}, {pipeline_mode = #tpu.pipeline_mode<synchronous>, transform_indices = @transform_1, window_bounds = array<i64: 256, 32>}, {pipeline_mode = #tpu.pipeline_mode<synchronous>, transform_indices = @transform_2, window_bounds = array<i64: 1, 32>}, {pipeline_mode = #tpu.pipeline_mode<synchronous>, transform_indices = @transform_3, window_bounds = array<i64: 16, 32, 200>}, {pipeline_mode = #tpu.pipeline_mode<synchronous>, transform_indices = @transform_4, window_bounds = array<i64: 16, 32, 64>}, {pipeline_mode = #tpu.pipeline_mode<synchronous>, transform_indices = @transform_5, window_bounds = array<i64: 1, 64>}, {pipeline_mode = #tpu.pipeline_mode<synchronous>, transform_indices = @transform_6, window_bounds = array<i64: 9, 8, 32>}, {pipeline_mode = #tpu.pipeline_mode<synchronous>, transform_indices = @transform_7, window_bounds = array<i64: 9, 64, 64>}, {pipeline_mode = #tpu.pipeline_mode<synchronous>, transform_indices = @transform_8, window_bounds = array<i64: 1, 64>}, {pipeline_mode = #tpu.pipeline_mode<synchronous>, transform_indices = @transform_9, window_bounds = array<i64: 4, 64, 128>}, {pipeline_mode = #tpu.pipeline_mode<synchronous>, transform_indices = @transform_10, window_bounds = array<i64: 1, 128>}, {pipeline_mode = #tpu.pipeline_mode<synchronous>, transform_indices = @transform_11, window_bounds = array<i64: 128, 64>}, {pipeline_mode = #tpu.pipeline_mode<synchronous>, transform_indices = @transform_12, window_bounds = array<i64: 1, 64>}, {pipeline_mode = #tpu.pipeline_mode<synchronous>, transform_indices = @transform_13, window_bounds = array<i64: 64, 5>}, {pipeline_mode = #tpu.pipeline_mode<synchronous>, transform_indices = @transform_14, window_bounds = array<i64: 1, 5>}, {pipeline_mode = #tpu.pipeline_mode<synchronous>, transform_indices = @transform_15, window_bounds = array<i64: 2, 5>}]} {
    %c0 = arith.constant 0 : index
    %c0_0 = arith.constant 0 : index
    %0 = vector.load %arg1[%c0, %c0_0] : memref<200x256xf32, #tpu.memory_space<vmem>>, vector<200x256xf32>
    %c0_1 = arith.constant 0 : index
    %c0_2 = arith.constant 0 : index
    %1 = vector.load %arg2[%c0_1, %c0_2] : memref<256x32xf32, #tpu.memory_space<vmem>>, vector<256x32xf32>
    %cst = arith.constant dense<0.000000e+00> : vector<200x32xf32>
    %2 = tpu.matmul %0, %1, %cst {dimension_numbers = #tpu.dot_dimension_numbers<[1], [0], [0], [1], [0, 0, 1, 1], [], []>} : vector<200x256xf32>, vector<256x32xf32>, vector<200x32xf32> -> vector<200x32xf32>
    %c0_3 = arith.constant 0 : index
    %c0_4 = arith.constant 0 : index
    %3 = vector.load %arg3[%c0_3, %c0_4] : memref<1x32xf32, #tpu.memory_space<vmem>>, vector<1x32xf32>
    %4 = vector.broadcast %3 : vector<1x32xf32> to vector<200x32xf32>
    %5 = arith.addf %2, %4 : vector<200x32xf32>
    %cst_5 = arith.constant 0.000000e+00 : f32
    %6 = vector.broadcast %cst_5 : f32 to vector<200x32xf32>
    %7 = arith.maximumf %5, %6 : vector<200x32xf32>
    %c0_6 = arith.constant 0 : index
    %c0_7 = arith.constant 0 : index
    %c0_8 = arith.constant 0 : index
    %8 = vector.load %arg4[%c0_6, %c0_7, %c0_8] : memref<16x32x200xf32, #tpu.memory_space<vmem>>, vector<1x32x200xf32>
    %9 = vector.shape_cast %8 : vector<1x32x200xf32> to vector<32x200xf32>
    %cst_9 = arith.constant dense<0.000000e+00> : vector<32x32xf32>
    %10 = tpu.matmul %9, %7, %cst_9 {dimension_numbers = #tpu.dot_dimension_numbers<[1], [0], [0], [1], [0, 0, 1, 1], [], []>} : vector<32x200xf32>, vector<200x32xf32>, vector<32x32xf32> -> vector<32x32xf32>
    %c0_10 = arith.constant 0 : index
    %c0_11 = arith.constant 0 : index
    %c0_12 = arith.constant 0 : index
    %11 = vector.load %arg5[%c0_10, %c0_11, %c0_12] : memref<16x32x64xf32, #tpu.memory_space<vmem>>, vector<1x32x64xf32>
    %12 = vector.shape_cast %11 : vector<1x32x64xf32> to vector<32x64xf32>
    %cst_13 = arith.constant dense<0.000000e+00> : vector<32x64xf32>
    %13 = tpu.matmul %10, %12, %cst_13 {dimension_numbers = #tpu.dot_dimension_numbers<[1], [0], [0], [1], [0, 0, 1, 1], [], []>} : vector<32x32xf32>, vector<32x64xf32>, vector<32x64xf32> -> vector<32x64xf32>
    %c1 = arith.constant 1 : index
    %c0_14 = arith.constant 0 : index
    %c0_15 = arith.constant 0 : index
    %14 = vector.load %arg4[%c1, %c0_14, %c0_15] : memref<16x32x200xf32, #tpu.memory_space<vmem>>, vector<1x32x200xf32>
    %15 = vector.shape_cast %14 : vector<1x32x200xf32> to vector<32x200xf32>
    %cst_16 = arith.constant dense<0.000000e+00> : vector<32x32xf32>
    %16 = tpu.matmul %15, %7, %cst_16 {dimension_numbers = #tpu.dot_dimension_numbers<[1], [0], [0], [1], [0, 0, 1, 1], [], []>} : vector<32x200xf32>, vector<200x32xf32>, vector<32x32xf32> -> vector<32x32xf32>
    %c1_17 = arith.constant 1 : index
    %c0_18 = arith.constant 0 : index
    %c0_19 = arith.constant 0 : index
    %17 = vector.load %arg5[%c1_17, %c0_18, %c0_19] : memref<16x32x64xf32, #tpu.memory_space<vmem>>, vector<1x32x64xf32>
    %18 = vector.shape_cast %17 : vector<1x32x64xf32> to vector<32x64xf32>
    %cst_20 = arith.constant dense<0.000000e+00> : vector<32x64xf32>
    %19 = tpu.matmul %16, %18, %cst_20 {dimension_numbers = #tpu.dot_dimension_numbers<[1], [0], [0], [1], [0, 0, 1, 1], [], []>} : vector<32x32xf32>, vector<32x64xf32>, vector<32x64xf32> -> vector<32x64xf32>
    %20 = arith.addf %13, %19 : vector<32x64xf32>
    %c2 = arith.constant 2 : index
    %c0_21 = arith.constant 0 : index
    %c0_22 = arith.constant 0 : index
    %21 = vector.load %arg4[%c2, %c0_21, %c0_22] : memref<16x32x200xf32, #tpu.memory_space<vmem>>, vector<1x32x200xf32>
    %22 = vector.shape_cast %21 : vector<1x32x200xf32> to vector<32x200xf32>
    %cst_23 = arith.constant dense<0.000000e+00> : vector<32x32xf32>
    %23 = tpu.matmul %22, %7, %cst_23 {dimension_numbers = #tpu.dot_dimension_numbers<[1], [0], [0], [1], [0, 0, 1, 1], [], []>} : vector<32x200xf32>, vector<200x32xf32>, vector<32x32xf32> -> vector<32x32xf32>
    %c2_24 = arith.constant 2 : index
    %c0_25 = arith.constant 0 : index
    %c0_26 = arith.constant 0 : index
    %24 = vector.load %arg5[%c2_24, %c0_25, %c0_26] : memref<16x32x64xf32, #tpu.memory_space<vmem>>, vector<1x32x64xf32>
    %25 = vector.shape_cast %24 : vector<1x32x64xf32> to vector<32x64xf32>
    %cst_27 = arith.constant dense<0.000000e+00> : vector<32x64xf32>
    %26 = tpu.matmul %23, %25, %cst_27 {dimension_numbers = #tpu.dot_dimension_numbers<[1], [0], [0], [1], [0, 0, 1, 1], [], []>} : vector<32x32xf32>, vector<32x64xf32>, vector<32x64xf32> -> vector<32x64xf32>
    %27 = arith.addf %20, %26 : vector<32x64xf32>
    %c3 = arith.constant 3 : index
    %c0_28 = arith.constant 0 : index
    %c0_29 = arith.constant 0 : index
    %28 = vector.load %arg4[%c3, %c0_28, %c0_29] : memref<16x32x200xf32, #tpu.memory_space<vmem>>, vector<1x32x200xf32>
    %29 = vector.shape_cast %28 : vector<1x32x200xf32> to vector<32x200xf32>
    %cst_30 = arith.constant dense<0.000000e+00> : vector<32x32xf32>
    %30 = tpu.matmul %29, %7, %cst_30 {dimension_numbers = #tpu.dot_dimension_numbers<[1], [0], [0], [1], [0, 0, 1, 1], [], []>} : vector<32x200xf32>, vector<200x32xf32>, vector<32x32xf32> -> vector<32x32xf32>
    %c3_31 = arith.constant 3 : index
    %c0_32 = arith.constant 0 : index
    %c0_33 = arith.constant 0 : index
    %31 = vector.load %arg5[%c3_31, %c0_32, %c0_33] : memref<16x32x64xf32, #tpu.memory_space<vmem>>, vector<1x32x64xf32>
    %32 = vector.shape_cast %31 : vector<1x32x64xf32> to vector<32x64xf32>
    %cst_34 = arith.constant dense<0.000000e+00> : vector<32x64xf32>
    %33 = tpu.matmul %30, %32, %cst_34 {dimension_numbers = #tpu.dot_dimension_numbers<[1], [0], [0], [1], [0, 0, 1, 1], [], []>} : vector<32x32xf32>, vector<32x64xf32>, vector<32x64xf32> -> vector<32x64xf32>
    %34 = arith.addf %27, %33 : vector<32x64xf32>
    %c4 = arith.constant 4 : index
    %c0_35 = arith.constant 0 : index
    %c0_36 = arith.constant 0 : index
    %35 = vector.load %arg4[%c4, %c0_35, %c0_36] : memref<16x32x200xf32, #tpu.memory_space<vmem>>, vector<1x32x200xf32>
    %36 = vector.shape_cast %35 : vector<1x32x200xf32> to vector<32x200xf32>
    %cst_37 = arith.constant dense<0.000000e+00> : vector<32x32xf32>
    %37 = tpu.matmul %36, %7, %cst_37 {dimension_numbers = #tpu.dot_dimension_numbers<[1], [0], [0], [1], [0, 0, 1, 1], [], []>} : vector<32x200xf32>, vector<200x32xf32>, vector<32x32xf32> -> vector<32x32xf32>
    %c4_38 = arith.constant 4 : index
    %c0_39 = arith.constant 0 : index
    %c0_40 = arith.constant 0 : index
    %38 = vector.load %arg5[%c4_38, %c0_39, %c0_40] : memref<16x32x64xf32, #tpu.memory_space<vmem>>, vector<1x32x64xf32>
    %39 = vector.shape_cast %38 : vector<1x32x64xf32> to vector<32x64xf32>
    %cst_41 = arith.constant dense<0.000000e+00> : vector<32x64xf32>
    %40 = tpu.matmul %37, %39, %cst_41 {dimension_numbers = #tpu.dot_dimension_numbers<[1], [0], [0], [1], [0, 0, 1, 1], [], []>} : vector<32x32xf32>, vector<32x64xf32>, vector<32x64xf32> -> vector<32x64xf32>
    %41 = arith.addf %34, %40 : vector<32x64xf32>
    %c5 = arith.constant 5 : index
    %c0_42 = arith.constant 0 : index
    %c0_43 = arith.constant 0 : index
    %42 = vector.load %arg4[%c5, %c0_42, %c0_43] : memref<16x32x200xf32, #tpu.memory_space<vmem>>, vector<1x32x200xf32>
    %43 = vector.shape_cast %42 : vector<1x32x200xf32> to vector<32x200xf32>
    %cst_44 = arith.constant dense<0.000000e+00> : vector<32x32xf32>
    %44 = tpu.matmul %43, %7, %cst_44 {dimension_numbers = #tpu.dot_dimension_numbers<[1], [0], [0], [1], [0, 0, 1, 1], [], []>} : vector<32x200xf32>, vector<200x32xf32>, vector<32x32xf32> -> vector<32x32xf32>
    %c5_45 = arith.constant 5 : index
    %c0_46 = arith.constant 0 : index
    %c0_47 = arith.constant 0 : index
    %45 = vector.load %arg5[%c5_45, %c0_46, %c0_47] : memref<16x32x64xf32, #tpu.memory_space<vmem>>, vector<1x32x64xf32>
    %46 = vector.shape_cast %45 : vector<1x32x64xf32> to vector<32x64xf32>
    %cst_48 = arith.constant dense<0.000000e+00> : vector<32x64xf32>
    %47 = tpu.matmul %44, %46, %cst_48 {dimension_numbers = #tpu.dot_dimension_numbers<[1], [0], [0], [1], [0, 0, 1, 1], [], []>} : vector<32x32xf32>, vector<32x64xf32>, vector<32x64xf32> -> vector<32x64xf32>
    %48 = arith.addf %41, %47 : vector<32x64xf32>
    %c6 = arith.constant 6 : index
    %c0_49 = arith.constant 0 : index
    %c0_50 = arith.constant 0 : index
    %49 = vector.load %arg4[%c6, %c0_49, %c0_50] : memref<16x32x200xf32, #tpu.memory_space<vmem>>, vector<1x32x200xf32>
    %50 = vector.shape_cast %49 : vector<1x32x200xf32> to vector<32x200xf32>
    %cst_51 = arith.constant dense<0.000000e+00> : vector<32x32xf32>
    %51 = tpu.matmul %50, %7, %cst_51 {dimension_numbers = #tpu.dot_dimension_numbers<[1], [0], [0], [1], [0, 0, 1, 1], [], []>} : vector<32x200xf32>, vector<200x32xf32>, vector<32x32xf32> -> vector<32x32xf32>
    %c6_52 = arith.constant 6 : index
    %c0_53 = arith.constant 0 : index
    %c0_54 = arith.constant 0 : index
    %52 = vector.load %arg5[%c6_52, %c0_53, %c0_54] : memref<16x32x64xf32, #tpu.memory_space<vmem>>, vector<1x32x64xf32>
    %53 = vector.shape_cast %52 : vector<1x32x64xf32> to vector<32x64xf32>
    %cst_55 = arith.constant dense<0.000000e+00> : vector<32x64xf32>
    %54 = tpu.matmul %51, %53, %cst_55 {dimension_numbers = #tpu.dot_dimension_numbers<[1], [0], [0], [1], [0, 0, 1, 1], [], []>} : vector<32x32xf32>, vector<32x64xf32>, vector<32x64xf32> -> vector<32x64xf32>
    %55 = arith.addf %48, %54 : vector<32x64xf32>
    %c7 = arith.constant 7 : index
    %c0_56 = arith.constant 0 : index
    %c0_57 = arith.constant 0 : index
    %56 = vector.load %arg4[%c7, %c0_56, %c0_57] : memref<16x32x200xf32, #tpu.memory_space<vmem>>, vector<1x32x200xf32>
    %57 = vector.shape_cast %56 : vector<1x32x200xf32> to vector<32x200xf32>
    %cst_58 = arith.constant dense<0.000000e+00> : vector<32x32xf32>
    %58 = tpu.matmul %57, %7, %cst_58 {dimension_numbers = #tpu.dot_dimension_numbers<[1], [0], [0], [1], [0, 0, 1, 1], [], []>} : vector<32x200xf32>, vector<200x32xf32>, vector<32x32xf32> -> vector<32x32xf32>
    %c7_59 = arith.constant 7 : index
    %c0_60 = arith.constant 0 : index
    %c0_61 = arith.constant 0 : index
    %59 = vector.load %arg5[%c7_59, %c0_60, %c0_61] : memref<16x32x64xf32, #tpu.memory_space<vmem>>, vector<1x32x64xf32>
    %60 = vector.shape_cast %59 : vector<1x32x64xf32> to vector<32x64xf32>
    %cst_62 = arith.constant dense<0.000000e+00> : vector<32x64xf32>
    %61 = tpu.matmul %58, %60, %cst_62 {dimension_numbers = #tpu.dot_dimension_numbers<[1], [0], [0], [1], [0, 0, 1, 1], [], []>} : vector<32x32xf32>, vector<32x64xf32>, vector<32x64xf32> -> vector<32x64xf32>
    %62 = arith.addf %55, %61 : vector<32x64xf32>
    %c8 = arith.constant 8 : index
    %c0_63 = arith.constant 0 : index
    %c0_64 = arith.constant 0 : index
    %63 = vector.load %arg4[%c8, %c0_63, %c0_64] : memref<16x32x200xf32, #tpu.memory_space<vmem>>, vector<1x32x200xf32>
    %64 = vector.shape_cast %63 : vector<1x32x200xf32> to vector<32x200xf32>
    %cst_65 = arith.constant dense<0.000000e+00> : vector<32x32xf32>
    %65 = tpu.matmul %64, %7, %cst_65 {dimension_numbers = #tpu.dot_dimension_numbers<[1], [0], [0], [1], [0, 0, 1, 1], [], []>} : vector<32x200xf32>, vector<200x32xf32>, vector<32x32xf32> -> vector<32x32xf32>
    %c8_66 = arith.constant 8 : index
    %c0_67 = arith.constant 0 : index
    %c0_68 = arith.constant 0 : index
    %66 = vector.load %arg5[%c8_66, %c0_67, %c0_68] : memref<16x32x64xf32, #tpu.memory_space<vmem>>, vector<1x32x64xf32>
    %67 = vector.shape_cast %66 : vector<1x32x64xf32> to vector<32x64xf32>
    %cst_69 = arith.constant dense<0.000000e+00> : vector<32x64xf32>
    %68 = tpu.matmul %65, %67, %cst_69 {dimension_numbers = #tpu.dot_dimension_numbers<[1], [0], [0], [1], [0, 0, 1, 1], [], []>} : vector<32x32xf32>, vector<32x64xf32>, vector<32x64xf32> -> vector<32x64xf32>
    %69 = arith.addf %62, %68 : vector<32x64xf32>
    %c9 = arith.constant 9 : index
    %c0_70 = arith.constant 0 : index
    %c0_71 = arith.constant 0 : index
    %70 = vector.load %arg4[%c9, %c0_70, %c0_71] : memref<16x32x200xf32, #tpu.memory_space<vmem>>, vector<1x32x200xf32>
    %71 = vector.shape_cast %70 : vector<1x32x200xf32> to vector<32x200xf32>
    %cst_72 = arith.constant dense<0.000000e+00> : vector<32x32xf32>
    %72 = tpu.matmul %71, %7, %cst_72 {dimension_numbers = #tpu.dot_dimension_numbers<[1], [0], [0], [1], [0, 0, 1, 1], [], []>} : vector<32x200xf32>, vector<200x32xf32>, vector<32x32xf32> -> vector<32x32xf32>
    %c9_73 = arith.constant 9 : index
    %c0_74 = arith.constant 0 : index
    %c0_75 = arith.constant 0 : index
    %73 = vector.load %arg5[%c9_73, %c0_74, %c0_75] : memref<16x32x64xf32, #tpu.memory_space<vmem>>, vector<1x32x64xf32>
    %74 = vector.shape_cast %73 : vector<1x32x64xf32> to vector<32x64xf32>
    %cst_76 = arith.constant dense<0.000000e+00> : vector<32x64xf32>
    %75 = tpu.matmul %72, %74, %cst_76 {dimension_numbers = #tpu.dot_dimension_numbers<[1], [0], [0], [1], [0, 0, 1, 1], [], []>} : vector<32x32xf32>, vector<32x64xf32>, vector<32x64xf32> -> vector<32x64xf32>
    %76 = arith.addf %69, %75 : vector<32x64xf32>
    %c10 = arith.constant 10 : index
    %c0_77 = arith.constant 0 : index
    %c0_78 = arith.constant 0 : index
    %77 = vector.load %arg4[%c10, %c0_77, %c0_78] : memref<16x32x200xf32, #tpu.memory_space<vmem>>, vector<1x32x200xf32>
    %78 = vector.shape_cast %77 : vector<1x32x200xf32> to vector<32x200xf32>
    %cst_79 = arith.constant dense<0.000000e+00> : vector<32x32xf32>
    %79 = tpu.matmul %78, %7, %cst_79 {dimension_numbers = #tpu.dot_dimension_numbers<[1], [0], [0], [1], [0, 0, 1, 1], [], []>} : vector<32x200xf32>, vector<200x32xf32>, vector<32x32xf32> -> vector<32x32xf32>
    %c10_80 = arith.constant 10 : index
    %c0_81 = arith.constant 0 : index
    %c0_82 = arith.constant 0 : index
    %80 = vector.load %arg5[%c10_80, %c0_81, %c0_82] : memref<16x32x64xf32, #tpu.memory_space<vmem>>, vector<1x32x64xf32>
    %81 = vector.shape_cast %80 : vector<1x32x64xf32> to vector<32x64xf32>
    %cst_83 = arith.constant dense<0.000000e+00> : vector<32x64xf32>
    %82 = tpu.matmul %79, %81, %cst_83 {dimension_numbers = #tpu.dot_dimension_numbers<[1], [0], [0], [1], [0, 0, 1, 1], [], []>} : vector<32x32xf32>, vector<32x64xf32>, vector<32x64xf32> -> vector<32x64xf32>
    %83 = arith.addf %76, %82 : vector<32x64xf32>
    %c11 = arith.constant 11 : index
    %c0_84 = arith.constant 0 : index
    %c0_85 = arith.constant 0 : index
    %84 = vector.load %arg4[%c11, %c0_84, %c0_85] : memref<16x32x200xf32, #tpu.memory_space<vmem>>, vector<1x32x200xf32>
    %85 = vector.shape_cast %84 : vector<1x32x200xf32> to vector<32x200xf32>
    %cst_86 = arith.constant dense<0.000000e+00> : vector<32x32xf32>
    %86 = tpu.matmul %85, %7, %cst_86 {dimension_numbers = #tpu.dot_dimension_numbers<[1], [0], [0], [1], [0, 0, 1, 1], [], []>} : vector<32x200xf32>, vector<200x32xf32>, vector<32x32xf32> -> vector<32x32xf32>
    %c11_87 = arith.constant 11 : index
    %c0_88 = arith.constant 0 : index
    %c0_89 = arith.constant 0 : index
    %87 = vector.load %arg5[%c11_87, %c0_88, %c0_89] : memref<16x32x64xf32, #tpu.memory_space<vmem>>, vector<1x32x64xf32>
    %88 = vector.shape_cast %87 : vector<1x32x64xf32> to vector<32x64xf32>
    %cst_90 = arith.constant dense<0.000000e+00> : vector<32x64xf32>
    %89 = tpu.matmul %86, %88, %cst_90 {dimension_numbers = #tpu.dot_dimension_numbers<[1], [0], [0], [1], [0, 0, 1, 1], [], []>} : vector<32x32xf32>, vector<32x64xf32>, vector<32x64xf32> -> vector<32x64xf32>
    %90 = arith.addf %83, %89 : vector<32x64xf32>
    %c12 = arith.constant 12 : index
    %c0_91 = arith.constant 0 : index
    %c0_92 = arith.constant 0 : index
    %91 = vector.load %arg4[%c12, %c0_91, %c0_92] : memref<16x32x200xf32, #tpu.memory_space<vmem>>, vector<1x32x200xf32>
    %92 = vector.shape_cast %91 : vector<1x32x200xf32> to vector<32x200xf32>
    %cst_93 = arith.constant dense<0.000000e+00> : vector<32x32xf32>
    %93 = tpu.matmul %92, %7, %cst_93 {dimension_numbers = #tpu.dot_dimension_numbers<[1], [0], [0], [1], [0, 0, 1, 1], [], []>} : vector<32x200xf32>, vector<200x32xf32>, vector<32x32xf32> -> vector<32x32xf32>
    %c12_94 = arith.constant 12 : index
    %c0_95 = arith.constant 0 : index
    %c0_96 = arith.constant 0 : index
    %94 = vector.load %arg5[%c12_94, %c0_95, %c0_96] : memref<16x32x64xf32, #tpu.memory_space<vmem>>, vector<1x32x64xf32>
    %95 = vector.shape_cast %94 : vector<1x32x64xf32> to vector<32x64xf32>
    %cst_97 = arith.constant dense<0.000000e+00> : vector<32x64xf32>
    %96 = tpu.matmul %93, %95, %cst_97 {dimension_numbers = #tpu.dot_dimension_numbers<[1], [0], [0], [1], [0, 0, 1, 1], [], []>} : vector<32x32xf32>, vector<32x64xf32>, vector<32x64xf32> -> vector<32x64xf32>
    %97 = arith.addf %90, %96 : vector<32x64xf32>
    %c13 = arith.constant 13 : index
    %c0_98 = arith.constant 0 : index
    %c0_99 = arith.constant 0 : index
    %98 = vector.load %arg4[%c13, %c0_98, %c0_99] : memref<16x32x200xf32, #tpu.memory_space<vmem>>, vector<1x32x200xf32>
    %99 = vector.shape_cast %98 : vector<1x32x200xf32> to vector<32x200xf32>
    %cst_100 = arith.constant dense<0.000000e+00> : vector<32x32xf32>
    %100 = tpu.matmul %99, %7, %cst_100 {dimension_numbers = #tpu.dot_dimension_numbers<[1], [0], [0], [1], [0, 0, 1, 1], [], []>} : vector<32x200xf32>, vector<200x32xf32>, vector<32x32xf32> -> vector<32x32xf32>
    %c13_101 = arith.constant 13 : index
    %c0_102 = arith.constant 0 : index
    %c0_103 = arith.constant 0 : index
    %101 = vector.load %arg5[%c13_101, %c0_102, %c0_103] : memref<16x32x64xf32, #tpu.memory_space<vmem>>, vector<1x32x64xf32>
    %102 = vector.shape_cast %101 : vector<1x32x64xf32> to vector<32x64xf32>
    %cst_104 = arith.constant dense<0.000000e+00> : vector<32x64xf32>
    %103 = tpu.matmul %100, %102, %cst_104 {dimension_numbers = #tpu.dot_dimension_numbers<[1], [0], [0], [1], [0, 0, 1, 1], [], []>} : vector<32x32xf32>, vector<32x64xf32>, vector<32x64xf32> -> vector<32x64xf32>
    %104 = arith.addf %97, %103 : vector<32x64xf32>
    %c14 = arith.constant 14 : index
    %c0_105 = arith.constant 0 : index
    %c0_106 = arith.constant 0 : index
    %105 = vector.load %arg4[%c14, %c0_105, %c0_106] : memref<16x32x200xf32, #tpu.memory_space<vmem>>, vector<1x32x200xf32>
    %106 = vector.shape_cast %105 : vector<1x32x200xf32> to vector<32x200xf32>
    %cst_107 = arith.constant dense<0.000000e+00> : vector<32x32xf32>
    %107 = tpu.matmul %106, %7, %cst_107 {dimension_numbers = #tpu.dot_dimension_numbers<[1], [0], [0], [1], [0, 0, 1, 1], [], []>} : vector<32x200xf32>, vector<200x32xf32>, vector<32x32xf32> -> vector<32x32xf32>
    %c14_108 = arith.constant 14 : index
    %c0_109 = arith.constant 0 : index
    %c0_110 = arith.constant 0 : index
    %108 = vector.load %arg5[%c14_108, %c0_109, %c0_110] : memref<16x32x64xf32, #tpu.memory_space<vmem>>, vector<1x32x64xf32>
    %109 = vector.shape_cast %108 : vector<1x32x64xf32> to vector<32x64xf32>
    %cst_111 = arith.constant dense<0.000000e+00> : vector<32x64xf32>
    %110 = tpu.matmul %107, %109, %cst_111 {dimension_numbers = #tpu.dot_dimension_numbers<[1], [0], [0], [1], [0, 0, 1, 1], [], []>} : vector<32x32xf32>, vector<32x64xf32>, vector<32x64xf32> -> vector<32x64xf32>
    %111 = arith.addf %104, %110 : vector<32x64xf32>
    %c15 = arith.constant 15 : index
    %c0_112 = arith.constant 0 : index
    %c0_113 = arith.constant 0 : index
    %112 = vector.load %arg4[%c15, %c0_112, %c0_113] : memref<16x32x200xf32, #tpu.memory_space<vmem>>, vector<1x32x200xf32>
    %113 = vector.shape_cast %112 : vector<1x32x200xf32> to vector<32x200xf32>
    %cst_114 = arith.constant dense<0.000000e+00> : vector<32x32xf32>
    %114 = tpu.matmul %113, %7, %cst_114 {dimension_numbers = #tpu.dot_dimension_numbers<[1], [0], [0], [1], [0, 0, 1, 1], [], []>} : vector<32x200xf32>, vector<200x32xf32>, vector<32x32xf32> -> vector<32x32xf32>
    %c15_115 = arith.constant 15 : index
    %c0_116 = arith.constant 0 : index
    %c0_117 = arith.constant 0 : index
    %115 = vector.load %arg5[%c15_115, %c0_116, %c0_117] : memref<16x32x64xf32, #tpu.memory_space<vmem>>, vector<1x32x64xf32>
    %116 = vector.shape_cast %115 : vector<1x32x64xf32> to vector<32x64xf32>
    %cst_118 = arith.constant dense<0.000000e+00> : vector<32x64xf32>
    %117 = tpu.matmul %114, %116, %cst_118 {dimension_numbers = #tpu.dot_dimension_numbers<[1], [0], [0], [1], [0, 0, 1, 1], [], []>} : vector<32x32xf32>, vector<32x64xf32>, vector<32x64xf32> -> vector<32x64xf32>
    %118 = arith.addf %111, %117 : vector<32x64xf32>
    %c0_119 = arith.constant 0 : index
    %c0_120 = arith.constant 0 : index
    %119 = vector.load %arg6[%c0_119, %c0_120] : memref<1x64xf32, #tpu.memory_space<vmem>>, vector<1x64xf32>
    %120 = vector.broadcast %119 : vector<1x64xf32> to vector<32x64xf32>
    %121 = arith.addf %118, %120 : vector<32x64xf32>
    %cst_121 = arith.constant 0.000000e+00 : f32
    %122 = vector.broadcast %cst_121 : f32 to vector<32x64xf32>
    %123 = arith.maximumf %121, %122 : vector<32x64xf32>
    %c0_122 = arith.constant 0 : index
    %c0_123 = arith.constant 0 : index
    %c0_124 = arith.constant 0 : index
    %124 = vector.load %arg7[%c0_122, %c0_123, %c0_124] : memref<9x8x32xf32, #tpu.memory_space<vmem>>, vector<1x8x32xf32>
    %125 = vector.shape_cast %124 : vector<1x8x32xf32> to vector<8x32xf32>
    %cst_125 = arith.constant dense<0.000000e+00> : vector<8x64xf32>
    %126 = tpu.matmul %125, %123, %cst_125 {dimension_numbers = #tpu.dot_dimension_numbers<[1], [0], [0], [1], [0, 0, 1, 1], [], []>} : vector<8x32xf32>, vector<32x64xf32>, vector<8x64xf32> -> vector<8x64xf32>
    %c0_126 = arith.constant 0 : index
    %c0_127 = arith.constant 0 : index
    %c0_128 = arith.constant 0 : index
    %127 = vector.load %arg8[%c0_126, %c0_127, %c0_128] : memref<9x64x64xf32, #tpu.memory_space<vmem>>, vector<1x64x64xf32>
    %128 = vector.shape_cast %127 : vector<1x64x64xf32> to vector<64x64xf32>
    %cst_129 = arith.constant dense<0.000000e+00> : vector<8x64xf32>
    %129 = tpu.matmul %126, %128, %cst_129 {dimension_numbers = #tpu.dot_dimension_numbers<[1], [0], [0], [1], [0, 0, 1, 1], [], []>} : vector<8x64xf32>, vector<64x64xf32>, vector<8x64xf32> -> vector<8x64xf32>
    %c1_130 = arith.constant 1 : index
    %c0_131 = arith.constant 0 : index
    %c0_132 = arith.constant 0 : index
    %130 = vector.load %arg7[%c1_130, %c0_131, %c0_132] : memref<9x8x32xf32, #tpu.memory_space<vmem>>, vector<1x8x32xf32>
    %131 = vector.shape_cast %130 : vector<1x8x32xf32> to vector<8x32xf32>
    %cst_133 = arith.constant dense<0.000000e+00> : vector<8x64xf32>
    %132 = tpu.matmul %131, %123, %cst_133 {dimension_numbers = #tpu.dot_dimension_numbers<[1], [0], [0], [1], [0, 0, 1, 1], [], []>} : vector<8x32xf32>, vector<32x64xf32>, vector<8x64xf32> -> vector<8x64xf32>
    %c1_134 = arith.constant 1 : index
    %c0_135 = arith.constant 0 : index
    %c0_136 = arith.constant 0 : index
    %133 = vector.load %arg8[%c1_134, %c0_135, %c0_136] : memref<9x64x64xf32, #tpu.memory_space<vmem>>, vector<1x64x64xf32>
    %134 = vector.shape_cast %133 : vector<1x64x64xf32> to vector<64x64xf32>
    %cst_137 = arith.constant dense<0.000000e+00> : vector<8x64xf32>
    %135 = tpu.matmul %132, %134, %cst_137 {dimension_numbers = #tpu.dot_dimension_numbers<[1], [0], [0], [1], [0, 0, 1, 1], [], []>} : vector<8x64xf32>, vector<64x64xf32>, vector<8x64xf32> -> vector<8x64xf32>
    %136 = arith.addf %129, %135 : vector<8x64xf32>
    %c2_138 = arith.constant 2 : index
    %c0_139 = arith.constant 0 : index
    %c0_140 = arith.constant 0 : index
    %137 = vector.load %arg7[%c2_138, %c0_139, %c0_140] : memref<9x8x32xf32, #tpu.memory_space<vmem>>, vector<1x8x32xf32>
    %138 = vector.shape_cast %137 : vector<1x8x32xf32> to vector<8x32xf32>
    %cst_141 = arith.constant dense<0.000000e+00> : vector<8x64xf32>
    %139 = tpu.matmul %138, %123, %cst_141 {dimension_numbers = #tpu.dot_dimension_numbers<[1], [0], [0], [1], [0, 0, 1, 1], [], []>} : vector<8x32xf32>, vector<32x64xf32>, vector<8x64xf32> -> vector<8x64xf32>
    %c2_142 = arith.constant 2 : index
    %c0_143 = arith.constant 0 : index
    %c0_144 = arith.constant 0 : index
    %140 = vector.load %arg8[%c2_142, %c0_143, %c0_144] : memref<9x64x64xf32, #tpu.memory_space<vmem>>, vector<1x64x64xf32>
    %141 = vector.shape_cast %140 : vector<1x64x64xf32> to vector<64x64xf32>
    %cst_145 = arith.constant dense<0.000000e+00> : vector<8x64xf32>
    %142 = tpu.matmul %139, %141, %cst_145 {dimension_numbers = #tpu.dot_dimension_numbers<[1], [0], [0], [1], [0, 0, 1, 1], [], []>} : vector<8x64xf32>, vector<64x64xf32>, vector<8x64xf32> -> vector<8x64xf32>
    %143 = arith.addf %136, %142 : vector<8x64xf32>
    %c3_146 = arith.constant 3 : index
    %c0_147 = arith.constant 0 : index
    %c0_148 = arith.constant 0 : index
    %144 = vector.load %arg7[%c3_146, %c0_147, %c0_148] : memref<9x8x32xf32, #tpu.memory_space<vmem>>, vector<1x8x32xf32>
    %145 = vector.shape_cast %144 : vector<1x8x32xf32> to vector<8x32xf32>
    %cst_149 = arith.constant dense<0.000000e+00> : vector<8x64xf32>
    %146 = tpu.matmul %145, %123, %cst_149 {dimension_numbers = #tpu.dot_dimension_numbers<[1], [0], [0], [1], [0, 0, 1, 1], [], []>} : vector<8x32xf32>, vector<32x64xf32>, vector<8x64xf32> -> vector<8x64xf32>
    %c3_150 = arith.constant 3 : index
    %c0_151 = arith.constant 0 : index
    %c0_152 = arith.constant 0 : index
    %147 = vector.load %arg8[%c3_150, %c0_151, %c0_152] : memref<9x64x64xf32, #tpu.memory_space<vmem>>, vector<1x64x64xf32>
    %148 = vector.shape_cast %147 : vector<1x64x64xf32> to vector<64x64xf32>
    %cst_153 = arith.constant dense<0.000000e+00> : vector<8x64xf32>
    %149 = tpu.matmul %146, %148, %cst_153 {dimension_numbers = #tpu.dot_dimension_numbers<[1], [0], [0], [1], [0, 0, 1, 1], [], []>} : vector<8x64xf32>, vector<64x64xf32>, vector<8x64xf32> -> vector<8x64xf32>
    %150 = arith.addf %143, %149 : vector<8x64xf32>
    %c4_154 = arith.constant 4 : index
    %c0_155 = arith.constant 0 : index
    %c0_156 = arith.constant 0 : index
    %151 = vector.load %arg7[%c4_154, %c0_155, %c0_156] : memref<9x8x32xf32, #tpu.memory_space<vmem>>, vector<1x8x32xf32>
    %152 = vector.shape_cast %151 : vector<1x8x32xf32> to vector<8x32xf32>
    %cst_157 = arith.constant dense<0.000000e+00> : vector<8x64xf32>
    %153 = tpu.matmul %152, %123, %cst_157 {dimension_numbers = #tpu.dot_dimension_numbers<[1], [0], [0], [1], [0, 0, 1, 1], [], []>} : vector<8x32xf32>, vector<32x64xf32>, vector<8x64xf32> -> vector<8x64xf32>
    %c4_158 = arith.constant 4 : index
    %c0_159 = arith.constant 0 : index
    %c0_160 = arith.constant 0 : index
    %154 = vector.load %arg8[%c4_158, %c0_159, %c0_160] : memref<9x64x64xf32, #tpu.memory_space<vmem>>, vector<1x64x64xf32>
    %155 = vector.shape_cast %154 : vector<1x64x64xf32> to vector<64x64xf32>
    %cst_161 = arith.constant dense<0.000000e+00> : vector<8x64xf32>
    %156 = tpu.matmul %153, %155, %cst_161 {dimension_numbers = #tpu.dot_dimension_numbers<[1], [0], [0], [1], [0, 0, 1, 1], [], []>} : vector<8x64xf32>, vector<64x64xf32>, vector<8x64xf32> -> vector<8x64xf32>
    %157 = arith.addf %150, %156 : vector<8x64xf32>
    %c5_162 = arith.constant 5 : index
    %c0_163 = arith.constant 0 : index
    %c0_164 = arith.constant 0 : index
    %158 = vector.load %arg7[%c5_162, %c0_163, %c0_164] : memref<9x8x32xf32, #tpu.memory_space<vmem>>, vector<1x8x32xf32>
    %159 = vector.shape_cast %158 : vector<1x8x32xf32> to vector<8x32xf32>
    %cst_165 = arith.constant dense<0.000000e+00> : vector<8x64xf32>
    %160 = tpu.matmul %159, %123, %cst_165 {dimension_numbers = #tpu.dot_dimension_numbers<[1], [0], [0], [1], [0, 0, 1, 1], [], []>} : vector<8x32xf32>, vector<32x64xf32>, vector<8x64xf32> -> vector<8x64xf32>
    %c5_166 = arith.constant 5 : index
    %c0_167 = arith.constant 0 : index
    %c0_168 = arith.constant 0 : index
    %161 = vector.load %arg8[%c5_166, %c0_167, %c0_168] : memref<9x64x64xf32, #tpu.memory_space<vmem>>, vector<1x64x64xf32>
    %162 = vector.shape_cast %161 : vector<1x64x64xf32> to vector<64x64xf32>
    %cst_169 = arith.constant dense<0.000000e+00> : vector<8x64xf32>
    %163 = tpu.matmul %160, %162, %cst_169 {dimension_numbers = #tpu.dot_dimension_numbers<[1], [0], [0], [1], [0, 0, 1, 1], [], []>} : vector<8x64xf32>, vector<64x64xf32>, vector<8x64xf32> -> vector<8x64xf32>
    %164 = arith.addf %157, %163 : vector<8x64xf32>
    %c6_170 = arith.constant 6 : index
    %c0_171 = arith.constant 0 : index
    %c0_172 = arith.constant 0 : index
    %165 = vector.load %arg7[%c6_170, %c0_171, %c0_172] : memref<9x8x32xf32, #tpu.memory_space<vmem>>, vector<1x8x32xf32>
    %166 = vector.shape_cast %165 : vector<1x8x32xf32> to vector<8x32xf32>
    %cst_173 = arith.constant dense<0.000000e+00> : vector<8x64xf32>
    %167 = tpu.matmul %166, %123, %cst_173 {dimension_numbers = #tpu.dot_dimension_numbers<[1], [0], [0], [1], [0, 0, 1, 1], [], []>} : vector<8x32xf32>, vector<32x64xf32>, vector<8x64xf32> -> vector<8x64xf32>
    %c6_174 = arith.constant 6 : index
    %c0_175 = arith.constant 0 : index
    %c0_176 = arith.constant 0 : index
    %168 = vector.load %arg8[%c6_174, %c0_175, %c0_176] : memref<9x64x64xf32, #tpu.memory_space<vmem>>, vector<1x64x64xf32>
    %169 = vector.shape_cast %168 : vector<1x64x64xf32> to vector<64x64xf32>
    %cst_177 = arith.constant dense<0.000000e+00> : vector<8x64xf32>
    %170 = tpu.matmul %167, %169, %cst_177 {dimension_numbers = #tpu.dot_dimension_numbers<[1], [0], [0], [1], [0, 0, 1, 1], [], []>} : vector<8x64xf32>, vector<64x64xf32>, vector<8x64xf32> -> vector<8x64xf32>
    %171 = arith.addf %164, %170 : vector<8x64xf32>
    %c7_178 = arith.constant 7 : index
    %c0_179 = arith.constant 0 : index
    %c0_180 = arith.constant 0 : index
    %172 = vector.load %arg7[%c7_178, %c0_179, %c0_180] : memref<9x8x32xf32, #tpu.memory_space<vmem>>, vector<1x8x32xf32>
    %173 = vector.shape_cast %172 : vector<1x8x32xf32> to vector<8x32xf32>
    %cst_181 = arith.constant dense<0.000000e+00> : vector<8x64xf32>
    %174 = tpu.matmul %173, %123, %cst_181 {dimension_numbers = #tpu.dot_dimension_numbers<[1], [0], [0], [1], [0, 0, 1, 1], [], []>} : vector<8x32xf32>, vector<32x64xf32>, vector<8x64xf32> -> vector<8x64xf32>
    %c7_182 = arith.constant 7 : index
    %c0_183 = arith.constant 0 : index
    %c0_184 = arith.constant 0 : index
    %175 = vector.load %arg8[%c7_182, %c0_183, %c0_184] : memref<9x64x64xf32, #tpu.memory_space<vmem>>, vector<1x64x64xf32>
    %176 = vector.shape_cast %175 : vector<1x64x64xf32> to vector<64x64xf32>
    %cst_185 = arith.constant dense<0.000000e+00> : vector<8x64xf32>
    %177 = tpu.matmul %174, %176, %cst_185 {dimension_numbers = #tpu.dot_dimension_numbers<[1], [0], [0], [1], [0, 0, 1, 1], [], []>} : vector<8x64xf32>, vector<64x64xf32>, vector<8x64xf32> -> vector<8x64xf32>
    %178 = arith.addf %171, %177 : vector<8x64xf32>
    %c8_186 = arith.constant 8 : index
    %c0_187 = arith.constant 0 : index
    %c0_188 = arith.constant 0 : index
    %179 = vector.load %arg7[%c8_186, %c0_187, %c0_188] : memref<9x8x32xf32, #tpu.memory_space<vmem>>, vector<1x8x32xf32>
    %180 = vector.shape_cast %179 : vector<1x8x32xf32> to vector<8x32xf32>
    %cst_189 = arith.constant dense<0.000000e+00> : vector<8x64xf32>
    %181 = tpu.matmul %180, %123, %cst_189 {dimension_numbers = #tpu.dot_dimension_numbers<[1], [0], [0], [1], [0, 0, 1, 1], [], []>} : vector<8x32xf32>, vector<32x64xf32>, vector<8x64xf32> -> vector<8x64xf32>
    %c8_190 = arith.constant 8 : index
    %c0_191 = arith.constant 0 : index
    %c0_192 = arith.constant 0 : index
    %182 = vector.load %arg8[%c8_190, %c0_191, %c0_192] : memref<9x64x64xf32, #tpu.memory_space<vmem>>, vector<1x64x64xf32>
    %183 = vector.shape_cast %182 : vector<1x64x64xf32> to vector<64x64xf32>
    %cst_193 = arith.constant dense<0.000000e+00> : vector<8x64xf32>
    %184 = tpu.matmul %181, %183, %cst_193 {dimension_numbers = #tpu.dot_dimension_numbers<[1], [0], [0], [1], [0, 0, 1, 1], [], []>} : vector<8x64xf32>, vector<64x64xf32>, vector<8x64xf32> -> vector<8x64xf32>
    %185 = arith.addf %178, %184 : vector<8x64xf32>
    %c0_194 = arith.constant 0 : index
    %c0_195 = arith.constant 0 : index
    %186 = vector.load %arg9[%c0_194, %c0_195] : memref<1x64xf32, #tpu.memory_space<vmem>>, vector<1x64xf32>
    %187 = vector.broadcast %186 : vector<1x64xf32> to vector<8x64xf32>
    %188 = arith.addf %185, %187 : vector<8x64xf32>
    %cst_196 = arith.constant 0.000000e+00 : f32
    %189 = vector.broadcast %cst_196 : f32 to vector<8x64xf32>
    %190 = arith.maximumf %188, %189 : vector<8x64xf32>
    %191 = vector.extract_strided_slice %190 {offsets = [0, 0], sizes = [2, 64], strides = [1, 1]} : vector<8x64xf32> to vector<2x64xf32>
    %c0_197 = arith.constant 0 : index
    %c0_198 = arith.constant 0 : index
    %c0_199 = arith.constant 0 : index
    %192 = vector.load %arg10[%c0_197, %c0_198, %c0_199] : memref<4x64x128xf32, #tpu.memory_space<vmem>>, vector<1x64x128xf32>
    %193 = vector.shape_cast %192 : vector<1x64x128xf32> to vector<64x128xf32>
    %cst_200 = arith.constant dense<0.000000e+00> : vector<2x128xf32>
    %194 = tpu.matmul %191, %193, %cst_200 {dimension_numbers = #tpu.dot_dimension_numbers<[1], [0], [0], [1], [0, 0, 1, 1], [], []>} : vector<2x64xf32>, vector<64x128xf32>, vector<2x128xf32> -> vector<2x128xf32>
    %195 = vector.extract_strided_slice %190 {offsets = [2, 0], sizes = [2, 64], strides = [1, 1]} : vector<8x64xf32> to vector<2x64xf32>
    %c1_201 = arith.constant 1 : index
    %c0_202 = arith.constant 0 : index
    %c0_203 = arith.constant 0 : index
    %196 = vector.load %arg10[%c1_201, %c0_202, %c0_203] : memref<4x64x128xf32, #tpu.memory_space<vmem>>, vector<1x64x128xf32>
    %197 = vector.shape_cast %196 : vector<1x64x128xf32> to vector<64x128xf32>
    %cst_204 = arith.constant dense<0.000000e+00> : vector<2x128xf32>
    %198 = tpu.matmul %195, %197, %cst_204 {dimension_numbers = #tpu.dot_dimension_numbers<[1], [0], [0], [1], [0, 0, 1, 1], [], []>} : vector<2x64xf32>, vector<64x128xf32>, vector<2x128xf32> -> vector<2x128xf32>
    %199 = arith.addf %194, %198 : vector<2x128xf32>
    %200 = vector.extract_strided_slice %190 {offsets = [4, 0], sizes = [2, 64], strides = [1, 1]} : vector<8x64xf32> to vector<2x64xf32>
    %c2_205 = arith.constant 2 : index
    %c0_206 = arith.constant 0 : index
    %c0_207 = arith.constant 0 : index
    %201 = vector.load %arg10[%c2_205, %c0_206, %c0_207] : memref<4x64x128xf32, #tpu.memory_space<vmem>>, vector<1x64x128xf32>
    %202 = vector.shape_cast %201 : vector<1x64x128xf32> to vector<64x128xf32>
    %cst_208 = arith.constant dense<0.000000e+00> : vector<2x128xf32>
    %203 = tpu.matmul %200, %202, %cst_208 {dimension_numbers = #tpu.dot_dimension_numbers<[1], [0], [0], [1], [0, 0, 1, 1], [], []>} : vector<2x64xf32>, vector<64x128xf32>, vector<2x128xf32> -> vector<2x128xf32>
    %204 = arith.addf %199, %203 : vector<2x128xf32>
    %205 = vector.extract_strided_slice %190 {offsets = [6, 0], sizes = [2, 64], strides = [1, 1]} : vector<8x64xf32> to vector<2x64xf32>
    %c3_209 = arith.constant 3 : index
    %c0_210 = arith.constant 0 : index
    %c0_211 = arith.constant 0 : index
    %206 = vector.load %arg10[%c3_209, %c0_210, %c0_211] : memref<4x64x128xf32, #tpu.memory_space<vmem>>, vector<1x64x128xf32>
    %207 = vector.shape_cast %206 : vector<1x64x128xf32> to vector<64x128xf32>
    %cst_212 = arith.constant dense<0.000000e+00> : vector<2x128xf32>
    %208 = tpu.matmul %205, %207, %cst_212 {dimension_numbers = #tpu.dot_dimension_numbers<[1], [0], [0], [1], [0, 0, 1, 1], [], []>} : vector<2x64xf32>, vector<64x128xf32>, vector<2x128xf32> -> vector<2x128xf32>
    %209 = arith.addf %204, %208 : vector<2x128xf32>
    %c0_213 = arith.constant 0 : index
    %c0_214 = arith.constant 0 : index
    %210 = vector.load %arg11[%c0_213, %c0_214] : memref<1x128xf32, #tpu.memory_space<vmem>>, vector<1x128xf32>
    %211 = vector.broadcast %210 : vector<1x128xf32> to vector<2x128xf32>
    %212 = arith.addf %209, %211 : vector<2x128xf32>
    %cst_215 = arith.constant 0.000000e+00 : f32
    %213 = vector.broadcast %cst_215 : f32 to vector<2x128xf32>
    %214 = arith.maximumf %212, %213 : vector<2x128xf32>
    %c0_216 = arith.constant 0 : index
    %c0_217 = arith.constant 0 : index
    %215 = vector.load %arg12[%c0_216, %c0_217] : memref<128x64xf32, #tpu.memory_space<vmem>>, vector<128x64xf32>
    %cst_218 = arith.constant dense<0.000000e+00> : vector<2x64xf32>
    %216 = tpu.matmul %214, %215, %cst_218 {dimension_numbers = #tpu.dot_dimension_numbers<[1], [0], [0], [1], [0, 0, 1, 1], [], []>} : vector<2x128xf32>, vector<128x64xf32>, vector<2x64xf32> -> vector<2x64xf32>
    %c0_219 = arith.constant 0 : index
    %c0_220 = arith.constant 0 : index
    %217 = vector.load %arg13[%c0_219, %c0_220] : memref<1x64xf32, #tpu.memory_space<vmem>>, vector<1x64xf32>
    %218 = vector.broadcast %217 : vector<1x64xf32> to vector<2x64xf32>
    %219 = arith.addf %216, %218 : vector<2x64xf32>
    %cst_221 = arith.constant 0.000000e+00 : f32
    %220 = vector.broadcast %cst_221 : f32 to vector<2x64xf32>
    %221 = arith.maximumf %219, %220 : vector<2x64xf32>
    %c0_222 = arith.constant 0 : index
    %c0_223 = arith.constant 0 : index
    %222 = vector.load %arg14[%c0_222, %c0_223] : memref<64x5xf32, #tpu.memory_space<vmem>>, vector<64x5xf32>
    %cst_224 = arith.constant dense<0.000000e+00> : vector<2x5xf32>
    %223 = tpu.matmul %221, %222, %cst_224 {dimension_numbers = #tpu.dot_dimension_numbers<[1], [0], [0], [1], [0, 0, 1, 1], [], []>} : vector<2x64xf32>, vector<64x5xf32>, vector<2x5xf32> -> vector<2x5xf32>
    %c0_225 = arith.constant 0 : index
    %c0_226 = arith.constant 0 : index
    %224 = vector.load %arg15[%c0_225, %c0_226] : memref<1x5xf32, #tpu.memory_space<vmem>>, vector<1x5xf32>
    %225 = vector.broadcast %224 : vector<1x5xf32> to vector<2x5xf32>
    %226 = arith.addf %223, %225 : vector<2x5xf32>
    %c0_227 = arith.constant 0 : index
    %c0_228 = arith.constant 0 : index
    %227 = vector.load %arg16[%c0_227, %c0_228] : memref<2x5xf32, #tpu.memory_space<vmem>>, vector<2x5xf32>
    tpu.vector_store %arg16[%c0_227, %c0_228], %226 {strides = array<i32>} : memref<2x5xf32, #tpu.memory_space<vmem>>, vector<2x5xf32>,
    return
  }
  func.func @transform_0(%arg0: i32) -> (i32, i32) {
    %c0_i32 = arith.constant 0 : i32
    %c0_i32_0 = arith.constant 0 : i32
    %c0_i32_1 = arith.constant 0 : i32
    return %c0_i32, %c0_i32_0 : i32, i32
  }
  func.func @transform_1(%arg0: i32) -> (i32, i32) {
    %c0_i32 = arith.constant 0 : i32
    %c0_i32_0 = arith.constant 0 : i32
    %c0_i32_1 = arith.constant 0 : i32
    return %c0_i32, %c0_i32_0 : i32, i32
  }
  func.func @transform_2(%arg0: i32) -> (i32, i32) {
    %c0_i32 = arith.constant 0 : i32
    %c0_i32_0 = arith.constant 0 : i32
    %c0_i32_1 = arith.constant 0 : i32
    return %c0_i32, %c0_i32_0 : i32, i32
  }
  func.func @transform_3(%arg0: i32) -> (i32, i32, i32) {
    %c0_i32 = arith.constant 0 : i32
    %c0_i32_0 = arith.constant 0 : i32
    %c0_i32_1 = arith.constant 0 : i32
    %c0_i32_2 = arith.constant 0 : i32
    return %c0_i32, %c0_i32_0, %c0_i32_1 : i32, i32, i32
  }
  func.func @transform_4(%arg0: i32) -> (i32, i32, i32) {
    %c0_i32 = arith.constant 0 : i32
    %c0_i32_0 = arith.constant 0 : i32
    %c0_i32_1 = arith.constant 0 : i32
    %c0_i32_2 = arith.constant 0 : i32
    return %c0_i32, %c0_i32_0, %c0_i32_1 : i32, i32, i32
  }
  func.func @transform_5(%arg0: i32) -> (i32, i32) {
    %c0_i32 = arith.constant 0 : i32
    %c0_i32_0 = arith.constant 0 : i32
    %c0_i32_1 = arith.constant 0 : i32
    return %c0_i32, %c0_i32_0 : i32, i32
  }
  func.func @transform_6(%arg0: i32) -> (i32, i32, i32) {
    %c0_i32 = arith.constant 0 : i32
    %c0_i32_0 = arith.constant 0 : i32
    %c0_i32_1 = arith.constant 0 : i32
    %c0_i32_2 = arith.constant 0 : i32
    return %c0_i32, %c0_i32_0, %c0_i32_1 : i32, i32, i32
  }
  func.func @transform_7(%arg0: i32) -> (i32, i32, i32) {
    %c0_i32 = arith.constant 0 : i32
    %c0_i32_0 = arith.constant 0 : i32
    %c0_i32_1 = arith.constant 0 : i32
    %c0_i32_2 = arith.constant 0 : i32
    return %c0_i32, %c0_i32_0, %c0_i32_1 : i32, i32, i32
  }
  func.func @transform_8(%arg0: i32) -> (i32, i32) {
    %c0_i32 = arith.constant 0 : i32
    %c0_i32_0 = arith.constant 0 : i32
    %c0_i32_1 = arith.constant 0 : i32
    return %c0_i32, %c0_i32_0 : i32, i32
  }
  func.func @transform_9(%arg0: i32) -> (i32, i32, i32) {
    %c0_i32 = arith.constant 0 : i32
    %c0_i32_0 = arith.constant 0 : i32
    %c0_i32_1 = arith.constant 0 : i32
    %c0_i32_2 = arith.constant 0 : i32
    return %c0_i32, %c0_i32_0, %c0_i32_1 : i32, i32, i32
  }
  func.func @transform_10(%arg0: i32) -> (i32, i32) {
    %c0_i32 = arith.constant 0 : i32
    %c0_i32_0 = arith.constant 0 : i32
    %c0_i32_1 = arith.constant 0 : i32
    return %c0_i32, %c0_i32_0 : i32, i32
  }
  func.func @transform_11(%arg0: i32) -> (i32, i32) {
    %c0_i32 = arith.constant 0 : i32
    %c0_i32_0 = arith.constant 0 : i32
    %c0_i32_1 = arith.constant 0 : i32
    return %c0_i32, %c0_i32_0 : i32, i32
  }
  func.func @transform_12(%arg0: i32) -> (i32, i32) {
    %c0_i32 = arith.constant 0 : i32
    %c0_i32_0 = arith.constant 0 : i32
    %c0_i32_1 = arith.constant 0 : i32
    return %c0_i32, %c0_i32_0 : i32, i32
  }
  func.func @transform_13(%arg0: i32) -> (i32, i32) {
    %c0_i32 = arith.constant 0 : i32
    %c0_i32_0 = arith.constant 0 : i32
    %c0_i32_1 = arith.constant 0 : i32
    return %c0_i32, %c0_i32_0 : i32, i32
  }
  func.func @transform_14(%arg0: i32) -> (i32, i32) {
    %c0_i32 = arith.constant 0 : i32
    %c0_i32_0 = arith.constant 0 : i32
    %c0_i32_1 = arith.constant 0 : i32
    return %c0_i32, %c0_i32_0 : i32, i32
  }
  func.func @transform_15(%arg0: i32) -> (i32, i32) {
    %c0_i32 = arith.constant 0 : i32
    %c0_i32_0 = arith.constant 0 : i32
    %c0_i32_1 = arith.constant 0 : i32
    return %c0_i32, %c0_i32_0 : i32, i32
  }
}

</mosaic_0001>

<llo_original>
// kernel: three_by_three_forward.1
$region0: #{three_by_three_forward.1}
  #allocation0 [shape = 'u32[]', space=smem, size = 0x4, offset = 0x4, fixed_abs, tag = 'smem constant byte address 0x4 - core index']
  #allocation1 [shape = 'u32[144,128]{1,0:T(1,128)}', space=vmem, size = 0x12000, scoped, tag = 'internal scratch']
  %s0 = inlined_call_operand.vmem [shape: f32[200,256], index: 0, kind: input, shape index: {}]
  %s1 = inlined_call_operand.vmem [shape: f32[256,32], index: 1, kind: input, shape index: {}]
  %s2 = inlined_call_operand.vmem [shape: f32[1,32], index: 2, kind: input, shape index: {}]
  %s3 = inlined_call_operand.vmem [shape: f32[16,32,200], index: 3, kind: input, shape index: {}]
  %s4 = inlined_call_operand.vmem [shape: f32[16,32,64], index: 4, kind: input, shape index: {}]
  %s5 = inlined_call_operand.vmem [shape: f32[1,64], index: 5, kind: input, shape index: {}]
  %s6 = inlined_call_operand.vmem [shape: f32[9,8,32], index: 6, kind: input, shape index: {}]
  %s7 = inlined_call_operand.vmem [shape: f32[9,64,64], index: 7, kind: input, shape index: {}]
  %s8 = inlined_call_operand.vmem [shape: f32[1,64], index: 8, kind: input, shape index: {}]
  %s9 = inlined_call_operand.vmem [shape: f32[4,64,128], index: 9, kind: input, shape index: {}]
  %s10 = inlined_call_operand.vmem [shape: f32[1,128], index: 10, kind: input, shape index: {}]
  %s11 = inlined_call_operand.vmem [shape: f32[128,64], index: 11, kind: input, shape index: {}]
  %s12 = inlined_call_operand.vmem [shape: f32[1,64], index: 12, kind: input, shape index: {}]
  %s13 = inlined_call_operand.vmem [shape: f32[64,5], index: 13, kind: input, shape index: {}]
  %s14 = inlined_call_operand.vmem [shape: f32[1,5], index: 14, kind: input, shape index: {}]
  %s15 = inlined_call_operand.hbm [shape: f32[2,5], index: 15, kind: output, shape index: {}]
  %s16 = sld [smem:[#allocation0]]
  $region70: #{three_by_three_forward.1} parent=0
    _
  %s18 = ssub.s32 1, %s16
  %s19 = scalar_select 0, %s18, %s16
  $region1: #{three_by_three_forward.1} parent=0
    #allocation2 [shape = 'u8[1024]{0}', space=vmem, size = 0x400, scoped, tag = 'output window, operand 0, single buffered']
    #allocation3 [shape = 's32[1]{0}', space=sflag, size = 0x4, scoped, tag = 'scoped memory for three_by_three_forward.1']
    %20 = vsyncpa [#allocation3], 0
    // Predicated region
    $region2: #{three_by_three_forward.1} parent=1 // pred_check
      _
    $region3: #{three_by_three_forward.1} parent=1 // pred_check_branch
      %22 = sbr.rel (0) target = $region5
    $region4: #{three_by_three_forward.1} parent=1 // pred_region
      _
    $region5: #{three_by_three_forward.1} parent=1 // pred_fallthru
      _
    // Predicated region
    $region6: #{three_by_three_forward.1} parent=1 // pred_check
      _
    $region7: #{three_by_three_forward.1} parent=1 // pred_check_branch
      %24 = sbr.rel (0) target = $region9
    $region8: #{three_by_three_forward.1} parent=1 // pred_region
      _
    $region9: #{three_by_three_forward.1} parent=1 // pred_fallthru
      _
    // Predicated region
    $region10: #{three_by_three_forward.1} parent=1 // pred_check
      _
    $region11: #{three_by_three_forward.1} parent=1 // pred_check_branch
      %26 = sbr.rel (0) target = $region13
    $region12: #{three_by_three_forward.1} parent=1 // pred_region
      _
    $region13: #{three_by_three_forward.1} parent=1 // pred_fallthru
      _
    // Predicated region
    $region14: #{three_by_three_forward.1} parent=1 // pred_check
      _
    $region15: #{three_by_three_forward.1} parent=1 // pred_check_branch
      %28 = sbr.rel (0) target = $region17
    $region16: #{three_by_three_forward.1} parent=1 // pred_region
      _
    $region17: #{three_by_three_forward.1} parent=1 // pred_fallthru
      _
    // Predicated region
    $region18: #{three_by_three_forward.1} parent=1 // pred_check
      _
    $region19: #{three_by_three_forward.1} parent=1 // pred_check_branch
      %30 = sbr.rel (0) target = $region21
    $region20: #{three_by_three_forward.1} parent=1 // pred_region
      _
    $region21: #{three_by_three_forward.1} parent=1 // pred_fallthru
      _
    // Predicated region
    $region22: #{three_by_three_forward.1} parent=1 // pred_check
      _
    $region23: #{three_by_three_forward.1} parent=1 // pred_check_branch
      %32 = sbr.rel (0) target = $region25
    $region24: #{three_by_three_forward.1} parent=1 // pred_region
      _
    $region25: #{three_by_three_forward.1} parent=1 // pred_fallthru
      _
    // Predicated region
    $region26: #{three_by_three_forward.1} parent=1 // pred_check
      _
    $region27: #{three_by_three_forward.1} parent=1 // pred_check_branch
      %34 = sbr.rel (0) target = $region29
    $region28: #{three_by_three_forward.1} parent=1 // pred_region
      _
    $region29: #{three_by_three_forward.1} parent=1 // pred_fallthru
      _
    // Predicated region
    $region30: #{three_by_three_forward.1} parent=1 // pred_check
      _
    $region31: #{three_by_three_forward.1} parent=1 // pred_check_branch
      %36 = sbr.rel (0) target = $region33
    $region32: #{three_by_three_forward.1} parent=1 // pred_region
      _
    $region33: #{three_by_three_forward.1} parent=1 // pred_fallthru
      _
    // Predicated region
    $region34: #{three_by_three_forward.1} parent=1 // pred_check
      _
    $region35: #{three_by_three_forward.1} parent=1 // pred_check_branch
      %38 = sbr.rel (0) target = $region37
    $region36: #{three_by_three_forward.1} parent=1 // pred_region
      _
    $region37: #{three_by_three_forward.1} parent=1 // pred_fallthru
      _
    // Predicated region
    $region38: #{three_by_three_forward.1} parent=1 // pred_check
      _
    $region39: #{three_by_three_forward.1} parent=1 // pred_check_branch
      %40 = sbr.rel (0) target = $region41
    $region40: #{three_by_three_forward.1} parent=1 // pred_region
      _
    $region41: #{three_by_three_forward.1} parent=1 // pred_fallthru
      _
    // Predicated region
    $region42: #{three_by_three_forward.1} parent=1 // pred_check
      _
    $region43: #{three_by_three_forward.1} parent=1 // pred_check_branch
      %42 = sbr.rel (0) target = $region45
    $region44: #{three_by_three_forward.1} parent=1 // pred_region
      _
    $region45: #{three_by_three_forward.1} parent=1 // pred_fallthru
      _
    // Predicated region
    $region46: #{three_by_three_forward.1} parent=1 // pred_check
      _
    $region47: #{three_by_three_forward.1} parent=1 // pred_check_branch
      %44 = sbr.rel (0) target = $region49
    $region48: #{three_by_three_forward.1} parent=1 // pred_region
      _
    $region49: #{three_by_three_forward.1} parent=1 // pred_fallthru
      _
    // Predicated region
    $region50: #{three_by_three_forward.1} parent=1 // pred_check
      _
    $region51: #{three_by_three_forward.1} parent=1 // pred_check_branch
      %46 = sbr.rel (0) target = $region53
    $region52: #{three_by_three_forward.1} parent=1 // pred_region
      _
    $region53: #{three_by_three_forward.1} parent=1 // pred_fallthru
      _
    // Predicated region
    $region54: #{three_by_three_forward.1} parent=1 // pred_check
      _
    $region55: #{three_by_three_forward.1} parent=1 // pred_check_branch
      %48 = sbr.rel (0) target = $region57
    $region56: #{three_by_three_forward.1} parent=1 // pred_region
      _
    $region57: #{three_by_three_forward.1} parent=1 // pred_fallthru
      _
    // Predicated region
    $region58: #{three_by_three_forward.1} parent=1 // pred_check
      _
    $region59: #{three_by_three_forward.1} parent=1 // pred_check_branch
      %50 = sbr.rel (0) target = $region61
    $region60: #{three_by_three_forward.1} parent=1 // pred_region
      _
    $region61: #{three_by_three_forward.1} parent=1 // pred_fallthru
      _
    %v51 = vld [vmem:[%s0] sm:$0xff]
    %v52 = vld [vmem:[%s0 + $0x8] sm:$0xff]
    %v53 = vld [vmem:[%s0 + $0x10] sm:$0xff]
    %v54 = vld [vmem:[%s0 + $0x18] sm:$0xff]
    %v55 = vld [vmem:[%s0 + $0x20] sm:$0xff]
    %v56 = vld [vmem:[%s0 + $0x28] sm:$0xff]
    %v57 = vld [vmem:[%s0 + $0x30] sm:$0xff]
    %v58 = vld [vmem:[%s0 + $0x38] sm:$0xff]
    %v59 = vld [vmem:[%s0 + $0x40] sm:$0xff]
    %v60 = vld [vmem:[%s0 + $0x48] sm:$0xff]
    %v61 = vld [vmem:[%s0 + $0x50] sm:$0xff]
    %v62 = vld [vmem:[%s0 + $0x58] sm:$0xff]
    %v63 = vld [vmem:[%s0 + $0x60] sm:$0xff]
    %v64 = vld [vmem:[%s0 + $0x68] sm:$0xff]
    %v65 = vld [vmem:[%s0 + $0x70] sm:$0xff]
    %v66 = vld [vmem:[%s0 + $0x78] sm:$0xff]
    %v67 = vld [vmem:[%s0 + $0x80] sm:$0xff]
    %v68 = vld [vmem:[%s0 + $0x88] sm:$0xff]
    %v69 = vld [vmem:[%s0 + $0x90] sm:$0xff]
    %v70 = vld [vmem:[%s0 + $0x98] sm:$0xff]
    %v71 = vld [vmem:[%s0 + $0xa0] sm:$0xff]
    %v72 = vld [vmem:[%s0 + $0xa8] sm:$0xff]
    %v73 = vld [vmem:[%s0 + $0xb0] sm:$0xff]
    %v74 = vld [vmem:[%s0 + $0xb8] sm:$0xff]
    %v75 = vld [vmem:[%s0 + $0xc0] sm:$0xff]
    %v76 = vld [vmem:[%s0 + $0xc8] sm:$0xff]
    %v77 = vld [vmem:[%s0 + $0xd0] sm:$0xff]
    %v78 = vld [vmem:[%s0 + $0xd8] sm:$0xff]
    %v79 = vld [vmem:[%s0 + $0xe0] sm:$0xff]
    %v80 = vld [vmem:[%s0 + $0xe8] sm:$0xff]
    %v81 = vld [vmem:[%s0 + $0xf0] sm:$0xff]
    %v82 = vld [vmem:[%s0 + $0xf8] sm:$0xff]
    %v83 = vld [vmem:[%s0 + $0x100] sm:$0xff]
    %v84 = vld [vmem:[%s0 + $0x108] sm:$0xff]
    %v85 = vld [vmem:[%s0 + $0x110] sm:$0xff]
    %v86 = vld [vmem:[%s0 + $0x118] sm:$0xff]
    %v87 = vld [vmem:[%s0 + $0x120] sm:$0xff]
    %v88 = vld [vmem:[%s0 + $0x128] sm:$0xff]
    %v89 = vld [vmem:[%s0 + $0x130] sm:$0xff]
    %v90 = vld [vmem:[%s0 + $0x138] sm:$0xff]
    %v91 = vld [vmem:[%s0 + $0x140] sm:$0xff]
    %v92 = vld [vmem:[%s0 + $0x148] sm:$0xff]
    %v93 = vld [vmem:[%s0 + $0x150] sm:$0xff]
    %v94 = vld [vmem:[%s0 + $0x158] sm:$0xff]
    %v95 = vld [vmem:[%s0 + $0x160] sm:$0xff]
    %v96 = vld [vmem:[%s0 + $0x168] sm:$0xff]
    %v97 = vld [vmem:[%s0 + $0x170] sm:$0xff]
    %v98 = vld [vmem:[%s0 + $0x178] sm:$0xff]
    %v99 = vld [vmem:[%s0 + $0x180] sm:$0xff]
    %v100 = vld [vmem:[%s0 + $0x188] sm:$0xff]
    %v101 = vld [vmem:[%s1] sm:$0xff]
    %v102 = vld [vmem:[%s1 + $0x8] sm:$0xff]
    %v103 = vld [vmem:[%s1 + $0x10] sm:$0xff]
    %v104 = vld [vmem:[%s1 + $0x18] sm:$0xff]
    %v105 = vld [vmem:[%s1 + $0x20] sm:$0xff]
    %v106 = vld [vmem:[%s1 + $0x28] sm:$0xff]
    %v107 = vld [vmem:[%s1 + $0x30] sm:$0xff]
    %v108 = vld [vmem:[%s1 + $0x38] sm:$0xff]
    %v109 = vld [vmem:[%s1 + $0x40] sm:$0xff]
    %v110 = vld [vmem:[%s1 + $0x48] sm:$0xff]
    %v111 = vld [vmem:[%s1 + $0x50] sm:$0xff]
    %v112 = vld [vmem:[%s1 + $0x58] sm:$0xff]
    %v113 = vld [vmem:[%s1 + $0x60] sm:$0xff]
    %v114 = vld [vmem:[%s1 + $0x68] sm:$0xff]
    %v115 = vld [vmem:[%s1 + $0x70] sm:$0xff]
    %v116 = vld [vmem:[%s1 + $0x78] sm:$0xff]
    %v117 = vld [vmem:[%s1 + $0x80] sm:$0xff]
    %v118 = vld [vmem:[%s1 + $0x88] sm:$0xff]
    %v119 = vld [vmem:[%s1 + $0x90] sm:$0xff]
    %v120 = vld [vmem:[%s1 + $0x98] sm:$0xff]
    %v121 = vld [vmem:[%s1 + $0xa0] sm:$0xff]
    %v122 = vld [vmem:[%s1 + $0xa8] sm:$0xff]
    %v123 = vld [vmem:[%s1 + $0xb0] sm:$0xff]
    %v124 = vld [vmem:[%s1 + $0xb8] sm:$0xff]
    %v125 = vld [vmem:[%s1 + $0xc0] sm:$0xff]
    %v126 = vld [vmem:[%s1 + $0xc8] sm:$0xff]
    %v127 = vld [vmem:[%s1 + $0xd0] sm:$0xff]
    %v128 = vld [vmem:[%s1 + $0xd8] sm:$0xff]
    %v129 = vld [vmem:[%s1 + $0xe0] sm:$0xff]
    %v130 = vld [vmem:[%s1 + $0xe8] sm:$0xff]
    %v131 = vld [vmem:[%s1 + $0xf0] sm:$0xff]
    %v132 = vld [vmem:[%s1 + $0xf8] sm:$0xff]
    %v133 = vld [vmem:[%s2] sm:$0x1]
    %v135 = vlaneseq
    %v136 = vshrl.u32 %v135, 7
    %v137 = vsub.s32 0, %v136
    %v138 = vrot.slane %v133, %v137
    %140 = vmatprep.subr.mxu0 0.0
    %141 = vmatpush1.msra.mxu0 %v116
    %142 = vmatprep.subr.mxu0 0.0
    %143 = vmatpush1.msra.mxu0 %v115
    %144 = vmatprep.subr.mxu0 0.0
    %145 = vmatpush1.msra.mxu0 %v114
    %146 = vmatprep.subr.mxu0 0.0
    %147 = vmatpush1.msra.mxu0 %v113
    %148 = vmatprep.subr.mxu0 0.0
    %149 = vmatpush1.msra.mxu0 %v112
    %150 = vmatprep.subr.mxu0 0.0
    %151 = vmatpush1.msra.mxu0 %v111
    %152 = vmatprep.subr.mxu0 0.0
    %153 = vmatpush1.msra.mxu0 %v110
    %154 = vmatprep.subr.mxu0 0.0
    %155 = vmatpush1.msra.mxu0 %v109
    %156 = vmatprep.subr.mxu0 0.0
    %157 = vmatpush1.msra.mxu0 %v108
    %158 = vmatprep.subr.mxu0 0.0
    %159 = vmatpush1.msra.mxu0 %v107
    %160 = vmatprep.subr.mxu0 0.0
    %161 = vmatpush1.msra.mxu0 %v106
    %162 = vmatprep.subr.mxu0 0.0
    %163 = vmatpush1.msra.mxu0 %v105
    %164 = vmatprep.subr.mxu0 0.0
    %165 = vmatpush1.msra.mxu0 %v104
    %166 = vmatprep.subr.mxu0 0.0
    %167 = vmatpush1.msra.mxu0 %v103
    %168 = vmatprep.subr.mxu0 0.0
    %169 = vmatpush1.msra.mxu0 %v102
    %170 = vmatprep.subr.mxu0 0.0
    %171 = vmatpush1.msra.mxu0 %v101
    %172 = vmatprep.subr.mxu0 0.0
    %173 = vmatpush2.msra.mxu0 %v132
    %174 = vmatprep.subr.mxu0 0.0
    %175 = vmatpush2.msra.mxu0 %v131
    %176 = vmatprep.subr.mxu0 0.0
    %177 = vmatpush2.msra.mxu0 %v130
    %178 = vmatprep.subr.mxu0 0.0
    %179 = vmatpush2.msra.mxu0 %v129
    %180 = vmatprep.subr.mxu0 0.0
    %181 = vmatpush2.msra.mxu0 %v128
    %182 = vmatprep.subr.mxu0 0.0
    %183 = vmatpush2.msra.mxu0 %v127
    %184 = vmatprep.subr.mxu0 0.0
    %185 = vmatpush2.msra.mxu0 %v126
    %186 = vmatprep.subr.mxu0 0.0
    %187 = vmatpush2.msra.mxu0 %v125
    %188 = vmatprep.subr.mxu0 0.0
    %189 = vmatpush2.msra.mxu0 %v124
    %190 = vmatprep.subr.mxu0 0.0
    %191 = vmatpush2.msra.mxu0 %v123
    %192 = vmatprep.subr.mxu0 0.0
    %193 = vmatpush2.msra.mxu0 %v122
    %194 = vmatprep.subr.mxu0 0.0
    %195 = vmatpush2.msra.mxu0 %v121
    %196 = vmatprep.subr.mxu0 0.0
    %197 = vmatpush2.msra.mxu0 %v120
    %198 = vmatprep.subr.mxu0 0.0
    %199 = vmatpush2.msra.mxu0 %v119
    %200 = vmatprep.subr.mxu0 0.0
    %201 = vmatpush2.msra.mxu0 %v118
    %202 = vmatprep.subr.mxu0 0.0
    %203 = vmatpush2.msra.mxu0 %v117
    %204 = vmatprep.mubr.f32.mxu0 %v52
    %205 = vmatmul.mubr.f32.gmra.mxu0 %v51
    %v206 = vpop.f32.mrf.mxu0
    %v207 = vadd.f32 %v138, %v206
    %v208 = vpop.f32.mrf.mxu0
    %209 = vmatprep.mubr.f32.mxu0 %v54
    %210 = vmatmul.mubr.f32.gmra.mxu0 %v53
    %v211 = vpop.f32.mrf.mxu0
    %v212 = vadd.f32 %v138, %v211
    %v213 = vpop.f32.mrf.mxu0
    %214 = vmatprep.mubr.f32.mxu0 %v56
    %215 = vmatmul.mubr.f32.gmra.mxu0 %v55
    %v216 = vpop.f32.mrf.mxu0
    %v217 = vadd.f32 %v138, %v216
    %v218 = vpop.f32.mrf.mxu0
    %219 = vmatprep.mubr.f32.mxu0 %v58
    %220 = vmatmul.mubr.f32.gmra.mxu0 %v57
    %v221 = vpop.f32.mrf.mxu0
    %v222 = vadd.f32 %v138, %v221
    %v223 = vpop.f32.mrf.mxu0
    %224 = vmatprep.mubr.f32.mxu0 %v60
    %225 = vmatmul.mubr.f32.gmra.mxu0 %v59
    %v226 = vpop.f32.mrf.mxu0
    %v227 = vadd.f32 %v138, %v226
    %v228 = vpop.f32.mrf.mxu0
    %229 = vmatprep.mubr.f32.mxu0 %v62
    %230 = vmatmul.mubr.f32.gmra.mxu0 %v61
    %v231 = vpop.f32.mrf.mxu0
    %v232 = vadd.f32 %v138, %v231
    %v233 = vpop.f32.mrf.mxu0
    %234 = vmatprep.mubr.f32.mxu0 %v64
    %235 = vmatmul.mubr.f32.gmra.mxu0 %v63
    %v236 = vpop.f32.mrf.mxu0
    %v237 = vadd.f32 %v138, %v236
    %v238 = vpop.f32.mrf.mxu0
    %239 = vmatprep.mubr.f32.mxu0 %v66
    %240 = vmatmul.mubr.f32.gmra.mxu0 %v65
    %v241 = vpop.f32.mrf.mxu0
    %v242 = vadd.f32 %v138, %v241
    %v243 = vpop.f32.mrf.mxu0
    %244 = vmatprep.mubr.f32.mxu0 %v68
    %245 = vmatmul.mubr.f32.gmra.mxu0 %v67
    %v246 = vpop.f32.mrf.mxu0
    %v247 = vadd.f32 %v138, %v246
    %v248 = vpop.f32.mrf.mxu0
    %249 = vmatprep.mubr.f32.mxu0 %v70
    %250 = vmatmul.mubr.f32.gmra.mxu0 %v69
    %v251 = vpop.f32.mrf.mxu0
    %v252 = vadd.f32 %v138, %v251
    %v253 = vpop.f32.mrf.mxu0
    %254 = vmatprep.mubr.f32.mxu0 %v72
    %255 = vmatmul.mubr.f32.gmra.mxu0 %v71
    %v256 = vpop.f32.mrf.mxu0
    %v257 = vadd.f32 %v138, %v256
    %v258 = vpop.f32.mrf.mxu0
    %259 = vmatprep.mubr.f32.mxu0 %v74
    %260 = vmatmul.mubr.f32.gmra.mxu0 %v73
    %v261 = vpop.f32.mrf.mxu0
    %v262 = vadd.f32 %v138, %v261
    %v263 = vpop.f32.mrf.mxu0
    %264 = vmatprep.mubr.f32.mxu0 %v76
    %265 = vmatmul.mubr.f32.gmra.mxu0 %v75
    %v266 = vpop.f32.mrf.mxu0
    %v267 = vadd.f32 %v138, %v266
    %v268 = vpop.f32.mrf.mxu0
    %269 = vmatprep.mubr.f32.mxu0 %v78
    %270 = vmatmul.mubr.f32.gmra.mxu0 %v77
    %v271 = vpop.f32.mrf.mxu0
    %v272 = vadd.f32 %v138, %v271
    %v273 = vpop.f32.mrf.mxu0
    %274 = vmatprep.mubr.f32.mxu0 %v80
    %275 = vmatmul.mubr.f32.gmra.mxu0 %v79
    %v276 = vpop.f32.mrf.mxu0
    %v277 = vadd.f32 %v138, %v276
    %v278 = vpop.f32.mrf.mxu0
    %279 = vmatprep.mubr.f32.mxu0 %v82
    %280 = vmatmul.mubr.f32.gmra.mxu0 %v81
    %v281 = vpop.f32.mrf.mxu0
    %v282 = vadd.f32 %v138, %v281
    %v283 = vpop.f32.mrf.mxu0
    %284 = vmatprep.mubr.f32.mxu0 %v84
    %285 = vmatmul.mubr.f32.gmra.mxu0 %v83
    %v286 = vpop.f32.mrf.mxu0
    %v287 = vadd.f32 %v138, %v286
    %v288 = vpop.f32.mrf.mxu0
    %289 = vmatprep.mubr.f32.mxu0 %v86
    %290 = vmatmul.mubr.f32.gmra.mxu0 %v85
    %v291 = vpop.f32.mrf.mxu0
    %v292 = vadd.f32 %v138, %v291
    %v293 = vpop.f32.mrf.mxu0
    %294 = vmatprep.mubr.f32.mxu0 %v88
    %295 = vmatmul.mubr.f32.gmra.mxu0 %v87
    %v296 = vpop.f32.mrf.mxu0
    %v297 = vadd.f32 %v138, %v296
    %v298 = vpop.f32.mrf.mxu0
    %299 = vmatprep.mubr.f32.mxu0 %v90
    %300 = vmatmul.mubr.f32.gmra.mxu0 %v89
    %v301 = vpop.f32.mrf.mxu0
    %v302 = vadd.f32 %v138, %v301
    %v303 = vpop.f32.mrf.mxu0
    %304 = vmatprep.mubr.f32.mxu0 %v92
    %305 = vmatmul.mubr.f32.gmra.mxu0 %v91
    %v306 = vpop.f32.mrf.mxu0
    %v307 = vadd.f32 %v138, %v306
    %v308 = vpop.f32.mrf.mxu0
    %309 = vmatprep.mubr.f32.mxu0 %v94
    %310 = vmatmul.mubr.f32.gmra.mxu0 %v93
    %v311 = vpop.f32.mrf.mxu0
    %v312 = vadd.f32 %v138, %v311
    %v313 = vpop.f32.mrf.mxu0
    %314 = vmatprep.mubr.f32.mxu0 %v96
    %315 = vmatmul.mubr.f32.gmra.mxu0 %v95
    %v316 = vpop.f32.mrf.mxu0
    %v317 = vadd.f32 %v138, %v316
    %v318 = vpop.f32.mrf.mxu0
    %319 = vmatprep.mubr.f32.mxu0 %v98
    %320 = vmatmul.mubr.f32.gmra.mxu0 %v97
    %v321 = vpop.f32.mrf.mxu0
    %v322 = vadd.f32 %v138, %v321
    %v323 = vpop.f32.mrf.mxu0
    %324 = vmatprep.mubr.f32.mxu0 %v100
    %325 = vmatmul.mubr.f32.gmra.mxu0 %v99
    %v326 = vpop.f32.mrf.mxu0
    %v327 = vadd.f32 %v138, %v326
    %v328 = vpop.f32.mrf.mxu0
    %329 = vdwg.mxu0
    %v330 = vmax.f32 %v207, 0.0
    %v331 = vmax.f32 %v212, 0.0
    %v332 = vmax.f32 %v217, 0.0
    %v333 = vmax.f32 %v222, 0.0
    %v334 = vmax.f32 %v227, 0.0
    %v335 = vmax.f32 %v232, 0.0
    %v336 = vmax.f32 %v237, 0.0
    %v337 = vmax.f32 %v242, 0.0
    %v338 = vmax.f32 %v247, 0.0
    %v339 = vmax.f32 %v252, 0.0
    %v340 = vmax.f32 %v257, 0.0
    %v341 = vmax.f32 %v262, 0.0
    %v342 = vmax.f32 %v267, 0.0
    %v343 = vmax.f32 %v272, 0.0
    %v344 = vmax.f32 %v277, 0.0
    %v345 = vmax.f32 %v282, 0.0
    %v346 = vmax.f32 %v287, 0.0
    %v347 = vmax.f32 %v292, 0.0
    %v348 = vmax.f32 %v297, 0.0
    %v349 = vmax.f32 %v302, 0.0
    %v350 = vmax.f32 %v307, 0.0
    %v351 = vmax.f32 %v312, 0.0
    %v352 = vmax.f32 %v317, 0.0
    %v353 = vmax.f32 %v322, 0.0
    %v354 = vmax.f32 %v327, 0.0
    %v355 = vld [vmem:[%s3] sm:$0xff]
    %v356 = vld [vmem:[%s3 + $0x8] sm:$0xff]
    %v357 = vld [vmem:[%s3 + $0x10] sm:$0xff]
    %v358 = vld [vmem:[%s3 + $0x18] sm:$0xff]
    %v359 = vld [vmem:[%s3 + $0x20] sm:$0xff]
    %v360 = vld [vmem:[%s3 + $0x28] sm:$0xff]
    %v361 = vld [vmem:[%s3 + $0x30] sm:$0xff]
    %v362 = vld [vmem:[%s3 + $0x38] sm:$0xff]
    %vm363 = vcmask 588800
    %v365 = vsel %vm363, %v356, 0
    %v368 = vsel %vm363, %v358, 0
    %v371 = vsel %vm363, %v360, 0
    %v374 = vsel %vm363, %v362, 0
    %376 = vmatprep.subr.mxu0 0.0
    %377 = vmatpush1.msra.mxu0 %v345
    %378 = vmatprep.subr.mxu0 0.0
    %379 = vmatpush1.msra.mxu0 %v344
    %380 = vmatprep.subr.mxu0 0.0
    %381 = vmatpush1.msra.mxu0 %v343
    %382 = vmatprep.subr.mxu0 0.0
    %383 = vmatpush1.msra.mxu0 %v342
    %384 = vmatprep.subr.mxu0 0.0
    %385 = vmatpush1.msra.mxu0 %v341
    %386 = vmatprep.subr.mxu0 0.0
    %387 = vmatpush1.msra.mxu0 %v340
    %388 = vmatprep.subr.mxu0 0.0
    %389 = vmatpush1.msra.mxu0 %v339
    %390 = vmatprep.subr.mxu0 0.0
    %391 = vmatpush1.msra.mxu0 %v338
    %392 = vmatprep.subr.mxu0 0.0
    %393 = vmatpush1.msra.mxu0 %v337
    %394 = vmatprep.subr.mxu0 0.0
    %395 = vmatpush1.msra.mxu0 %v336
    %396 = vmatprep.subr.mxu0 0.0
    %397 = vmatpush1.msra.mxu0 %v335
    %398 = vmatprep.subr.mxu0 0.0
    %399 = vmatpush1.msra.mxu0 %v334
    %400 = vmatprep.subr.mxu0 0.0
    %401 = vmatpush1.msra.mxu0 %v333
    %402 = vmatprep.subr.mxu0 0.0
    %403 = vmatpush1.msra.mxu0 %v332
    %404 = vmatprep.subr.mxu0 0.0
    %405 = vmatpush1.msra.mxu0 %v331
    %406 = vmatprep.subr.mxu0 0.0
    %407 = vmatpush1.msra.mxu0 %v330
    %408 = vmatprep.subr.mxu0 0.0
    %409 = vmatpush2.msra.mxu0 0.0
    %410 = vmatprep.subr.mxu0 0.0
    %411 = vmatpush2.msra.mxu0 0.0
    %412 = vmatprep.subr.mxu0 0.0
    %413 = vmatpush2.msra.mxu0 0.0
    %414 = vmatprep.subr.mxu0 0.0
    %415 = vmatpush2.msra.mxu0 0.0
    %416 = vmatprep.subr.mxu0 0.0
    %417 = vmatpush2.msra.mxu0 0.0
    %418 = vmatprep.subr.mxu0 0.0
    %419 = vmatpush2.msra.mxu0 0.0
    %420 = vmatprep.subr.mxu0 0.0
    %421 = vmatpush2.msra.mxu0 0.0
    %422 = vmatprep.subr.mxu0 0.0
    %423 = vmatpush2.msra.mxu0 %v354
    %424 = vmatprep.subr.mxu0 0.0
    %425 = vmatpush2.msra.mxu0 %v353
    %426 = vmatprep.subr.mxu0 0.0
    %427 = vmatpush2.msra.mxu0 %v352
    %428 = vmatprep.subr.mxu0 0.0
    %429 = vmatpush2.msra.mxu0 %v351
    %430 = vmatprep.subr.mxu0 0.0
    %431 = vmatpush2.msra.mxu0 %v350
    %432 = vmatprep.subr.mxu0 0.0
    %433 = vmatpush2.msra.mxu0 %v349
    %434 = vmatprep.subr.mxu0 0.0
    %435 = vmatpush2.msra.mxu0 %v348
    %436 = vmatprep.subr.mxu0 0.0
    %437 = vmatpush2.msra.mxu0 %v347
    %438 = vmatprep.subr.mxu0 0.0
    %439 = vmatpush2.msra.mxu0 %v346
    %440 = vmatprep.mubr.f32.mxu0 %v365
    %441 = vmatmul.mubr.f32.gmra.mxu0 %v355
    %v442 = vpop.f32.mrf.mxu0
    %v443 = vadd.f32 0.0, %v442
    %v444 = vpop.f32.mrf.mxu0
    %445 = vmatprep.mubr.f32.mxu0 %v368
    %446 = vmatmul.mubr.f32.gmra.mxu0 %v357
    %v447 = vpop.f32.mrf.mxu0
    %v448 = vadd.f32 0.0, %v447
    %v449 = vpop.f32.mrf.mxu0
    %450 = vmatprep.mubr.f32.mxu0 %v371
    %451 = vmatmul.mubr.f32.gmra.mxu0 %v359
    %v452 = vpop.f32.mrf.mxu0
    %v453 = vadd.f32 0.0, %v452
    %v454 = vpop.f32.mrf.mxu0
    %455 = vmatprep.mubr.f32.mxu0 %v374
    %456 = vmatmul.mubr.f32.gmra.mxu0 %v361
    %v457 = vpop.f32.mrf.mxu0
    %v458 = vadd.f32 0.0, %v457
    %v459 = vpop.f32.mrf.mxu0
    %460 = vdwg.mxu0
    %v461 = vld [vmem:[%s4] sm:$0xff]
    %v462 = vld [vmem:[%s4 + $0x8] sm:$0xff]
    %v463 = vld [vmem:[%s4 + $0x10] sm:$0xff]
    %v464 = vld [vmem:[%s4 + $0x18] sm:$0xff]
    %s465 = scalar_lea.vmem %s3, 64
    %v466 = vld [vmem:[%s465] sm:$0xff]
    %v467 = vld [vmem:[%s465 + $0x8] sm:$0xff]
    %v468 = vld [vmem:[%s465 + $0x10] sm:$0xff]
    %v469 = vld [vmem:[%s465 + $0x18] sm:$0xff]
    %v470 = vld [vmem:[%s465 + $0x20] sm:$0xff]
    %v471 = vld [vmem:[%s465 + $0x28] sm:$0xff]
    %v472 = vld [vmem:[%s465 + $0x30] sm:$0xff]
    %v473 = vld [vmem:[%s465 + $0x38] sm:$0xff]
    %v475 = vsel %vm363, %v467, 0
    %v478 = vsel %vm363, %v469, 0
    %v481 = vsel %vm363, %v471, 0
    %v484 = vsel %vm363, %v473, 0
    %486 = vmatprep.subr.mxu0 0.0
    %487 = vmatpush1.msra.mxu0 %v345
    %488 = vmatprep.subr.mxu0 0.0
    %489 = vmatpush1.msra.mxu0 %v344
    %490 = vmatprep.subr.mxu0 0.0
    %491 = vmatpush1.msra.mxu0 %v343
    %492 = vmatprep.subr.mxu0 0.0
    %493 = vmatpush1.msra.mxu0 %v342
    %494 = vmatprep.subr.mxu0 0.0
    %495 = vmatpush1.msra.mxu0 %v341
    %496 = vmatprep.subr.mxu0 0.0
    %497 = vmatpush1.msra.mxu0 %v340
    %498 = vmatprep.subr.mxu0 0.0
    %499 = vmatpush1.msra.mxu0 %v339
    %500 = vmatprep.subr.mxu0 0.0
    %501 = vmatpush1.msra.mxu0 %v338
    %502 = vmatprep.subr.mxu0 0.0
    %503 = vmatpush1.msra.mxu0 %v337
    %504 = vmatprep.subr.mxu0 0.0
    %505 = vmatpush1.msra.mxu0 %v336
    %506 = vmatprep.subr.mxu0 0.0
    %507 = vmatpush1.msra.mxu0 %v335
    %508 = vmatprep.subr.mxu0 0.0
    %509 = vmatpush1.msra.mxu0 %v334
    %510 = vmatprep.subr.mxu0 0.0
    %511 = vmatpush1.msra.mxu0 %v333
    %512 = vmatprep.subr.mxu0 0.0
    %513 = vmatpush1.msra.mxu0 %v332
    %514 = vmatprep.subr.mxu0 0.0
    %515 = vmatpush1.msra.mxu0 %v331
    %516 = vmatprep.subr.mxu0 0.0
    %517 = vmatpush1.msra.mxu0 %v330
    %518 = vmatprep.subr.mxu0 0.0
    %519 = vmatpush2.msra.mxu0 0.0
    %520 = vmatprep.subr.mxu0 0.0
    %521 = vmatpush2.msra.mxu0 0.0
    %522 = vmatprep.subr.mxu0 0.0
    %523 = vmatpush2.msra.mxu0 0.0
    %524 = vmatprep.subr.mxu0 0.0
    %525 = vmatpush2.msra.mxu0 0.0
    %526 = vmatprep.subr.mxu0 0.0
    %527 = vmatpush2.msra.mxu0 0.0
    %528 = vmatprep.subr.mxu0 0.0
    %529 = vmatpush2.msra.mxu0 0.0
    %530 = vmatprep.subr.mxu0 0.0
    %531 = vmatpush2.msra.mxu0 0.0
    %532 = vmatprep.subr.mxu0 0.0
    %533 = vmatpush2.msra.mxu0 %v354
    %534 = vmatprep.subr.mxu0 0.0
    %535 = vmatpush2.msra.mxu0 %v353
    %536 = vmatprep.subr.mxu0 0.0
    %537 = vmatpush2.msra.mxu0 %v352
    %538 = vmatprep.subr.mxu0 0.0
    %539 = vmatpush2.msra.mxu0 %v351
    %540 = vmatprep.subr.mxu0 0.0
    %541 = vmatpush2.msra.mxu0 %v350
    %542 = vmatprep.subr.mxu0 0.0
    %543 = vmatpush2.msra.mxu0 %v349
    %544 = vmatprep.subr.mxu0 0.0
    %545 = vmatpush2.msra.mxu0 %v348
    %546 = vmatprep.subr.mxu0 0.0
    %547 = vmatpush2.msra.mxu0 %v347
    %548 = vmatprep.subr.mxu0 0.0
    %549 = vmatpush2.msra.mxu0 %v346
    %550 = vmatprep.mubr.f32.mxu0 %v475
    %551 = vmatmul.mubr.f32.gmra.mxu0 %v466
    %v552 = vpop.f32.mrf.mxu0
    %v553 = vadd.f32 0.0, %v552
    %v554 = vpop.f32.mrf.mxu0
    %555 = vmatprep.mubr.f32.mxu0 %v478
    %556 = vmatmul.mubr.f32.gmra.mxu0 %v468
    %v557 = vpop.f32.mrf.mxu0
    %v558 = vadd.f32 0.0, %v557
    %v559 = vpop.f32.mrf.mxu0
    %560 = vmatprep.mubr.f32.mxu0 %v481
    %561 = vmatmul.mubr.f32.gmra.mxu0 %v470
    %v562 = vpop.f32.mrf.mxu0
    %v563 = vadd.f32 0.0, %v562
    %v564 = vpop.f32.mrf.mxu0
    %565 = vmatprep.mubr.f32.mxu0 %v484
    %566 = vmatmul.mubr.f32.gmra.mxu0 %v472
    %v567 = vpop.f32.mrf.mxu0
    %v568 = vadd.f32 0.0, %v567
    %v569 = vpop.f32.mrf.mxu0
    %570 = vdwg.mxu0
    %s571 = scalar_lea.vmem %s4, 32
    %v572 = vld [vmem:[%s571] sm:$0xff]
    %v573 = vld [vmem:[%s571 + $0x8] sm:$0xff]
    %v574 = vld [vmem:[%s571 + $0x10] sm:$0xff]
    %v575 = vld [vmem:[%s571 + $0x18] sm:$0xff]
    %vm576 = vcmask 261120
    %v578 = vsel %vm576, %v553, 0
    %v581 = vsel %vm576, %v558, 0
    %v584 = vsel %vm576, %v563, 0
    %v587 = vsel %vm576, %v568, 0
    %589 = vmatprep.subr.mxu0 0.0
    %590 = vmatpush1.msra.mxu0 0.0
    %591 = vmatprep.subr.mxu0 0.0
    %592 = vmatpush1.msra.mxu0 0.0
    %593 = vmatprep.subr.mxu0 0.0
    %594 = vmatpush1.msra.mxu0 0.0
    %595 = vmatprep.subr.mxu0 0.0
    %596 = vmatpush1.msra.mxu0 0.0
    %597 = vmatprep.subr.mxu0 0.0
    %598 = vmatpush1.msra.mxu0 0.0
    %599 = vmatprep.subr.mxu0 0.0
    %600 = vmatpush1.msra.mxu0 0.0
    %601 = vmatprep.subr.mxu0 0.0
    %602 = vmatpush1.msra.mxu0 0.0
    %603 = vmatprep.subr.mxu0 0.0
    %604 = vmatpush1.msra.mxu0 0.0
    %605 = vmatprep.subr.mxu0 0.0
    %606 = vmatpush1.msra.mxu0 0.0
    %607 = vmatprep.subr.mxu0 0.0
    %608 = vmatpush1.msra.mxu0 0.0
    %609 = vmatprep.subr.mxu0 0.0
    %610 = vmatpush1.msra.mxu0 0.0
    %611 = vmatprep.subr.mxu0 0.0
    %612 = vmatpush1.msra.mxu0 0.0
    %613 = vmatprep.subr.mxu0 0.0
    %614 = vmatpush1.msra.mxu0 %v575
    %615 = vmatprep.subr.mxu0 0.0
    %616 = vmatpush1.msra.mxu0 %v574
    %617 = vmatprep.subr.mxu0 0.0
    %618 = vmatpush1.msra.mxu0 %v573
    %619 = vmatprep.subr.mxu0 0.0
    %620 = vmatpush1.msra.mxu0 %v572
    %621 = vmatprep.subr.mxu0 0.0
    %622 = vmatpush2.msra.mxu0 0.0
    %623 = vmatprep.subr.mxu0 0.0
    %624 = vmatpush2.msra.mxu0 0.0
    %625 = vmatprep.subr.mxu0 0.0
    %626 = vmatpush2.msra.mxu0 0.0
    %627 = vmatprep.subr.mxu0 0.0
    %628 = vmatpush2.msra.mxu0 0.0
    %629 = vmatprep.subr.mxu0 0.0
    %630 = vmatpush2.msra.mxu0 0.0
    %631 = vmatprep.subr.mxu0 0.0
    %632 = vmatpush2.msra.mxu0 0.0
    %633 = vmatprep.subr.mxu0 0.0
    %634 = vmatpush2.msra.mxu0 0.0
    %635 = vmatprep.subr.mxu0 0.0
    %636 = vmatpush2.msra.mxu0 0.0
    %637 = vmatprep.subr.mxu0 0.0
    %638 = vmatpush2.msra.mxu0 0.0
    %639 = vmatprep.subr.mxu0 0.0
    %640 = vmatpush2.msra.mxu0 0.0
    %641 = vmatprep.subr.mxu0 0.0
    %642 = vmatpush2.msra.mxu0 0.0
    %643 = vmatprep.subr.mxu0 0.0
    %644 = vmatpush2.msra.mxu0 0.0
    %645 = vmatprep.subr.mxu0 0.0
    %646 = vmatpush2.msra.mxu0 0.0
    %647 = vmatprep.subr.mxu0 0.0
    %648 = vmatpush2.msra.mxu0 0.0
    %649 = vmatprep.subr.mxu0 0.0
    %650 = vmatpush2.msra.mxu0 0.0
    %651 = vmatprep.subr.mxu0 0.0
    %652 = vmatpush2.msra.mxu0 0.0
    %653 = vmatprep.mubr.f32.mxu0 0.0
    %654 = vmatmul.mubr.f32.gmra.mxu0 %v578
    %v655 = vpop.f32.mrf.mxu0
    %v656 = vadd.f32 0.0, %v655
    %v657 = vpop.f32.mrf.mxu0
    %658 = vmatprep.mubr.f32.mxu0 0.0
    %659 = vmatmul.mubr.f32.gmra.mxu0 %v581
    %v660 = vpop.f32.mrf.mxu0
    %v661 = vadd.f32 0.0, %v660
    %v662 = vpop.f32.mrf.mxu0
    %663 = vmatprep.mubr.f32.mxu0 0.0
    %664 = vmatmul.mubr.f32.gmra.mxu0 %v584
    %v665 = vpop.f32.mrf.mxu0
    %v666 = vadd.f32 0.0, %v665
    %v667 = vpop.f32.mrf.mxu0
    %668 = vmatprep.mubr.f32.mxu0 0.0
    %669 = vmatmul.mubr.f32.gmra.mxu0 %v587
    %v670 = vpop.f32.mrf.mxu0
    %v671 = vadd.f32 0.0, %v670
    %v672 = vpop.f32.mrf.mxu0
    %673 = vdwg.mxu0
    %v675 = vsel %vm576, %v443, 0
    %v678 = vsel %vm576, %v448, 0
    %v681 = vsel %vm576, %v453, 0
    %v684 = vsel %vm576, %v458, 0
    %686 = vmatprep.subr.mxu0 0.0
    %687 = vmatpush1.msra.mxu0 0.0
    %688 = vmatprep.subr.mxu0 0.0
    %689 = vmatpush1.msra.mxu0 0.0
    %690 = vmatprep.subr.mxu0 0.0
    %691 = vmatpush1.msra.mxu0 0.0
    %692 = vmatprep.subr.mxu0 0.0
    %693 = vmatpush1.msra.mxu0 0.0
    %694 = vmatprep.subr.mxu0 0.0
    %695 = vmatpush1.msra.mxu0 0.0
    %696 = vmatprep.subr.mxu0 0.0
    %697 = vmatpush1.msra.mxu0 0.0
    %698 = vmatprep.subr.mxu0 0.0
    %699 = vmatpush1.msra.mxu0 0.0
    %700 = vmatprep.subr.mxu0 0.0
    %701 = vmatpush1.msra.mxu0 0.0
    %702 = vmatprep.subr.mxu0 0.0
    %703 = vmatpush1.msra.mxu0 0.0
    %704 = vmatprep.subr.mxu0 0.0
    %705 = vmatpush1.msra.mxu0 0.0
    %706 = vmatprep.subr.mxu0 0.0
    %707 = vmatpush1.msra.mxu0 0.0
    %708 = vmatprep.subr.mxu0 0.0
    %709 = vmatpush1.msra.mxu0 0.0
    %710 = vmatprep.subr.mxu0 0.0
    %711 = vmatpush1.msra.mxu0 %v464
    %712 = vmatprep.subr.mxu0 0.0
    %713 = vmatpush1.msra.mxu0 %v463
    %714 = vmatprep.subr.mxu0 0.0
    %715 = vmatpush1.msra.mxu0 %v462
    %716 = vmatprep.subr.mxu0 0.0
    %717 = vmatpush1.msra.mxu0 %v461
    %718 = vmatprep.subr.mxu0 0.0
    %719 = vmatpush2.msra.mxu0 0.0
    %720 = vmatprep.subr.mxu0 0.0
    %721 = vmatpush2.msra.mxu0 0.0
    %722 = vmatprep.subr.mxu0 0.0
    %723 = vmatpush2.msra.mxu0 0.0
    %724 = vmatprep.subr.mxu0 0.0
    %725 = vmatpush2.msra.mxu0 0.0
    %726 = vmatprep.subr.mxu0 0.0
    %727 = vmatpush2.msra.mxu0 0.0
    %728 = vmatprep.subr.mxu0 0.0
    %729 = vmatpush2.msra.mxu0 0.0
    %730 = vmatprep.subr.mxu0 0.0
    %731 = vmatpush2.msra.mxu0 0.0
    %732 = vmatprep.subr.mxu0 0.0
    %733 = vmatpush2.msra.mxu0 0.0
    %734 = vmatprep.subr.mxu0 0.0
    %735 = vmatpush2.msra.mxu0 0.0
    %736 = vmatprep.subr.mxu0 0.0
    %737 = vmatpush2.msra.mxu0 0.0
    %738 = vmatprep.subr.mxu0 0.0
    %739 = vmatpush2.msra.mxu0 0.0
    %740 = vmatprep.subr.mxu0 0.0
    %741 = vmatpush2.msra.mxu0 0.0
    %742 = vmatprep.subr.mxu0 0.0
    %743 = vmatpush2.msra.mxu0 0.0
    %744 = vmatprep.subr.mxu0 0.0
    %745 = vmatpush2.msra.mxu0 0.0
    %746 = vmatprep.subr.mxu0 0.0
    %747 = vmatpush2.msra.mxu0 0.0
    %748 = vmatprep.subr.mxu0 0.0
    %749 = vmatpush2.msra.mxu0 0.0
    %750 = vmatprep.mubr.f32.mxu0 0.0
    %751 = vmatmul.mubr.f32.gmra.mxu0 %v675
    %v752 = vpop.f32.mrf.mxu0
    %v753 = vadd.f32 %v656, %v752
    %v754 = vpop.f32.mrf.mxu0
    %755 = vmatprep.mubr.f32.mxu0 0.0
    %756 = vmatmul.mubr.f32.gmra.mxu0 %v678
    %v757 = vpop.f32.mrf.mxu0
    %v758 = vadd.f32 %v661, %v757
    %v759 = vpop.f32.mrf.mxu0
    %760 = vmatprep.mubr.f32.mxu0 0.0
    %761 = vmatmul.mubr.f32.gmra.mxu0 %v681
    %v762 = vpop.f32.mrf.mxu0
    %v763 = vadd.f32 %v666, %v762
    %v764 = vpop.f32.mrf.mxu0
    %765 = vmatprep.mubr.f32.mxu0 0.0
    %766 = vmatmul.mubr.f32.gmra.mxu0 %v684
    %v767 = vpop.f32.mrf.mxu0
    %v768 = vadd.f32 %v671, %v767
    %v769 = vpop.f32.mrf.mxu0
    %770 = vdwg.mxu0
    %s771 = scalar_lea.vmem %s3, 128
    %v772 = vld [vmem:[%s771] sm:$0xff]
    %v773 = vld [vmem:[%s771 + $0x8] sm:$0xff]
    %v774 = vld [vmem:[%s771 + $0x10] sm:$0xff]
    %v775 = vld [vmem:[%s771 + $0x18] sm:$0xff]
    %v776 = vld [vmem:[%s771 + $0x20] sm:$0xff]
    %v777 = vld [vmem:[%s771 + $0x28] sm:$0xff]
    %v778 = vld [vmem:[%s771 + $0x30] sm:$0xff]
    %v779 = vld [vmem:[%s771 + $0x38] sm:$0xff]
    %v781 = vsel %vm363, %v773, 0
    %v784 = vsel %vm363, %v775, 0
    %v787 = vsel %vm363, %v777, 0
    %v790 = vsel %vm363, %v779, 0
    %792 = vmatprep.subr.mxu0 0.0
    %793 = vmatpush1.msra.mxu0 %v345
    %794 = vmatprep.subr.mxu0 0.0
    %795 = vmatpush1.msra.mxu0 %v344
    %796 = vmatprep.subr.mxu0 0.0
    %797 = vmatpush1.msra.mxu0 %v343
    %798 = vmatprep.subr.mxu0 0.0
    %799 = vmatpush1.msra.mxu0 %v342
    %800 = vmatprep.subr.mxu0 0.0
    %801 = vmatpush1.msra.mxu0 %v341
    %802 = vmatprep.subr.mxu0 0.0
    %803 = vmatpush1.msra.mxu0 %v340
    %804 = vmatprep.subr.mxu0 0.0
    %805 = vmatpush1.msra.mxu0 %v339
    %806 = vmatprep.subr.mxu0 0.0
    %807 = vmatpush1.msra.mxu0 %v338
    %808 = vmatprep.subr.mxu0 0.0
    %809 = vmatpush1.msra.mxu0 %v337
    %810 = vmatprep.subr.mxu0 0.0
    %811 = vmatpush1.msra.mxu0 %v336
    %812 = vmatprep.subr.mxu0 0.0
    %813 = vmatpush1.msra.mxu0 %v335
    %814 = vmatprep.subr.mxu0 0.0
    %815 = vmatpush1.msra.mxu0 %v334
    %816 = vmatprep.subr.mxu0 0.0
    %817 = vmatpush1.msra.mxu0 %v333
    %818 = vmatprep.subr.mxu0 0.0
    %819 = vmatpush1.msra.mxu0 %v332
    %820 = vmatprep.subr.mxu0 0.0
    %821 = vmatpush1.msra.mxu0 %v331
    %822 = vmatprep.subr.mxu0 0.0
    %823 = vmatpush1.msra.mxu0 %v330
    %824 = vmatprep.subr.mxu0 0.0
    %825 = vmatpush2.msra.mxu0 0.0
    %826 = vmatprep.subr.mxu0 0.0
    %827 = vmatpush2.msra.mxu0 0.0
    %828 = vmatprep.subr.mxu0 0.0
    %829 = vmatpush2.msra.mxu0 0.0
    %830 = vmatprep.subr.mxu0 0.0
    %831 = vmatpush2.msra.mxu0 0.0
    %832 = vmatprep.subr.mxu0 0.0
    %833 = vmatpush2.msra.mxu0 0.0
    %834 = vmatprep.subr.mxu0 0.0
    %835 = vmatpush2.msra.mxu0 0.0
    %836 = vmatprep.subr.mxu0 0.0
    %837 = vmatpush2.msra.mxu0 0.0
    %838 = vmatprep.subr.mxu0 0.0
    %839 = vmatpush2.msra.mxu0 %v354
    %840 = vmatprep.subr.mxu0 0.0
    %841 = vmatpush2.msra.mxu0 %v353
    %842 = vmatprep.subr.mxu0 0.0
    %843 = vmatpush2.msra.mxu0 %v352
    %844 = vmatprep.subr.mxu0 0.0
    %845 = vmatpush2.msra.mxu0 %v351
    %846 = vmatprep.subr.mxu0 0.0
    %847 = vmatpush2.msra.mxu0 %v350
    %848 = vmatprep.subr.mxu0 0.0
    %849 = vmatpush2.msra.mxu0 %v349
    %850 = vmatprep.subr.mxu0 0.0
    %851 = vmatpush2.msra.mxu0 %v348
    %852 = vmatprep.subr.mxu0 0.0
    %853 = vmatpush2.msra.mxu0 %v347
    %854 = vmatprep.subr.mxu0 0.0
    %855 = vmatpush2.msra.mxu0 %v346
    %856 = vmatprep.mubr.f32.mxu0 %v781
    %857 = vmatmul.mubr.f32.gmra.mxu0 %v772
    %v858 = vpop.f32.mrf.mxu0
    %v859 = vadd.f32 0.0, %v858
    %v860 = vpop.f32.mrf.mxu0
    %861 = vmatprep.mubr.f32.mxu0 %v784
    %862 = vmatmul.mubr.f32.gmra.mxu0 %v774
    %v863 = vpop.f32.mrf.mxu0
    %v864 = vadd.f32 0.0, %v863
    %v865 = vpop.f32.mrf.mxu0
    %866 = vmatprep.mubr.f32.mxu0 %v787
    %867 = vmatmul.mubr.f32.gmra.mxu0 %v776
    %v868 = vpop.f32.mrf.mxu0
    %v869 = vadd.f32 0.0, %v868
    %v870 = vpop.f32.mrf.mxu0
    %871 = vmatprep.mubr.f32.mxu0 %v790
    %872 = vmatmul.mubr.f32.gmra.mxu0 %v778
    %v873 = vpop.f32.mrf.mxu0
    %v874 = vadd.f32 0.0, %v873
    %v875 = vpop.f32.mrf.mxu0
    %876 = vdwg.mxu0
    %s877 = scalar_lea.vmem %s4, 64
    %v878 = vld [vmem:[%s877] sm:$0xff]
    %v879 = vld [vmem:[%s877 + $0x8] sm:$0xff]
    %v880 = vld [vmem:[%s877 + $0x10] sm:$0xff]
    %v881 = vld [vmem:[%s877 + $0x18] sm:$0xff]
    %v883 = vsel %vm576, %v859, 0
    %v886 = vsel %vm576, %v864, 0
    %v889 = vsel %vm576, %v869, 0
    %v892 = vsel %vm576, %v874, 0
    %894 = vmatprep.subr.mxu0 0.0
    %895 = vmatpush1.msra.mxu0 0.0
    %896 = vmatprep.subr.mxu0 0.0
    %897 = vmatpush1.msra.mxu0 0.0
    %898 = vmatprep.subr.mxu0 0.0
    %899 = vmatpush1.msra.mxu0 0.0
    %900 = vmatprep.subr.mxu0 0.0
    %901 = vmatpush1.msra.mxu0 0.0
    %902 = vmatprep.subr.mxu0 0.0
    %903 = vmatpush1.msra.mxu0 0.0
    %904 = vmatprep.subr.mxu0 0.0
    %905 = vmatpush1.msra.mxu0 0.0
    %906 = vmatprep.subr.mxu0 0.0
    %907 = vmatpush1.msra.mxu0 0.0
    %908 = vmatprep.subr.mxu0 0.0
    %909 = vmatpush1.msra.mxu0 0.0
    %910 = vmatprep.subr.mxu0 0.0
    %911 = vmatpush1.msra.mxu0 0.0
    %912 = vmatprep.subr.mxu0 0.0
    %913 = vmatpush1.msra.mxu0 0.0
    %914 = vmatprep.subr.mxu0 0.0
    %915 = vmatpush1.msra.mxu0 0.0
    %916 = vmatprep.subr.mxu0 0.0
    %917 = vmatpush1.msra.mxu0 0.0
    %918 = vmatprep.subr.mxu0 0.0
    %919 = vmatpush1.msra.mxu0 %v881
    %920 = vmatprep.subr.mxu0 0.0
    %921 = vmatpush1.msra.mxu0 %v880
    %922 = vmatprep.subr.mxu0 0.0
    %923 = vmatpush1.msra.mxu0 %v879
    %924 = vmatprep.subr.mxu0 0.0
    %925 = vmatpush1.msra.mxu0 %v878
    %926 = vmatprep.subr.mxu0 0.0
    %927 = vmatpush2.msra.mxu0 0.0
    %928 = vmatprep.subr.mxu0 0.0
    %929 = vmatpush2.msra.mxu0 0.0
    %930 = vmatprep.subr.mxu0 0.0
    %931 = vmatpush2.msra.mxu0 0.0
    %932 = vmatprep.subr.mxu0 0.0
    %933 = vmatpush2.msra.mxu0 0.0
    %934 = vmatprep.subr.mxu0 0.0
    %935 = vmatpush2.msra.mxu0 0.0
    %936 = vmatprep.subr.mxu0 0.0
    %937 = vmatpush2.msra.mxu0 0.0
    %938 = vmatprep.subr.mxu0 0.0
    %939 = vmatpush2.msra.mxu0 0.0
    %940 = vmatprep.subr.mxu0 0.0
    %941 = vmatpush2.msra.mxu0 0.0
    %942 = vmatprep.subr.mxu0 0.0
    %943 = vmatpush2.msra.mxu0 0.0
    %944 = vmatprep.subr.mxu0 0.0
    %945 = vmatpush2.msra.mxu0 0.0
    %946 = vmatprep.subr.mxu0 0.0
    %947 = vmatpush2.msra.mxu0 0.0
    %948 = vmatprep.subr.mxu0 0.0
    %949 = vmatpush2.msra.mxu0 0.0
    %950 = vmatprep.subr.mxu0 0.0
    %951 = vmatpush2.msra.mxu0 0.0
    %952 = vmatprep.subr.mxu0 0.0
    %953 = vmatpush2.msra.mxu0 0.0
    %954 = vmatprep.subr.mxu0 0.0
    %955 = vmatpush2.msra.mxu0 0.0
    %956 = vmatprep.subr.mxu0 0.0
    %957 = vmatpush2.msra.mxu0 0.0
    %958 = vmatprep.mubr.f32.mxu0 0.0
    %959 = vmatmul.mubr.f32.gmra.mxu0 %v883
    %v960 = vpop.f32.mrf.mxu0
    %v961 = vadd.f32 0.0, %v960
    %v962 = vpop.f32.mrf.mxu0
    %963 = vmatprep.mubr.f32.mxu0 0.0
    %964 = vmatmul.mubr.f32.gmra.mxu0 %v886
    %v965 = vpop.f32.mrf.mxu0
    %v966 = vadd.f32 0.0, %v965
    %v967 = vpop.f32.mrf.mxu0
    %968 = vmatprep.mubr.f32.mxu0 0.0
    %969 = vmatmul.mubr.f32.gmra.mxu0 %v889
    %v970 = vpop.f32.mrf.mxu0
    %v971 = vadd.f32 0.0, %v970
    %v972 = vpop.f32.mrf.mxu0
    %973 = vmatprep.mubr.f32.mxu0 0.0
    %974 = vmatmul.mubr.f32.gmra.mxu0 %v892
    %v975 = vpop.f32.mrf.mxu0
    %v976 = vadd.f32 0.0, %v975
    %v977 = vpop.f32.mrf.mxu0
    %978 = vdwg.mxu0
    %v979 = vadd.f32 %v753, %v961
    %v980 = vadd.f32 %v758, %v966
    %v981 = vadd.f32 %v763, %v971
    %v982 = vadd.f32 %v768, %v976
    %s983 = scalar_lea.vmem %s3, 192
    %v984 = vld [vmem:[%s983] sm:$0xff]
    %v985 = vld [vmem:[%s983 + $0x8] sm:$0xff]
    %v986 = vld [vmem:[%s983 + $0x10] sm:$0xff]
    %v987 = vld [vmem:[%s983 + $0x18] sm:$0xff]
    %v988 = vld [vmem:[%s983 + $0x20] sm:$0xff]
    %v989 = vld [vmem:[%s983 + $0x28] sm:$0xff]
    %v990 = vld [vmem:[%s983 + $0x30] sm:$0xff]
    %v991 = vld [vmem:[%s983 + $0x38] sm:$0xff]
    %v993 = vsel %vm363, %v985, 0
    %v996 = vsel %vm363, %v987, 0
    %v999 = vsel %vm363, %v989, 0
    %v1002 = vsel %vm363, %v991, 0
    %1004 = vmatprep.subr.mxu0 0.0
    %1005 = vmatpush1.msra.mxu0 %v345
    %1006 = vmatprep.subr.mxu0 0.0
    %1007 = vmatpush1.msra.mxu0 %v344
    %1008 = vmatprep.subr.mxu0 0.0
    %1009 = vmatpush1.msra.mxu0 %v343
    %1010 = vmatprep.subr.mxu0 0.0
    %1011 = vmatpush1.msra.mxu0 %v342
    %1012 = vmatprep.subr.mxu0 0.0
    %1013 = vmatpush1.msra.mxu0 %v341
    %1014 = vmatprep.subr.mxu0 0.0
    %1015 = vmatpush1.msra.mxu0 %v340
    %1016 = vmatprep.subr.mxu0 0.0
    %1017 = vmatpush1.msra.mxu0 %v339
    %1018 = vmatprep.subr.mxu0 0.0
    %1019 = vmatpush1.msra.mxu0 %v338
    %1020 = vmatprep.subr.mxu0 0.0
    %1021 = vmatpush1.msra.mxu0 %v337
    %1022 = vmatprep.subr.mxu0 0.0
    %1023 = vmatpush1.msra.mxu0 %v336
    %1024 = vmatprep.subr.mxu0 0.0
    %1025 = vmatpush1.msra.mxu0 %v335
    %1026 = vmatprep.subr.mxu0 0.0
    %1027 = vmatpush1.msra.mxu0 %v334
    %1028 = vmatprep.subr.mxu0 0.0
    %1029 = vmatpush1.msra.mxu0 %v333
    %1030 = vmatprep.subr.mxu0 0.0
    %1031 = vmatpush1.msra.mxu0 %v332
    %1032 = vmatprep.subr.mxu0 0.0
    %1033 = vmatpush1.msra.mxu0 %v331
    %1034 = vmatprep.subr.mxu0 0.0
    %1035 = vmatpush1.msra.mxu0 %v330
    %1036 = vmatprep.subr.mxu0 0.0
    %1037 = vmatpush2.msra.mxu0 0.0
    %1038 = vmatprep.subr.mxu0 0.0
    %1039 = vmatpush2.msra.mxu0 0.0
    %1040 = vmatprep.subr.mxu0 0.0
    %1041 = vmatpush2.msra.mxu0 0.0
    %1042 = vmatprep.subr.mxu0 0.0
    %1043 = vmatpush2.msra.mxu0 0.0
    %1044 = vmatprep.subr.mxu0 0.0
    %1045 = vmatpush2.msra.mxu0 0.0
    %1046 = vmatprep.subr.mxu0 0.0
    %1047 = vmatpush2.msra.mxu0 0.0
    %1048 = vmatprep.subr.mxu0 0.0
    %1049 = vmatpush2.msra.mxu0 0.0
    %1050 = vmatprep.subr.mxu0 0.0
    %1051 = vmatpush2.msra.mxu0 %v354
    %1052 = vmatprep.subr.mxu0 0.0
    %1053 = vmatpush2.msra.mxu0 %v353
    %1054 = vmatprep.subr.mxu0 0.0
    %1055 = vmatpush2.msra.mxu0 %v352
    %1056 = vmatprep.subr.mxu0 0.0
    %1057 = vmatpush2.msra.mxu0 %v351
    %1058 = vmatprep.subr.mxu0 0.0
    %1059 = vmatpush2.msra.mxu0 %v350
    %1060 = vmatprep.subr.mxu0 0.0
    %1061 = vmatpush2.msra.mxu0 %v349
    %1062 = vmatprep.subr.mxu0 0.0
    %1063 = vmatpush2.msra.mxu0 %v348
    %1064 = vmatprep.subr.mxu0 0.0
    %1065 = vmatpush2.msra.mxu0 %v347
    %1066 = vmatprep.subr.mxu0 0.0
    %1067 = vmatpush2.msra.mxu0 %v346
    %1068 = vmatprep.mubr.f32.mxu0 %v993
    %1069 = vmatmul.mubr.f32.gmra.mxu0 %v984
    %v1070 = vpop.f32.mrf.mxu0
    %v1071 = vadd.f32 0.0, %v1070
    %v1072 = vpop.f32.mrf.mxu0
    %1073 = vmatprep.mubr.f32.mxu0 %v996
    %1074 = vmatmul.mubr.f32.gmra.mxu0 %v986
    %v1075 = vpop.f32.mrf.mxu0
    %v1076 = vadd.f32 0.0, %v1075
    %v1077 = vpop.f32.mrf.mxu0
    %1078 = vmatprep.mubr.f32.mxu0 %v999
    %1079 = vmatmul.mubr.f32.gmra.mxu0 %v988
    %v1080 = vpop.f32.mrf.mxu0
    %v1081 = vadd.f32 0.0, %v1080
    %v1082 = vpop.f32.mrf.mxu0
    %1083 = vmatprep.mubr.f32.mxu0 %v1002
    %1084 = vmatmul.mubr.f32.gmra.mxu0 %v990
    %v1085 = vpop.f32.mrf.mxu0
    %v1086 = vadd.f32 0.0, %v1085
    %v1087 = vpop.f32.mrf.mxu0
    %1088 = vdwg.mxu0
    %s1089 = scalar_lea.vmem %s4, 96
    %v1090 = vld [vmem:[%s1089] sm:$0xff]
    %v1091 = vld [vmem:[%s1089 + $0x8] sm:$0xff]
    %v1092 = vld [vmem:[%s1089 + $0x10] sm:$0xff]
    %v1093 = vld [vmem:[%s1089 + $0x18] sm:$0xff]
    %v1095 = vsel %vm576, %v1071, 0
    %v1098 = vsel %vm576, %v1076, 0
    %v1101 = vsel %vm576, %v1081, 0
    %v1104 = vsel %vm576, %v1086, 0
    %1106 = vmatprep.subr.mxu0 0.0
    %1107 = vmatpush1.msra.mxu0 0.0
    %1108 = vmatprep.subr.mxu0 0.0
    %1109 = vmatpush1.msra.mxu0 0.0
    %1110 = vmatprep.subr.mxu0 0.0
    %1111 = vmatpush1.msra.mxu0 0.0
    %1112 = vmatprep.subr.mxu0 0.0
    %1113 = vmatpush1.msra.mxu0 0.0
    %1114 = vmatprep.subr.mxu0 0.0
    %1115 = vmatpush1.msra.mxu0 0.0
    %1116 = vmatprep.subr.mxu0 0.0
    %1117 = vmatpush1.msra.mxu0 0.0
    %1118 = vmatprep.subr.mxu0 0.0
    %1119 = vmatpush1.msra.mxu0 0.0
    %1120 = vmatprep.subr.mxu0 0.0
    %1121 = vmatpush1.msra.mxu0 0.0
    %1122 = vmatprep.subr.mxu0 0.0
    %1123 = vmatpush1.msra.mxu0 0.0
    %1124 = vmatprep.subr.mxu0 0.0
    %1125 = vmatpush1.msra.mxu0 0.0
    %1126 = vmatprep.subr.mxu0 0.0
    %1127 = vmatpush1.msra.mxu0 0.0
    %1128 = vmatprep.subr.mxu0 0.0
    %1129 = vmatpush1.msra.mxu0 0.0
    %1130 = vmatprep.subr.mxu0 0.0
    %1131 = vmatpush1.msra.mxu0 %v1093
    %1132 = vmatprep.subr.mxu0 0.0
    %1133 = vmatpush1.msra.mxu0 %v1092
    %1134 = vmatprep.subr.mxu0 0.0
    %1135 = vmatpush1.msra.mxu0 %v1091
    %1136 = vmatprep.subr.mxu0 0.0
    %1137 = vmatpush1.msra.mxu0 %v1090
    %1138 = vmatprep.subr.mxu0 0.0
    %1139 = vmatpush2.msra.mxu0 0.0
    %1140 = vmatprep.subr.mxu0 0.0
    %1141 = vmatpush2.msra.mxu0 0.0
    %1142 = vmatprep.subr.mxu0 0.0
    %1143 = vmatpush2.msra.mxu0 0.0
    %1144 = vmatprep.subr.mxu0 0.0
    %1145 = vmatpush2.msra.mxu0 0.0
    %1146 = vmatprep.subr.mxu0 0.0
    %1147 = vmatpush2.msra.mxu0 0.0
    %1148 = vmatprep.subr.mxu0 0.0
    %1149 = vmatpush2.msra.mxu0 0.0
    %1150 = vmatprep.subr.mxu0 0.0
    %1151 = vmatpush2.msra.mxu0 0.0
    %1152 = vmatprep.subr.mxu0 0.0
    %1153 = vmatpush2.msra.mxu0 0.0
    %1154 = vmatprep.subr.mxu0 0.0
    %1155 = vmatpush2.msra.mxu0 0.0
    %1156 = vmatprep.subr.mxu0 0.0
    %1157 = vmatpush2.msra.mxu0 0.0
    %1158 = vmatprep.subr.mxu0 0.0
    %1159 = vmatpush2.msra.mxu0 0.0
    %1160 = vmatprep.subr.mxu0 0.0
    %1161 = vmatpush2.msra.mxu0 0.0
    %1162 = vmatprep.subr.mxu0 0.0
    %1163 = vmatpush2.msra.mxu0 0.0
    %1164 = vmatprep.subr.mxu0 0.0
    %1165 = vmatpush2.msra.mxu0 0.0
    %1166 = vmatprep.subr.mxu0 0.0
    %1167 = vmatpush2.msra.mxu0 0.0
    %1168 = vmatprep.subr.mxu0 0.0
    %1169 = vmatpush2.msra.mxu0 0.0
    %1170 = vmatprep.mubr.f32.mxu0 0.0
    %1171 = vmatmul.mubr.f32.gmra.mxu0 %v1095
    %v1172 = vpop.f32.mrf.mxu0
    %v1173 = vadd.f32 0.0, %v1172
    %v1174 = vpop.f32.mrf.mxu0
    %1175 = vmatprep.mubr.f32.mxu0 0.0
    %1176 = vmatmul.mubr.f32.gmra.mxu0 %v1098
    %v1177 = vpop.f32.mrf.mxu0
    %v1178 = vadd.f32 0.0, %v1177
    %v1179 = vpop.f32.mrf.mxu0
    %1180 = vmatprep.mubr.f32.mxu0 0.0
    %1181 = vmatmul.mubr.f32.gmra.mxu0 %v1101
    %v1182 = vpop.f32.mrf.mxu0
    %v1183 = vadd.f32 0.0, %v1182
    %v1184 = vpop.f32.mrf.mxu0
    %1185 = vmatprep.mubr.f32.mxu0 0.0
    %1186 = vmatmul.mubr.f32.gmra.mxu0 %v1104
    %v1187 = vpop.f32.mrf.mxu0
    %v1188 = vadd.f32 0.0, %v1187
    %v1189 = vpop.f32.mrf.mxu0
    %1190 = vdwg.mxu0
    %v1191 = vadd.f32 %v979, %v1173
    %v1192 = vadd.f32 %v980, %v1178
    %v1193 = vadd.f32 %v981, %v1183
    %v1194 = vadd.f32 %v982, %v1188
    %s1195 = scalar_lea.vmem %s3, 256
    %v1196 = vld [vmem:[%s1195] sm:$0xff]
    %v1197 = vld [vmem:[%s1195 + $0x8] sm:$0xff]
    %v1198 = vld [vmem:[%s1195 + $0x10] sm:$0xff]
    %v1199 = vld [vmem:[%s1195 + $0x18] sm:$0xff]
    %v1200 = vld [vmem:[%s1195 + $0x20] sm:$0xff]
    %v1201 = vld [vmem:[%s1195 + $0x28] sm:$0xff]
    %v1202 = vld [vmem:[%s1195 + $0x30] sm:$0xff]
    %v1203 = vld [vmem:[%s1195 + $0x38] sm:$0xff]
    %v1205 = vsel %vm363, %v1197, 0
    %v1208 = vsel %vm363, %v1199, 0
    %v1211 = vsel %vm363, %v1201, 0
    %v1214 = vsel %vm363, %v1203, 0
    %1216 = vmatprep.subr.mxu0 0.0
    %1217 = vmatpush1.msra.mxu0 %v345
    %1218 = vmatprep.subr.mxu0 0.0
    %1219 = vmatpush1.msra.mxu0 %v344
    %1220 = vmatprep.subr.mxu0 0.0
    %1221 = vmatpush1.msra.mxu0 %v343
    %1222 = vmatprep.subr.mxu0 0.0
    %1223 = vmatpush1.msra.mxu0 %v342
    %1224 = vmatprep.subr.mxu0 0.0
    %1225 = vmatpush1.msra.mxu0 %v341
    %1226 = vmatprep.subr.mxu0 0.0
    %1227 = vmatpush1.msra.mxu0 %v340
    %1228 = vmatprep.subr.mxu0 0.0
    %1229 = vmatpush1.msra.mxu0 %v339
    %1230 = vmatprep.subr.mxu0 0.0
    %1231 = vmatpush1.msra.mxu0 %v338
    %1232 = vmatprep.subr.mxu0 0.0
    %1233 = vmatpush1.msra.mxu0 %v337
    %1234 = vmatprep.subr.mxu0 0.0
    %1235 = vmatpush1.msra.mxu0 %v336
    %1236 = vmatprep.subr.mxu0 0.0
    %1237 = vmatpush1.msra.mxu0 %v335
    %1238 = vmatprep.subr.mxu0 0.0
    %1239 = vmatpush1.msra.mxu0 %v334
    %1240 = vmatprep.subr.mxu0 0.0
    %1241 = vmatpush1.msra.mxu0 %v333
    %1242 = vmatprep.subr.mxu0 0.0
    %1243 = vmatpush1.msra.mxu0 %v332
    %1244 = vmatprep.subr.mxu0 0.0
    %1245 = vmatpush1.msra.mxu0 %v331
    %1246 = vmatprep.subr.mxu0 0.0
    %1247 = vmatpush1.msra.mxu0 %v330
    %1248 = vmatprep.subr.mxu0 0.0
    %1249 = vmatpush2.msra.mxu0 0.0
    %1250 = vmatprep.subr.mxu0 0.0
    %1251 = vmatpush2.msra.mxu0 0.0
    %1252 = vmatprep.subr.mxu0 0.0
    %1253 = vmatpush2.msra.mxu0 0.0
    %1254 = vmatprep.subr.mxu0 0.0
    %1255 = vmatpush2.msra.mxu0 0.0
    %1256 = vmatprep.subr.mxu0 0.0
    %1257 = vmatpush2.msra.mxu0 0.0
    %1258 = vmatprep.subr.mxu0 0.0
    %1259 = vmatpush2.msra.mxu0 0.0
    %1260 = vmatprep.subr.mxu0 0.0
    %1261 = vmatpush2.msra.mxu0 0.0
    %1262 = vmatprep.subr.mxu0 0.0
    %1263 = vmatpush2.msra.mxu0 %v354
    %1264 = vmatprep.subr.mxu0 0.0
    %1265 = vmatpush2.msra.mxu0 %v353
    %1266 = vmatprep.subr.mxu0 0.0
    %1267 = vmatpush2.msra.mxu0 %v352
    %1268 = vmatprep.subr.mxu0 0.0
    %1269 = vmatpush2.msra.mxu0 %v351
    %1270 = vmatprep.subr.mxu0 0.0
    %1271 = vmatpush2.msra.mxu0 %v350
    %1272 = vmatprep.subr.mxu0 0.0
    %1273 = vmatpush2.msra.mxu0 %v349
    %1274 = vmatprep.subr.mxu0 0.0
    %1275 = vmatpush2.msra.mxu0 %v348
    %1276 = vmatprep.subr.mxu0 0.0
    %1277 = vmatpush2.msra.mxu0 %v347
    %1278 = vmatprep.subr.mxu0 0.0
    %1279 = vmatpush2.msra.mxu0 %v346
    %1280 = vmatprep.mubr.f32.mxu0 %v1205
    %1281 = vmatmul.mubr.f32.gmra.mxu0 %v1196
    %v1282 = vpop.f32.mrf.mxu0
    %v1283 = vadd.f32 0.0, %v1282
    %v1284 = vpop.f32.mrf.mxu0
    %1285 = vmatprep.mubr.f32.mxu0 %v1208
    %1286 = vmatmul.mubr.f32.gmra.mxu0 %v1198
    %v1287 = vpop.f32.mrf.mxu0
    %v1288 = vadd.f32 0.0, %v1287
    %v1289 = vpop.f32.mrf.mxu0
    %1290 = vmatprep.mubr.f32.mxu0 %v1211
    %1291 = vmatmul.mubr.f32.gmra.mxu0 %v1200
    %v1292 = vpop.f32.mrf.mxu0
    %v1293 = vadd.f32 0.0, %v1292
    %v1294 = vpop.f32.mrf.mxu0
    %1295 = vmatprep.mubr.f32.mxu0 %v1214
    %1296 = vmatmul.mubr.f32.gmra.mxu0 %v1202
    %v1297 = vpop.f32.mrf.mxu0
    %v1298 = vadd.f32 0.0, %v1297
    %v1299 = vpop.f32.mrf.mxu0
    %1300 = vdwg.mxu0
    %s1301 = scalar_lea.vmem %s4, 128
    %v1302 = vld [vmem:[%s1301] sm:$0xff]
    %v1303 = vld [vmem:[%s1301 + $0x8] sm:$0xff]
    %v1304 = vld [vmem:[%s1301 + $0x10] sm:$0xff]
    %v1305 = vld [vmem:[%s1301 + $0x18] sm:$0xff]
    %v1307 = vsel %vm576, %v1283, 0
    %v1310 = vsel %vm576, %v1288, 0
    %v1313 = vsel %vm576, %v1293, 0
    %v1316 = vsel %vm576, %v1298, 0
    %1318 = vmatprep.subr.mxu0 0.0
    %1319 = vmatpush1.msra.mxu0 0.0
    %1320 = vmatprep.subr.mxu0 0.0
    %1321 = vmatpush1.msra.mxu0 0.0
    %1322 = vmatprep.subr.mxu0 0.0
    %1323 = vmatpush1.msra.mxu0 0.0
    %1324 = vmatprep.subr.mxu0 0.0
    %1325 = vmatpush1.msra.mxu0 0.0
    %1326 = vmatprep.subr.mxu0 0.0
    %1327 = vmatpush1.msra.mxu0 0.0
    %1328 = vmatprep.subr.mxu0 0.0
    %1329 = vmatpush1.msra.mxu0 0.0
    %1330 = vmatprep.subr.mxu0 0.0
    %1331 = vmatpush1.msra.mxu0 0.0
    %1332 = vmatprep.subr.mxu0 0.0
    %1333 = vmatpush1.msra.mxu0 0.0
    %1334 = vmatprep.subr.mxu0 0.0
    %1335 = vmatpush1.msra.mxu0 0.0
    %1336 = vmatprep.subr.mxu0 0.0
    %1337 = vmatpush1.msra.mxu0 0.0
    %1338 = vmatprep.subr.mxu0 0.0
    %1339 = vmatpush1.msra.mxu0 0.0
    %1340 = vmatprep.subr.mxu0 0.0
    %1341 = vmatpush1.msra.mxu0 0.0
    %1342 = vmatprep.subr.mxu0 0.0
    %1343 = vmatpush1.msra.mxu0 %v1305
    %1344 = vmatprep.subr.mxu0 0.0
    %1345 = vmatpush1.msra.mxu0 %v1304
    %1346 = vmatprep.subr.mxu0 0.0
    %1347 = vmatpush1.msra.mxu0 %v1303
    %1348 = vmatprep.subr.mxu0 0.0
    %1349 = vmatpush1.msra.mxu0 %v1302
    %1350 = vmatprep.subr.mxu0 0.0
    %1351 = vmatpush2.msra.mxu0 0.0
    %1352 = vmatprep.subr.mxu0 0.0
    %1353 = vmatpush2.msra.mxu0 0.0
    %1354 = vmatprep.subr.mxu0 0.0
    %1355 = vmatpush2.msra.mxu0 0.0
    %1356 = vmatprep.subr.mxu0 0.0
    %1357 = vmatpush2.msra.mxu0 0.0
    %1358 = vmatprep.subr.mxu0 0.0
    %1359 = vmatpush2.msra.mxu0 0.0
    %1360 = vmatprep.subr.mxu0 0.0
    %1361 = vmatpush2.msra.mxu0 0.0
    %1362 = vmatprep.subr.mxu0 0.0
    %1363 = vmatpush2.msra.mxu0 0.0
    %1364 = vmatprep.subr.mxu0 0.0
    %1365 = vmatpush2.msra.mxu0 0.0
    %1366 = vmatprep.subr.mxu0 0.0
    %1367 = vmatpush2.msra.mxu0 0.0
    %1368 = vmatprep.subr.mxu0 0.0
    %1369 = vmatpush2.msra.mxu0 0.0
    %1370 = vmatprep.subr.mxu0 0.0
    %1371 = vmatpush2.msra.mxu0 0.0
    %1372 = vmatprep.subr.mxu0 0.0
    %1373 = vmatpush2.msra.mxu0 0.0
    %1374 = vmatprep.subr.mxu0 0.0
    %1375 = vmatpush2.msra.mxu0 0.0
    %1376 = vmatprep.subr.mxu0 0.0
    %1377 = vmatpush2.msra.mxu0 0.0
    %1378 = vmatprep.subr.mxu0 0.0
    %1379 = vmatpush2.msra.mxu0 0.0
    %1380 = vmatprep.subr.mxu0 0.0
    %1381 = vmatpush2.msra.mxu0 0.0
    %1382 = vmatprep.mubr.f32.mxu0 0.0
    %1383 = vmatmul.mubr.f32.gmra.mxu0 %v1307
    %v1384 = vpop.f32.mrf.mxu0
    %v1385 = vadd.f32 0.0, %v1384
    %v1386 = vpop.f32.mrf.mxu0
    %1387 = vmatprep.mubr.f32.mxu0 0.0
    %1388 = vmatmul.mubr.f32.gmra.mxu0 %v1310
    %v1389 = vpop.f32.mrf.mxu0
    %v1390 = vadd.f32 0.0, %v1389
    %v1391 = vpop.f32.mrf.mxu0
    %1392 = vmatprep.mubr.f32.mxu0 0.0
    %1393 = vmatmul.mubr.f32.gmra.mxu0 %v1313
    %v1394 = vpop.f32.mrf.mxu0
    %v1395 = vadd.f32 0.0, %v1394
    %v1396 = vpop.f32.mrf.mxu0
    %1397 = vmatprep.mubr.f32.mxu0 0.0
    %1398 = vmatmul.mubr.f32.gmra.mxu0 %v1316
    %v1399 = vpop.f32.mrf.mxu0
    %v1400 = vadd.f32 0.0, %v1399
    %v1401 = vpop.f32.mrf.mxu0
    %1402 = vdwg.mxu0
    %v1403 = vadd.f32 %v1191, %v1385
    %v1404 = vadd.f32 %v1192, %v1390
    %v1405 = vadd.f32 %v1193, %v1395
    %v1406 = vadd.f32 %v1194, %v1400
    %s1407 = scalar_lea.vmem %s3, 320
    %v1408 = vld [vmem:[%s1407] sm:$0xff]
    %v1409 = vld [vmem:[%s1407 + $0x8] sm:$0xff]
    %v1410 = vld [vmem:[%s1407 + $0x10] sm:$0xff]
    %v1411 = vld [vmem:[%s1407 + $0x18] sm:$0xff]
    %v1412 = vld [vmem:[%s1407 + $0x20] sm:$0xff]
    %v1413 = vld [vmem:[%s1407 + $0x28] sm:$0xff]
    %v1414 = vld [vmem:[%s1407 + $0x30] sm:$0xff]
    %v1415 = vld [vmem:[%s1407 + $0x38] sm:$0xff]
    %v1417 = vsel %vm363, %v1409, 0
    %v1420 = vsel %vm363, %v1411, 0
    %v1423 = vsel %vm363, %v1413, 0
    %v1426 = vsel %vm363, %v1415, 0
    %1428 = vmatprep.subr.mxu0 0.0
    %1429 = vmatpush1.msra.mxu0 %v345
    %1430 = vmatprep.subr.mxu0 0.0
    %1431 = vmatpush1.msra.mxu0 %v344
    %1432 = vmatprep.subr.mxu0 0.0
    %1433 = vmatpush1.msra.mxu0 %v343
    %1434 = vmatprep.subr.mxu0 0.0
    %1435 = vmatpush1.msra.mxu0 %v342
    %1436 = vmatprep.subr.mxu0 0.0
    %1437 = vmatpush1.msra.mxu0 %v341
    %1438 = vmatprep.subr.mxu0 0.0
    %1439 = vmatpush1.msra.mxu0 %v340
    %1440 = vmatprep.subr.mxu0 0.0
    %1441 = vmatpush1.msra.mxu0 %v339
    %1442 = vmatprep.subr.mxu0 0.0
    %1443 = vmatpush1.msra.mxu0 %v338
    %1444 = vmatprep.subr.mxu0 0.0
    %1445 = vmatpush1.msra.mxu0 %v337
    %1446 = vmatprep.subr.mxu0 0.0
    %1447 = vmatpush1.msra.mxu0 %v336
    %1448 = vmatprep.subr.mxu0 0.0
    %1449 = vmatpush1.msra.mxu0 %v335
    %1450 = vmatprep.subr.mxu0 0.0
    %1451 = vmatpush1.msra.mxu0 %v334
    %1452 = vmatprep.subr.mxu0 0.0
    %1453 = vmatpush1.msra.mxu0 %v333
    %1454 = vmatprep.subr.mxu0 0.0
    %1455 = vmatpush1.msra.mxu0 %v332
    %1456 = vmatprep.subr.mxu0 0.0
    %1457 = vmatpush1.msra.mxu0 %v331
    %1458 = vmatprep.subr.mxu0 0.0
    %1459 = vmatpush1.msra.mxu0 %v330
    %1460 = vmatprep.subr.mxu0 0.0
    %1461 = vmatpush2.msra.mxu0 0.0
    %1462 = vmatprep.subr.mxu0 0.0
    %1463 = vmatpush2.msra.mxu0 0.0
    %1464 = vmatprep.subr.mxu0 0.0
    %1465 = vmatpush2.msra.mxu0 0.0
    %1466 = vmatprep.subr.mxu0 0.0
    %1467 = vmatpush2.msra.mxu0 0.0
    %1468 = vmatprep.subr.mxu0 0.0
    %1469 = vmatpush2.msra.mxu0 0.0
    %1470 = vmatprep.subr.mxu0 0.0
    %1471 = vmatpush2.msra.mxu0 0.0
    %1472 = vmatprep.subr.mxu0 0.0
    %1473 = vmatpush2.msra.mxu0 0.0
    %1474 = vmatprep.subr.mxu0 0.0
    %1475 = vmatpush2.msra.mxu0 %v354
    %1476 = vmatprep.subr.mxu0 0.0
    %1477 = vmatpush2.msra.mxu0 %v353
    %1478 = vmatprep.subr.mxu0 0.0
    %1479 = vmatpush2.msra.mxu0 %v352
    %1480 = vmatprep.subr.mxu0 0.0
    %1481 = vmatpush2.msra.mxu0 %v351
    %1482 = vmatprep.subr.mxu0 0.0
    %1483 = vmatpush2.msra.mxu0 %v350
    %1484 = vmatprep.subr.mxu0 0.0
    %1485 = vmatpush2.msra.mxu0 %v349
    %1486 = vmatprep.subr.mxu0 0.0
    %1487 = vmatpush2.msra.mxu0 %v348
    %1488 = vmatprep.subr.mxu0 0.0
    %1489 = vmatpush2.msra.mxu0 %v347
    %1490 = vmatprep.subr.mxu0 0.0
    %1491 = vmatpush2.msra.mxu0 %v346
    %1492 = vmatprep.mubr.f32.mxu0 %v1417
    %1493 = vmatmul.mubr.f32.gmra.mxu0 %v1408
    %v1494 = vpop.f32.mrf.mxu0
    %v1495 = vadd.f32 0.0, %v1494
    %v1496 = vpop.f32.mrf.mxu0
    %1497 = vmatprep.mubr.f32.mxu0 %v1420
    %1498 = vmatmul.mubr.f32.gmra.mxu0 %v1410
    %v1499 = vpop.f32.mrf.mxu0
    %v1500 = vadd.f32 0.0, %v1499
    %v1501 = vpop.f32.mrf.mxu0
    %1502 = vmatprep.mubr.f32.mxu0 %v1423
    %1503 = vmatmul.mubr.f32.gmra.mxu0 %v1412
    %v1504 = vpop.f32.mrf.mxu0
    %v1505 = vadd.f32 0.0, %v1504
    %v1506 = vpop.f32.mrf.mxu0
    %1507 = vmatprep.mubr.f32.mxu0 %v1426
    %1508 = vmatmul.mubr.f32.gmra.mxu0 %v1414
    %v1509 = vpop.f32.mrf.mxu0
    %v1510 = vadd.f32 0.0, %v1509
    %v1511 = vpop.f32.mrf.mxu0
    %1512 = vdwg.mxu0
    %s1513 = scalar_lea.vmem %s4, 160
    %v1514 = vld [vmem:[%s1513] sm:$0xff]
    %v1515 = vld [vmem:[%s1513 + $0x8] sm:$0xff]
    %v1516 = vld [vmem:[%s1513 + $0x10] sm:$0xff]
    %v1517 = vld [vmem:[%s1513 + $0x18] sm:$0xff]
    %v1519 = vsel %vm576, %v1495, 0
    %v1522 = vsel %vm576, %v1500, 0
    %v1525 = vsel %vm576, %v1505, 0
    %v1528 = vsel %vm576, %v1510, 0
    %1530 = vmatprep.subr.mxu0 0.0
    %1531 = vmatpush1.msra.mxu0 0.0
    %1532 = vmatprep.subr.mxu0 0.0
    %1533 = vmatpush1.msra.mxu0 0.0
    %1534 = vmatprep.subr.mxu0 0.0
    %1535 = vmatpush1.msra.mxu0 0.0
    %1536 = vmatprep.subr.mxu0 0.0
    %1537 = vmatpush1.msra.mxu0 0.0
    %1538 = vmatprep.subr.mxu0 0.0
    %1539 = vmatpush1.msra.mxu0 0.0
    %1540 = vmatprep.subr.mxu0 0.0
    %1541 = vmatpush1.msra.mxu0 0.0
    %1542 = vmatprep.subr.mxu0 0.0
    %1543 = vmatpush1.msra.mxu0 0.0
    %1544 = vmatprep.subr.mxu0 0.0
    %1545 = vmatpush1.msra.mxu0 0.0
    %1546 = vmatprep.subr.mxu0 0.0
    %1547 = vmatpush1.msra.mxu0 0.0
    %1548 = vmatprep.subr.mxu0 0.0
    %1549 = vmatpush1.msra.mxu0 0.0
    %1550 = vmatprep.subr.mxu0 0.0
    %1551 = vmatpush1.msra.mxu0 0.0
    %1552 = vmatprep.subr.mxu0 0.0
    %1553 = vmatpush1.msra.mxu0 0.0
    %1554 = vmatprep.subr.mxu0 0.0
    %1555 = vmatpush1.msra.mxu0 %v1517
    %1556 = vmatprep.subr.mxu0 0.0
    %1557 = vmatpush1.msra.mxu0 %v1516
    %1558 = vmatprep.subr.mxu0 0.0
    %1559 = vmatpush1.msra.mxu0 %v1515
    %1560 = vmatprep.subr.mxu0 0.0
    %1561 = vmatpush1.msra.mxu0 %v1514
    %1562 = vmatprep.subr.mxu0 0.0
    %1563 = vmatpush2.msra.mxu0 0.0
    %1564 = vmatprep.subr.mxu0 0.0
    %1565 = vmatpush2.msra.mxu0 0.0
    %1566 = vmatprep.subr.mxu0 0.0
    %1567 = vmatpush2.msra.mxu0 0.0
    %1568 = vmatprep.subr.mxu0 0.0
    %1569 = vmatpush2.msra.mxu0 0.0
    %1570 = vmatprep.subr.mxu0 0.0
    %1571 = vmatpush2.msra.mxu0 0.0
    %1572 = vmatprep.subr.mxu0 0.0
    %1573 = vmatpush2.msra.mxu0 0.0
    %1574 = vmatprep.subr.mxu0 0.0
    %1575 = vmatpush2.msra.mxu0 0.0
    %1576 = vmatprep.subr.mxu0 0.0
    %1577 = vmatpush2.msra.mxu0 0.0
    %1578 = vmatprep.subr.mxu0 0.0
    %1579 = vmatpush2.msra.mxu0 0.0
    %1580 = vmatprep.subr.mxu0 0.0
    %1581 = vmatpush2.msra.mxu0 0.0
    %1582 = vmatprep.subr.mxu0 0.0
    %1583 = vmatpush2.msra.mxu0 0.0
    %1584 = vmatprep.subr.mxu0 0.0
    %1585 = vmatpush2.msra.mxu0 0.0
    %1586 = vmatprep.subr.mxu0 0.0
    %1587 = vmatpush2.msra.mxu0 0.0
    %1588 = vmatprep.subr.mxu0 0.0
    %1589 = vmatpush2.msra.mxu0 0.0
    %1590 = vmatprep.subr.mxu0 0.0
    %1591 = vmatpush2.msra.mxu0 0.0
    %1592 = vmatprep.subr.mxu0 0.0
    %1593 = vmatpush2.msra.mxu0 0.0
    %1594 = vmatprep.mubr.f32.mxu0 0.0
    %1595 = vmatmul.mubr.f32.gmra.mxu0 %v1519
    %v1596 = vpop.f32.mrf.mxu0
    %v1597 = vadd.f32 0.0, %v1596
    %v1598 = vpop.f32.mrf.mxu0
    %1599 = vmatprep.mubr.f32.mxu0 0.0
    %1600 = vmatmul.mubr.f32.gmra.mxu0 %v1522
    %v1601 = vpop.f32.mrf.mxu0
    %v1602 = vadd.f32 0.0, %v1601
    %v1603 = vpop.f32.mrf.mxu0
    %1604 = vmatprep.mubr.f32.mxu0 0.0
    %1605 = vmatmul.mubr.f32.gmra.mxu0 %v1525
    %v1606 = vpop.f32.mrf.mxu0
    %v1607 = vadd.f32 0.0, %v1606
    %v1608 = vpop.f32.mrf.mxu0
    %1609 = vmatprep.mubr.f32.mxu0 0.0
    %1610 = vmatmul.mubr.f32.gmra.mxu0 %v1528
    %v1611 = vpop.f32.mrf.mxu0
    %v1612 = vadd.f32 0.0, %v1611
    %v1613 = vpop.f32.mrf.mxu0
    %1614 = vdwg.mxu0
    %v1615 = vadd.f32 %v1403, %v1597
    %v1616 = vadd.f32 %v1404, %v1602
    %v1617 = vadd.f32 %v1405, %v1607
    %v1618 = vadd.f32 %v1406, %v1612
    %s1619 = scalar_lea.vmem %s3, 384
    %v1620 = vld [vmem:[%s1619] sm:$0xff]
    %v1621 = vld [vmem:[%s1619 + $0x8] sm:$0xff]
    %v1622 = vld [vmem:[%s1619 + $0x10] sm:$0xff]
    %v1623 = vld [vmem:[%s1619 + $0x18] sm:$0xff]
    %v1624 = vld [vmem:[%s1619 + $0x20] sm:$0xff]
    %v1625 = vld [vmem:[%s1619 + $0x28] sm:$0xff]
    %v1626 = vld [vmem:[%s1619 + $0x30] sm:$0xff]
    %v1627 = vld [vmem:[%s1619 + $0x38] sm:$0xff]
    %v1629 = vsel %vm363, %v1621, 0
    %v1632 = vsel %vm363, %v1623, 0
    %v1635 = vsel %vm363, %v1625, 0
    %v1638 = vsel %vm363, %v1627, 0
    %1640 = vmatprep.subr.mxu0 0.0
    %1641 = vmatpush1.msra.mxu0 %v345
    %1642 = vmatprep.subr.mxu0 0.0
    %1643 = vmatpush1.msra.mxu0 %v344
    %1644 = vmatprep.subr.mxu0 0.0
    %1645 = vmatpush1.msra.mxu0 %v343
    %1646 = vmatprep.subr.mxu0 0.0
    %1647 = vmatpush1.msra.mxu0 %v342
    %1648 = vmatprep.subr.mxu0 0.0
    %1649 = vmatpush1.msra.mxu0 %v341
    %1650 = vmatprep.subr.mxu0 0.0
    %1651 = vmatpush1.msra.mxu0 %v340
    %1652 = vmatprep.subr.mxu0 0.0
    %1653 = vmatpush1.msra.mxu0 %v339
    %1654 = vmatprep.subr.mxu0 0.0
    %1655 = vmatpush1.msra.mxu0 %v338
    %1656 = vmatprep.subr.mxu0 0.0
    %1657 = vmatpush1.msra.mxu0 %v337
    %1658 = vmatprep.subr.mxu0 0.0
    %1659 = vmatpush1.msra.mxu0 %v336
    %1660 = vmatprep.subr.mxu0 0.0
    %1661 = vmatpush1.msra.mxu0 %v335
    %1662 = vmatprep.subr.mxu0 0.0
    %1663 = vmatpush1.msra.mxu0 %v334
    %1664 = vmatprep.subr.mxu0 0.0
    %1665 = vmatpush1.msra.mxu0 %v333
    %1666 = vmatprep.subr.mxu0 0.0
    %1667 = vmatpush1.msra.mxu0 %v332
    %1668 = vmatprep.subr.mxu0 0.0
    %1669 = vmatpush1.msra.mxu0 %v331
    %1670 = vmatprep.subr.mxu0 0.0
    %1671 = vmatpush1.msra.mxu0 %v330
    %1672 = vmatprep.subr.mxu0 0.0
    %1673 = vmatpush2.msra.mxu0 0.0
    %1674 = vmatprep.subr.mxu0 0.0
    %1675 = vmatpush2.msra.mxu0 0.0
    %1676 = vmatprep.subr.mxu0 0.0
    %1677 = vmatpush2.msra.mxu0 0.0
    %1678 = vmatprep.subr.mxu0 0.0
    %1679 = vmatpush2.msra.mxu0 0.0
    %1680 = vmatprep.subr.mxu0 0.0
    %1681 = vmatpush2.msra.mxu0 0.0
    %1682 = vmatprep.subr.mxu0 0.0
    %1683 = vmatpush2.msra.mxu0 0.0
    %1684 = vmatprep.subr.mxu0 0.0
    %1685 = vmatpush2.msra.mxu0 0.0
    %1686 = vmatprep.subr.mxu0 0.0
    %1687 = vmatpush2.msra.mxu0 %v354
    %1688 = vmatprep.subr.mxu0 0.0
    %1689 = vmatpush2.msra.mxu0 %v353
    %1690 = vmatprep.subr.mxu0 0.0
    %1691 = vmatpush2.msra.mxu0 %v352
    %1692 = vmatprep.subr.mxu0 0.0
    %1693 = vmatpush2.msra.mxu0 %v351
    %1694 = vmatprep.subr.mxu0 0.0
    %1695 = vmatpush2.msra.mxu0 %v350
    %1696 = vmatprep.subr.mxu0 0.0
    %1697 = vmatpush2.msra.mxu0 %v349
    %1698 = vmatprep.subr.mxu0 0.0
    %1699 = vmatpush2.msra.mxu0 %v348
    %1700 = vmatprep.subr.mxu0 0.0
    %1701 = vmatpush2.msra.mxu0 %v347
    %1702 = vmatprep.subr.mxu0 0.0
    %1703 = vmatpush2.msra.mxu0 %v346
    %1704 = vmatprep.mubr.f32.mxu0 %v1629
    %1705 = vmatmul.mubr.f32.gmra.mxu0 %v1620
    %v1706 = vpop.f32.mrf.mxu0
    %v1707 = vadd.f32 0.0, %v1706
    %v1708 = vpop.f32.mrf.mxu0
    %1709 = vmatprep.mubr.f32.mxu0 %v1632
    %1710 = vmatmul.mubr.f32.gmra.mxu0 %v1622
    %v1711 = vpop.f32.mrf.mxu0
    %v1712 = vadd.f32 0.0, %v1711
    %v1713 = vpop.f32.mrf.mxu0
    %1714 = vmatprep.mubr.f32.mxu0 %v1635
    %1715 = vmatmul.mubr.f32.gmra.mxu0 %v1624
    %v1716 = vpop.f32.mrf.mxu0
    %v1717 = vadd.f32 0.0, %v1716
    %v1718 = vpop.f32.mrf.mxu0
    %1719 = vmatprep.mubr.f32.mxu0 %v1638
    %1720 = vmatmul.mubr.f32.gmra.mxu0 %v1626
    %v1721 = vpop.f32.mrf.mxu0
    %v1722 = vadd.f32 0.0, %v1721
    %v1723 = vpop.f32.mrf.mxu0
    %1724 = vdwg.mxu0
    %s1725 = scalar_lea.vmem %s4, 192
    %v1726 = vld [vmem:[%s1725] sm:$0xff]
    %v1727 = vld [vmem:[%s1725 + $0x8] sm:$0xff]
    %v1728 = vld [vmem:[%s1725 + $0x10] sm:$0xff]
    %v1729 = vld [vmem:[%s1725 + $0x18] sm:$0xff]
    %v1731 = vsel %vm576, %v1707, 0
    %v1734 = vsel %vm576, %v1712, 0
    %v1737 = vsel %vm576, %v1717, 0
    %v1740 = vsel %vm576, %v1722, 0
    %1742 = vmatprep.subr.mxu0 0.0
    %1743 = vmatpush1.msra.mxu0 0.0
    %1744 = vmatprep.subr.mxu0 0.0
    %1745 = vmatpush1.msra.mxu0 0.0
    %1746 = vmatprep.subr.mxu0 0.0
    %1747 = vmatpush1.msra.mxu0 0.0
    %1748 = vmatprep.subr.mxu0 0.0
    %1749 = vmatpush1.msra.mxu0 0.0
    %1750 = vmatprep.subr.mxu0 0.0
    %1751 = vmatpush1.msra.mxu0 0.0
    %1752 = vmatprep.subr.mxu0 0.0
    %1753 = vmatpush1.msra.mxu0 0.0
    %1754 = vmatprep.subr.mxu0 0.0
    %1755 = vmatpush1.msra.mxu0 0.0
    %1756 = vmatprep.subr.mxu0 0.0
    %1757 = vmatpush1.msra.mxu0 0.0
    %1758 = vmatprep.subr.mxu0 0.0
    %1759 = vmatpush1.msra.mxu0 0.0
    %1760 = vmatprep.subr.mxu0 0.0
    %1761 = vmatpush1.msra.mxu0 0.0
    %1762 = vmatprep.subr.mxu0 0.0
    %1763 = vmatpush1.msra.mxu0 0.0
    %1764 = vmatprep.subr.mxu0 0.0
    %1765 = vmatpush1.msra.mxu0 0.0
    %1766 = vmatprep.subr.mxu0 0.0
    %1767 = vmatpush1.msra.mxu0 %v1729
    %1768 = vmatprep.subr.mxu0 0.0
    %1769 = vmatpush1.msra.mxu0 %v1728
    %1770 = vmatprep.subr.mxu0 0.0
    %1771 = vmatpush1.msra.mxu0 %v1727
    %1772 = vmatprep.subr.mxu0 0.0
    %1773 = vmatpush1.msra.mxu0 %v1726
    %1774 = vmatprep.subr.mxu0 0.0
    %1775 = vmatpush2.msra.mxu0 0.0
    %1776 = vmatprep.subr.mxu0 0.0
    %1777 = vmatpush2.msra.mxu0 0.0
    %1778 = vmatprep.subr.mxu0 0.0
    %1779 = vmatpush2.msra.mxu0 0.0
    %1780 = vmatprep.subr.mxu0 0.0
    %1781 = vmatpush2.msra.mxu0 0.0
    %1782 = vmatprep.subr.mxu0 0.0
    %1783 = vmatpush2.msra.mxu0 0.0
    %1784 = vmatprep.subr.mxu0 0.0
    %1785 = vmatpush2.msra.mxu0 0.0
    %1786 = vmatprep.subr.mxu0 0.0
    %1787 = vmatpush2.msra.mxu0 0.0
    %1788 = vmatprep.subr.mxu0 0.0
    %1789 = vmatpush2.msra.mxu0 0.0
    %1790 = vmatprep.subr.mxu0 0.0
    %1791 = vmatpush2.msra.mxu0 0.0
    %1792 = vmatprep.subr.mxu0 0.0
    %1793 = vmatpush2.msra.mxu0 0.0
    %1794 = vmatprep.subr.mxu0 0.0
    %1795 = vmatpush2.msra.mxu0 0.0
    %1796 = vmatprep.subr.mxu0 0.0
    %1797 = vmatpush2.msra.mxu0 0.0
    %1798 = vmatprep.subr.mxu0 0.0
    %1799 = vmatpush2.msra.mxu0 0.0
    %1800 = vmatprep.subr.mxu0 0.0
    %1801 = vmatpush2.msra.mxu0 0.0
    %1802 = vmatprep.subr.mxu0 0.0
    %1803 = vmatpush2.msra.mxu0 0.0
    %1804 = vmatprep.subr.mxu0 0.0
    %1805 = vmatpush2.msra.mxu0 0.0
    %1806 = vmatprep.mubr.f32.mxu0 0.0
    %1807 = vmatmul.mubr.f32.gmra.mxu0 %v1731
    %v1808 = vpop.f32.mrf.mxu0
    %v1809 = vadd.f32 0.0, %v1808
    %v1810 = vpop.f32.mrf.mxu0
    %1811 = vmatprep.mubr.f32.mxu0 0.0
    %1812 = vmatmul.mubr.f32.gmra.mxu0 %v1734
    %v1813 = vpop.f32.mrf.mxu0
    %v1814 = vadd.f32 0.0, %v1813
    %v1815 = vpop.f32.mrf.mxu0
    %1816 = vmatprep.mubr.f32.mxu0 0.0
    %1817 = vmatmul.mubr.f32.gmra.mxu0 %v1737
    %v1818 = vpop.f32.mrf.mxu0
    %v1819 = vadd.f32 0.0, %v1818
    %v1820 = vpop.f32.mrf.mxu0
    %1821 = vmatprep.mubr.f32.mxu0 0.0
    %1822 = vmatmul.mubr.f32.gmra.mxu0 %v1740
    %v1823 = vpop.f32.mrf.mxu0
    %v1824 = vadd.f32 0.0, %v1823
    %v1825 = vpop.f32.mrf.mxu0
    %1826 = vdwg.mxu0
    %v1827 = vadd.f32 %v1615, %v1809
    %v1828 = vadd.f32 %v1616, %v1814
    %v1829 = vadd.f32 %v1617, %v1819
    %v1830 = vadd.f32 %v1618, %v1824
    %s1831 = scalar_lea.vmem %s3, 448
    %v1832 = vld [vmem:[%s1831] sm:$0xff]
    %v1833 = vld [vmem:[%s1831 + $0x8] sm:$0xff]
    %v1834 = vld [vmem:[%s1831 + $0x10] sm:$0xff]
    %v1835 = vld [vmem:[%s1831 + $0x18] sm:$0xff]
    %v1836 = vld [vmem:[%s1831 + $0x20] sm:$0xff]
    %v1837 = vld [vmem:[%s1831 + $0x28] sm:$0xff]
    %v1838 = vld [vmem:[%s1831 + $0x30] sm:$0xff]
    %v1839 = vld [vmem:[%s1831 + $0x38] sm:$0xff]
    %v1841 = vsel %vm363, %v1833, 0
    %v1844 = vsel %vm363, %v1835, 0
    %v1847 = vsel %vm363, %v1837, 0
    %v1850 = vsel %vm363, %v1839, 0
    %1852 = vmatprep.subr.mxu0 0.0
    %1853 = vmatpush1.msra.mxu0 %v345
    %1854 = vmatprep.subr.mxu0 0.0
    %1855 = vmatpush1.msra.mxu0 %v344
    %1856 = vmatprep.subr.mxu0 0.0
    %1857 = vmatpush1.msra.mxu0 %v343
    %1858 = vmatprep.subr.mxu0 0.0
    %1859 = vmatpush1.msra.mxu0 %v342
    %1860 = vmatprep.subr.mxu0 0.0
    %1861 = vmatpush1.msra.mxu0 %v341
    %1862 = vmatprep.subr.mxu0 0.0
    %1863 = vmatpush1.msra.mxu0 %v340
    %1864 = vmatprep.subr.mxu0 0.0
    %1865 = vmatpush1.msra.mxu0 %v339
    %1866 = vmatprep.subr.mxu0 0.0
    %1867 = vmatpush1.msra.mxu0 %v338
    %1868 = vmatprep.subr.mxu0 0.0
    %1869 = vmatpush1.msra.mxu0 %v337
    %1870 = vmatprep.subr.mxu0 0.0
    %1871 = vmatpush1.msra.mxu0 %v336
    %1872 = vmatprep.subr.mxu0 0.0
    %1873 = vmatpush1.msra.mxu0 %v335
    %1874 = vmatprep.subr.mxu0 0.0
    %1875 = vmatpush1.msra.mxu0 %v334
    %1876 = vmatprep.subr.mxu0 0.0
    %1877 = vmatpush1.msra.mxu0 %v333
    %1878 = vmatprep.subr.mxu0 0.0
    %1879 = vmatpush1.msra.mxu0 %v332
    %1880 = vmatprep.subr.mxu0 0.0
    %1881 = vmatpush1.msra.mxu0 %v331
    %1882 = vmatprep.subr.mxu0 0.0
    %1883 = vmatpush1.msra.mxu0 %v330
    %1884 = vmatprep.subr.mxu0 0.0
    %1885 = vmatpush2.msra.mxu0 0.0
    %1886 = vmatprep.subr.mxu0 0.0
    %1887 = vmatpush2.msra.mxu0 0.0
    %1888 = vmatprep.subr.mxu0 0.0
    %1889 = vmatpush2.msra.mxu0 0.0
    %1890 = vmatprep.subr.mxu0 0.0
    %1891 = vmatpush2.msra.mxu0 0.0
    %1892 = vmatprep.subr.mxu0 0.0
    %1893 = vmatpush2.msra.mxu0 0.0
    %1894 = vmatprep.subr.mxu0 0.0
    %1895 = vmatpush2.msra.mxu0 0.0
    %1896 = vmatprep.subr.mxu0 0.0
    %1897 = vmatpush2.msra.mxu0 0.0
    %1898 = vmatprep.subr.mxu0 0.0
    %1899 = vmatpush2.msra.mxu0 %v354
    %1900 = vmatprep.subr.mxu0 0.0
    %1901 = vmatpush2.msra.mxu0 %v353
    %1902 = vmatprep.subr.mxu0 0.0
    %1903 = vmatpush2.msra.mxu0 %v352
    %1904 = vmatprep.subr.mxu0 0.0
    %1905 = vmatpush2.msra.mxu0 %v351
    %1906 = vmatprep.subr.mxu0 0.0
    %1907 = vmatpush2.msra.mxu0 %v350
    %1908 = vmatprep.subr.mxu0 0.0
    %1909 = vmatpush2.msra.mxu0 %v349
    %1910 = vmatprep.subr.mxu0 0.0
    %1911 = vmatpush2.msra.mxu0 %v348
    %1912 = vmatprep.subr.mxu0 0.0
    %1913 = vmatpush2.msra.mxu0 %v347
    %1914 = vmatprep.subr.mxu0 0.0
    %1915 = vmatpush2.msra.mxu0 %v346
    %1916 = vmatprep.mubr.f32.mxu0 %v1841
    %1917 = vmatmul.mubr.f32.gmra.mxu0 %v1832
    %v1918 = vpop.f32.mrf.mxu0
    %v1919 = vadd.f32 0.0, %v1918
    %v1920 = vpop.f32.mrf.mxu0
    %1921 = vmatprep.mubr.f32.mxu0 %v1844
    %1922 = vmatmul.mubr.f32.gmra.mxu0 %v1834
    %v1923 = vpop.f32.mrf.mxu0
    %v1924 = vadd.f32 0.0, %v1923
    %v1925 = vpop.f32.mrf.mxu0
    %1926 = vmatprep.mubr.f32.mxu0 %v1847
    %1927 = vmatmul.mubr.f32.gmra.mxu0 %v1836
    %v1928 = vpop.f32.mrf.mxu0
    %v1929 = vadd.f32 0.0, %v1928
    %v1930 = vpop.f32.mrf.mxu0
    %1931 = vmatprep.mubr.f32.mxu0 %v1850
    %1932 = vmatmul.mubr.f32.gmra.mxu0 %v1838
    %v1933 = vpop.f32.mrf.mxu0
    %v1934 = vadd.f32 0.0, %v1933
    %v1935 = vpop.f32.mrf.mxu0
    %1936 = vdwg.mxu0
    %s1937 = scalar_lea.vmem %s4, 224
    %v1938 = vld [vmem:[%s1937] sm:$0xff]
    %v1939 = vld [vmem:[%s1937 + $0x8] sm:$0xff]
    %v1940 = vld [vmem:[%s1937 + $0x10] sm:$0xff]
    %v1941 = vld [vmem:[%s1937 + $0x18] sm:$0xff]
    %v1943 = vsel %vm576, %v1919, 0
    %v1946 = vsel %vm576, %v1924, 0
    %v1949 = vsel %vm576, %v1929, 0
    %v1952 = vsel %vm576, %v1934, 0
    %1954 = vmatprep.subr.mxu0 0.0
    %1955 = vmatpush1.msra.mxu0 0.0
    %1956 = vmatprep.subr.mxu0 0.0
    %1957 = vmatpush1.msra.mxu0 0.0
    %1958 = vmatprep.subr.mxu0 0.0
    %1959 = vmatpush1.msra.mxu0 0.0
    %1960 = vmatprep.subr.mxu0 0.0
    %1961 = vmatpush1.msra.mxu0 0.0
    %1962 = vmatprep.subr.mxu0 0.0
    %1963 = vmatpush1.msra.mxu0 0.0
    %1964 = vmatprep.subr.mxu0 0.0
    %1965 = vmatpush1.msra.mxu0 0.0
    %1966 = vmatprep.subr.mxu0 0.0
    %1967 = vmatpush1.msra.mxu0 0.0
    %1968 = vmatprep.subr.mxu0 0.0
    %1969 = vmatpush1.msra.mxu0 0.0
    %1970 = vmatprep.subr.mxu0 0.0
    %1971 = vmatpush1.msra.mxu0 0.0
    %1972 = vmatprep.subr.mxu0 0.0
    %1973 = vmatpush1.msra.mxu0 0.0
    %1974 = vmatprep.subr.mxu0 0.0
    %1975 = vmatpush1.msra.mxu0 0.0
    %1976 = vmatprep.subr.mxu0 0.0
    %1977 = vmatpush1.msra.mxu0 0.0
    %1978 = vmatprep.subr.mxu0 0.0
    %1979 = vmatpush1.msra.mxu0 %v1941
    %1980 = vmatprep.subr.mxu0 0.0
    %1981 = vmatpush1.msra.mxu0 %v1940
    %1982 = vmatprep.subr.mxu0 0.0
    %1983 = vmatpush1.msra.mxu0 %v1939
    %1984 = vmatprep.subr.mxu0 0.0
    %1985 = vmatpush1.msra.mxu0 %v1938
    %1986 = vmatprep.subr.mxu0 0.0
    %1987 = vmatpush2.msra.mxu0 0.0
    %1988 = vmatprep.subr.mxu0 0.0
    %1989 = vmatpush2.msra.mxu0 0.0
    %1990 = vmatprep.subr.mxu0 0.0
    %1991 = vmatpush2.msra.mxu0 0.0
    %1992 = vmatprep.subr.mxu0 0.0
    %1993 = vmatpush2.msra.mxu0 0.0
    %1994 = vmatprep.subr.mxu0 0.0
    %1995 = vmatpush2.msra.mxu0 0.0
    %1996 = vmatprep.subr.mxu0 0.0
    %1997 = vmatpush2.msra.mxu0 0.0
    %1998 = vmatprep.subr.mxu0 0.0
    %1999 = vmatpush2.msra.mxu0 0.0
    %2000 = vmatprep.subr.mxu0 0.0
    %2001 = vmatpush2.msra.mxu0 0.0
    %2002 = vmatprep.subr.mxu0 0.0
    %2003 = vmatpush2.msra.mxu0 0.0
    %2004 = vmatprep.subr.mxu0 0.0
    %2005 = vmatpush2.msra.mxu0 0.0
    %2006 = vmatprep.subr.mxu0 0.0
    %2007 = vmatpush2.msra.mxu0 0.0
    %2008 = vmatprep.subr.mxu0 0.0
    %2009 = vmatpush2.msra.mxu0 0.0
    %2010 = vmatprep.subr.mxu0 0.0
    %2011 = vmatpush2.msra.mxu0 0.0
    %2012 = vmatprep.subr.mxu0 0.0
    %2013 = vmatpush2.msra.mxu0 0.0
    %2014 = vmatprep.subr.mxu0 0.0
    %2015 = vmatpush2.msra.mxu0 0.0
    %2016 = vmatprep.subr.mxu0 0.0
    %2017 = vmatpush2.msra.mxu0 0.0
    %2018 = vmatprep.mubr.f32.mxu0 0.0
    %2019 = vmatmul.mubr.f32.gmra.mxu0 %v1943
    %v2020 = vpop.f32.mrf.mxu0
    %v2021 = vadd.f32 0.0, %v2020
    %v2022 = vpop.f32.mrf.mxu0
    %2023 = vmatprep.mubr.f32.mxu0 0.0
    %2024 = vmatmul.mubr.f32.gmra.mxu0 %v1946
    %v2025 = vpop.f32.mrf.mxu0
    %v2026 = vadd.f32 0.0, %v2025
    %v2027 = vpop.f32.mrf.mxu0
    %2028 = vmatprep.mubr.f32.mxu0 0.0
    %2029 = vmatmul.mubr.f32.gmra.mxu0 %v1949
    %v2030 = vpop.f32.mrf.mxu0
    %v2031 = vadd.f32 0.0, %v2030
    %v2032 = vpop.f32.mrf.mxu0
    %2033 = vmatprep.mubr.f32.mxu0 0.0
    %2034 = vmatmul.mubr.f32.gmra.mxu0 %v1952
    %v2035 = vpop.f32.mrf.mxu0
    %v2036 = vadd.f32 0.0, %v2035
    %v2037 = vpop.f32.mrf.mxu0
    %2038 = vdwg.mxu0
    %v2039 = vadd.f32 %v1827, %v2021
    %v2040 = vadd.f32 %v1828, %v2026
    %v2041 = vadd.f32 %v1829, %v2031
    %v2042 = vadd.f32 %v1830, %v2036
    %s2043 = scalar_lea.vmem %s3, 512
    %v2044 = vld [vmem:[%s2043] sm:$0xff]
    %v2045 = vld [vmem:[%s2043 + $0x8] sm:$0xff]
    %v2046 = vld [vmem:[%s2043 + $0x10] sm:$0xff]
    %v2047 = vld [vmem:[%s2043 + $0x18] sm:$0xff]
    %v2048 = vld [vmem:[%s2043 + $0x20] sm:$0xff]
    %v2049 = vld [vmem:[%s2043 + $0x28] sm:$0xff]
    %v2050 = vld [vmem:[%s2043 + $0x30] sm:$0xff]
    %v2051 = vld [vmem:[%s2043 + $0x38] sm:$0xff]
    %v2053 = vsel %vm363, %v2045, 0
    %v2056 = vsel %vm363, %v2047, 0
    %v2059 = vsel %vm363, %v2049, 0
    %v2062 = vsel %vm363, %v2051, 0
    %2064 = vmatprep.subr.mxu0 0.0
    %2065 = vmatpush1.msra.mxu0 %v345
    %2066 = vmatprep.subr.mxu0 0.0
    %2067 = vmatpush1.msra.mxu0 %v344
    %2068 = vmatprep.subr.mxu0 0.0
    %2069 = vmatpush1.msra.mxu0 %v343
    %2070 = vmatprep.subr.mxu0 0.0
    %2071 = vmatpush1.msra.mxu0 %v342
    %2072 = vmatprep.subr.mxu0 0.0
    %2073 = vmatpush1.msra.mxu0 %v341
    %2074 = vmatprep.subr.mxu0 0.0
    %2075 = vmatpush1.msra.mxu0 %v340
    %2076 = vmatprep.subr.mxu0 0.0
    %2077 = vmatpush1.msra.mxu0 %v339
    %2078 = vmatprep.subr.mxu0 0.0
    %2079 = vmatpush1.msra.mxu0 %v338
    %2080 = vmatprep.subr.mxu0 0.0
    %2081 = vmatpush1.msra.mxu0 %v337
    %2082 = vmatprep.subr.mxu0 0.0
    %2083 = vmatpush1.msra.mxu0 %v336
    %2084 = vmatprep.subr.mxu0 0.0
    %2085 = vmatpush1.msra.mxu0 %v335
    %2086 = vmatprep.subr.mxu0 0.0
    %2087 = vmatpush1.msra.mxu0 %v334
    %2088 = vmatprep.subr.mxu0 0.0
    %2089 = vmatpush1.msra.mxu0 %v333
    %2090 = vmatprep.subr.mxu0 0.0
    %2091 = vmatpush1.msra.mxu0 %v332
    %2092 = vmatprep.subr.mxu0 0.0
    %2093 = vmatpush1.msra.mxu0 %v331
    %2094 = vmatprep.subr.mxu0 0.0
    %2095 = vmatpush1.msra.mxu0 %v330
    %2096 = vmatprep.subr.mxu0 0.0
    %2097 = vmatpush2.msra.mxu0 0.0
    %2098 = vmatprep.subr.mxu0 0.0
    %2099 = vmatpush2.msra.mxu0 0.0
    %2100 = vmatprep.subr.mxu0 0.0
    %2101 = vmatpush2.msra.mxu0 0.0
    %2102 = vmatprep.subr.mxu0 0.0
    %2103 = vmatpush2.msra.mxu0 0.0
    %2104 = vmatprep.subr.mxu0 0.0
    %2105 = vmatpush2.msra.mxu0 0.0
    %2106 = vmatprep.subr.mxu0 0.0
    %2107 = vmatpush2.msra.mxu0 0.0
    %2108 = vmatprep.subr.mxu0 0.0
    %2109 = vmatpush2.msra.mxu0 0.0
    %2110 = vmatprep.subr.mxu0 0.0
    %2111 = vmatpush2.msra.mxu0 %v354
    %2112 = vmatprep.subr.mxu0 0.0
    %2113 = vmatpush2.msra.mxu0 %v353
    %2114 = vmatprep.subr.mxu0 0.0
    %2115 = vmatpush2.msra.mxu0 %v352
    %2116 = vmatprep.subr.mxu0 0.0
    %2117 = vmatpush2.msra.mxu0 %v351
    %2118 = vmatprep.subr.mxu0 0.0
    %2119 = vmatpush2.msra.mxu0 %v350
    %2120 = vmatprep.subr.mxu0 0.0
    %2121 = vmatpush2.msra.mxu0 %v349
    %2122 = vmatprep.subr.mxu0 0.0
    %2123 = vmatpush2.msra.mxu0 %v348
    %2124 = vmatprep.subr.mxu0 0.0
    %2125 = vmatpush2.msra.mxu0 %v347
    %2126 = vmatprep.subr.mxu0 0.0
    %2127 = vmatpush2.msra.mxu0 %v346
    %2128 = vmatprep.mubr.f32.mxu0 %v2053
    %2129 = vmatmul.mubr.f32.gmra.mxu0 %v2044
    %v2130 = vpop.f32.mrf.mxu0
    %v2131 = vadd.f32 0.0, %v2130
    %v2132 = vpop.f32.mrf.mxu0
    %2133 = vmatprep.mubr.f32.mxu0 %v2056
    %2134 = vmatmul.mubr.f32.gmra.mxu0 %v2046
    %v2135 = vpop.f32.mrf.mxu0
    %v2136 = vadd.f32 0.0, %v2135
    %v2137 = vpop.f32.mrf.mxu0
    %2138 = vmatprep.mubr.f32.mxu0 %v2059
    %2139 = vmatmul.mubr.f32.gmra.mxu0 %v2048
    %v2140 = vpop.f32.mrf.mxu0
    %v2141 = vadd.f32 0.0, %v2140
    %v2142 = vpop.f32.mrf.mxu0
    %2143 = vmatprep.mubr.f32.mxu0 %v2062
    %2144 = vmatmul.mubr.f32.gmra.mxu0 %v2050
    %v2145 = vpop.f32.mrf.mxu0
    %v2146 = vadd.f32 0.0, %v2145
    %v2147 = vpop.f32.mrf.mxu0
    %2148 = vdwg.mxu0
    %s2149 = scalar_lea.vmem %s4, 256
    %v2150 = vld [vmem:[%s2149] sm:$0xff]
    %v2151 = vld [vmem:[%s2149 + $0x8] sm:$0xff]
    %v2152 = vld [vmem:[%s2149 + $0x10] sm:$0xff]
    %v2153 = vld [vmem:[%s2149 + $0x18] sm:$0xff]
    %v2155 = vsel %vm576, %v2131, 0
    %v2158 = vsel %vm576, %v2136, 0
    %v2161 = vsel %vm576, %v2141, 0
    %v2164 = vsel %vm576, %v2146, 0
    %2166 = vmatprep.subr.mxu0 0.0
    %2167 = vmatpush1.msra.mxu0 0.0
    %2168 = vmatprep.subr.mxu0 0.0
    %2169 = vmatpush1.msra.mxu0 0.0
    %2170 = vmatprep.subr.mxu0 0.0
    %2171 = vmatpush1.msra.mxu0 0.0
    %2172 = vmatprep.subr.mxu0 0.0
    %2173 = vmatpush1.msra.mxu0 0.0
    %2174 = vmatprep.subr.mxu0 0.0
    %2175 = vmatpush1.msra.mxu0 0.0
    %2176 = vmatprep.subr.mxu0 0.0
    %2177 = vmatpush1.msra.mxu0 0.0
    %2178 = vmatprep.subr.mxu0 0.0
    %2179 = vmatpush1.msra.mxu0 0.0
    %2180 = vmatprep.subr.mxu0 0.0
    %2181 = vmatpush1.msra.mxu0 0.0
    %2182 = vmatprep.subr.mxu0 0.0
    %2183 = vmatpush1.msra.mxu0 0.0
    %2184 = vmatprep.subr.mxu0 0.0
    %2185 = vmatpush1.msra.mxu0 0.0
    %2186 = vmatprep.subr.mxu0 0.0
    %2187 = vmatpush1.msra.mxu0 0.0
    %2188 = vmatprep.subr.mxu0 0.0
    %2189 = vmatpush1.msra.mxu0 0.0
    %2190 = vmatprep.subr.mxu0 0.0
    %2191 = vmatpush1.msra.mxu0 %v2153
    %2192 = vmatprep.subr.mxu0 0.0
    %2193 = vmatpush1.msra.mxu0 %v2152
    %2194 = vmatprep.subr.mxu0 0.0
    %2195 = vmatpush1.msra.mxu0 %v2151
    %2196 = vmatprep.subr.mxu0 0.0
    %2197 = vmatpush1.msra.mxu0 %v2150
    %2198 = vmatprep.subr.mxu0 0.0
    %2199 = vmatpush2.msra.mxu0 0.0
    %2200 = vmatprep.subr.mxu0 0.0
    %2201 = vmatpush2.msra.mxu0 0.0
    %2202 = vmatprep.subr.mxu0 0.0
    %2203 = vmatpush2.msra.mxu0 0.0
    %2204 = vmatprep.subr.mxu0 0.0
    %2205 = vmatpush2.msra.mxu0 0.0
    %2206 = vmatprep.subr.mxu0 0.0
    %2207 = vmatpush2.msra.mxu0 0.0
    %2208 = vmatprep.subr.mxu0 0.0
    %2209 = vmatpush2.msra.mxu0 0.0
    %2210 = vmatprep.subr.mxu0 0.0
    %2211 = vmatpush2.msra.mxu0 0.0
    %2212 = vmatprep.subr.mxu0 0.0
    %2213 = vmatpush2.msra.mxu0 0.0
    %2214 = vmatprep.subr.mxu0 0.0
    %2215 = vmatpush2.msra.mxu0 0.0
    %2216 = vmatprep.subr.mxu0 0.0
    %2217 = vmatpush2.msra.mxu0 0.0
    %2218 = vmatprep.subr.mxu0 0.0
    %2219 = vmatpush2.msra.mxu0 0.0
    %2220 = vmatprep.subr.mxu0 0.0
    %2221 = vmatpush2.msra.mxu0 0.0
    %2222 = vmatprep.subr.mxu0 0.0
    %2223 = vmatpush2.msra.mxu0 0.0
    %2224 = vmatprep.subr.mxu0 0.0
    %2225 = vmatpush2.msra.mxu0 0.0
    %2226 = vmatprep.subr.mxu0 0.0
    %2227 = vmatpush2.msra.mxu0 0.0
    %2228 = vmatprep.subr.mxu0 0.0
    %2229 = vmatpush2.msra.mxu0 0.0
    %2230 = vmatprep.mubr.f32.mxu0 0.0
    %2231 = vmatmul.mubr.f32.gmra.mxu0 %v2155
    %v2232 = vpop.f32.mrf.mxu0
    %v2233 = vadd.f32 0.0, %v2232
    %v2234 = vpop.f32.mrf.mxu0
    %2235 = vmatprep.mubr.f32.mxu0 0.0
    %2236 = vmatmul.mubr.f32.gmra.mxu0 %v2158
    %v2237 = vpop.f32.mrf.mxu0
    %v2238 = vadd.f32 0.0, %v2237
    %v2239 = vpop.f32.mrf.mxu0
    %2240 = vmatprep.mubr.f32.mxu0 0.0
    %2241 = vmatmul.mubr.f32.gmra.mxu0 %v2161
    %v2242 = vpop.f32.mrf.mxu0
    %v2243 = vadd.f32 0.0, %v2242
    %v2244 = vpop.f32.mrf.mxu0
    %2245 = vmatprep.mubr.f32.mxu0 0.0
    %2246 = vmatmul.mubr.f32.gmra.mxu0 %v2164
    %v2247 = vpop.f32.mrf.mxu0
    %v2248 = vadd.f32 0.0, %v2247
    %v2249 = vpop.f32.mrf.mxu0
    %2250 = vdwg.mxu0
    %v2251 = vadd.f32 %v2039, %v2233
    %v2252 = vadd.f32 %v2040, %v2238
    %v2253 = vadd.f32 %v2041, %v2243
    %v2254 = vadd.f32 %v2042, %v2248
    %s2255 = scalar_lea.vmem %s3, 576
    %v2256 = vld [vmem:[%s2255] sm:$0xff]
    %v2257 = vld [vmem:[%s2255 + $0x8] sm:$0xff]
    %v2258 = vld [vmem:[%s2255 + $0x10] sm:$0xff]
    %v2259 = vld [vmem:[%s2255 + $0x18] sm:$0xff]
    %v2260 = vld [vmem:[%s2255 + $0x20] sm:$0xff]
    %v2261 = vld [vmem:[%s2255 + $0x28] sm:$0xff]
    %v2262 = vld [vmem:[%s2255 + $0x30] sm:$0xff]
    %v2263 = vld [vmem:[%s2255 + $0x38] sm:$0xff]
    %v2265 = vsel %vm363, %v2257, 0
    %v2268 = vsel %vm363, %v2259, 0
    %v2271 = vsel %vm363, %v2261, 0
    %v2274 = vsel %vm363, %v2263, 0
    %2276 = vmatprep.subr.mxu0 0.0
    %2277 = vmatpush1.msra.mxu0 %v345
    %2278 = vmatprep.subr.mxu0 0.0
    %2279 = vmatpush1.msra.mxu0 %v344
    %2280 = vmatprep.subr.mxu0 0.0
    %2281 = vmatpush1.msra.mxu0 %v343
    %2282 = vmatprep.subr.mxu0 0.0
    %2283 = vmatpush1.msra.mxu0 %v342
    %2284 = vmatprep.subr.mxu0 0.0
    %2285 = vmatpush1.msra.mxu0 %v341
    %2286 = vmatprep.subr.mxu0 0.0
    %2287 = vmatpush1.msra.mxu0 %v340
    %2288 = vmatprep.subr.mxu0 0.0
    %2289 = vmatpush1.msra.mxu0 %v339
    %2290 = vmatprep.subr.mxu0 0.0
    %2291 = vmatpush1.msra.mxu0 %v338
    %2292 = vmatprep.subr.mxu0 0.0
    %2293 = vmatpush1.msra.mxu0 %v337
    %2294 = vmatprep.subr.mxu0 0.0
    %2295 = vmatpush1.msra.mxu0 %v336
    %2296 = vmatprep.subr.mxu0 0.0
    %2297 = vmatpush1.msra.mxu0 %v335
    %2298 = vmatprep.subr.mxu0 0.0
    %2299 = vmatpush1.msra.mxu0 %v334
    %2300 = vmatprep.subr.mxu0 0.0
    %2301 = vmatpush1.msra.mxu0 %v333
    %2302 = vmatprep.subr.mxu0 0.0
    %2303 = vmatpush1.msra.mxu0 %v332
    %2304 = vmatprep.subr.mxu0 0.0
    %2305 = vmatpush1.msra.mxu0 %v331
    %2306 = vmatprep.subr.mxu0 0.0
    %2307 = vmatpush1.msra.mxu0 %v330
    %2308 = vmatprep.subr.mxu0 0.0
    %2309 = vmatpush2.msra.mxu0 0.0
    %2310 = vmatprep.subr.mxu0 0.0
    %2311 = vmatpush2.msra.mxu0 0.0
    %2312 = vmatprep.subr.mxu0 0.0
    %2313 = vmatpush2.msra.mxu0 0.0
    %2314 = vmatprep.subr.mxu0 0.0
    %2315 = vmatpush2.msra.mxu0 0.0
    %2316 = vmatprep.subr.mxu0 0.0
    %2317 = vmatpush2.msra.mxu0 0.0
    %2318 = vmatprep.subr.mxu0 0.0
    %2319 = vmatpush2.msra.mxu0 0.0
    %2320 = vmatprep.subr.mxu0 0.0
    %2321 = vmatpush2.msra.mxu0 0.0
    %2322 = vmatprep.subr.mxu0 0.0
    %2323 = vmatpush2.msra.mxu0 %v354
    %2324 = vmatprep.subr.mxu0 0.0
    %2325 = vmatpush2.msra.mxu0 %v353
    %2326 = vmatprep.subr.mxu0 0.0
    %2327 = vmatpush2.msra.mxu0 %v352
    %2328 = vmatprep.subr.mxu0 0.0
    %2329 = vmatpush2.msra.mxu0 %v351
    %2330 = vmatprep.subr.mxu0 0.0
    %2331 = vmatpush2.msra.mxu0 %v350
    %2332 = vmatprep.subr.mxu0 0.0
    %2333 = vmatpush2.msra.mxu0 %v349
    %2334 = vmatprep.subr.mxu0 0.0
    %2335 = vmatpush2.msra.mxu0 %v348
    %2336 = vmatprep.subr.mxu0 0.0
    %2337 = vmatpush2.msra.mxu0 %v347
    %2338 = vmatprep.subr.mxu0 0.0
    %2339 = vmatpush2.msra.mxu0 %v346
    %2340 = vmatprep.mubr.f32.mxu0 %v2265
    %2341 = vmatmul.mubr.f32.gmra.mxu0 %v2256
    %v2342 = vpop.f32.mrf.mxu0
    %v2343 = vadd.f32 0.0, %v2342
    %v2344 = vpop.f32.mrf.mxu0
    %2345 = vmatprep.mubr.f32.mxu0 %v2268
    %2346 = vmatmul.mubr.f32.gmra.mxu0 %v2258
    %v2347 = vpop.f32.mrf.mxu0
    %v2348 = vadd.f32 0.0, %v2347
    %v2349 = vpop.f32.mrf.mxu0
    %2350 = vmatprep.mubr.f32.mxu0 %v2271
    %2351 = vmatmul.mubr.f32.gmra.mxu0 %v2260
    %v2352 = vpop.f32.mrf.mxu0
    %v2353 = vadd.f32 0.0, %v2352
    %v2354 = vpop.f32.mrf.mxu0
    %2355 = vmatprep.mubr.f32.mxu0 %v2274
    %2356 = vmatmul.mubr.f32.gmra.mxu0 %v2262
    %v2357 = vpop.f32.mrf.mxu0
    %v2358 = vadd.f32 0.0, %v2357
    %v2359 = vpop.f32.mrf.mxu0
    %2360 = vdwg.mxu0
    %s2361 = scalar_lea.vmem %s4, 288
    %v2362 = vld [vmem:[%s2361] sm:$0xff]
    %v2363 = vld [vmem:[%s2361 + $0x8] sm:$0xff]
    %v2364 = vld [vmem:[%s2361 + $0x10] sm:$0xff]
    %v2365 = vld [vmem:[%s2361 + $0x18] sm:$0xff]
    %v2367 = vsel %vm576, %v2343, 0
    %v2370 = vsel %vm576, %v2348, 0
    %v2373 = vsel %vm576, %v2353, 0
    %v2376 = vsel %vm576, %v2358, 0
    %2378 = vmatprep.subr.mxu0 0.0
    %2379 = vmatpush1.msra.mxu0 0.0
    %2380 = vmatprep.subr.mxu0 0.0
    %2381 = vmatpush1.msra.mxu0 0.0
    %2382 = vmatprep.subr.mxu0 0.0
    %2383 = vmatpush1.msra.mxu0 0.0
    %2384 = vmatprep.subr.mxu0 0.0
    %2385 = vmatpush1.msra.mxu0 0.0
    %2386 = vmatprep.subr.mxu0 0.0
    %2387 = vmatpush1.msra.mxu0 0.0
    %2388 = vmatprep.subr.mxu0 0.0
    %2389 = vmatpush1.msra.mxu0 0.0
    %2390 = vmatprep.subr.mxu0 0.0
    %2391 = vmatpush1.msra.mxu0 0.0
    %2392 = vmatprep.subr.mxu0 0.0
    %2393 = vmatpush1.msra.mxu0 0.0
    %2394 = vmatprep.subr.mxu0 0.0
    %2395 = vmatpush1.msra.mxu0 0.0
    %2396 = vmatprep.subr.mxu0 0.0
    %2397 = vmatpush1.msra.mxu0 0.0
    %2398 = vmatprep.subr.mxu0 0.0
    %2399 = vmatpush1.msra.mxu0 0.0
    %2400 = vmatprep.subr.mxu0 0.0
    %2401 = vmatpush1.msra.mxu0 0.0
    %2402 = vmatprep.subr.mxu0 0.0
    %2403 = vmatpush1.msra.mxu0 %v2365
    %2404 = vmatprep.subr.mxu0 0.0
    %2405 = vmatpush1.msra.mxu0 %v2364
    %2406 = vmatprep.subr.mxu0 0.0
    %2407 = vmatpush1.msra.mxu0 %v2363
    %2408 = vmatprep.subr.mxu0 0.0
    %2409 = vmatpush1.msra.mxu0 %v2362
    %2410 = vmatprep.subr.mxu0 0.0
    %2411 = vmatpush2.msra.mxu0 0.0
    %2412 = vmatprep.subr.mxu0 0.0
    %2413 = vmatpush2.msra.mxu0 0.0
    %2414 = vmatprep.subr.mxu0 0.0
    %2415 = vmatpush2.msra.mxu0 0.0
    %2416 = vmatprep.subr.mxu0 0.0
    %2417 = vmatpush2.msra.mxu0 0.0
    %2418 = vmatprep.subr.mxu0 0.0
    %2419 = vmatpush2.msra.mxu0 0.0
    %2420 = vmatprep.subr.mxu0 0.0
    %2421 = vmatpush2.msra.mxu0 0.0
    %2422 = vmatprep.subr.mxu0 0.0
    %2423 = vmatpush2.msra.mxu0 0.0
    %2424 = vmatprep.subr.mxu0 0.0
    %2425 = vmatpush2.msra.mxu0 0.0
    %2426 = vmatprep.subr.mxu0 0.0
    %2427 = vmatpush2.msra.mxu0 0.0
    %2428 = vmatprep.subr.mxu0 0.0
    %2429 = vmatpush2.msra.mxu0 0.0
    %2430 = vmatprep.subr.mxu0 0.0
    %2431 = vmatpush2.msra.mxu0 0.0
    %2432 = vmatprep.subr.mxu0 0.0
    %2433 = vmatpush2.msra.mxu0 0.0
    %2434 = vmatprep.subr.mxu0 0.0
    %2435 = vmatpush2.msra.mxu0 0.0
    %2436 = vmatprep.subr.mxu0 0.0
    %2437 = vmatpush2.msra.mxu0 0.0
    %2438 = vmatprep.subr.mxu0 0.0
    %2439 = vmatpush2.msra.mxu0 0.0
    %2440 = vmatprep.subr.mxu0 0.0
    %2441 = vmatpush2.msra.mxu0 0.0
    %2442 = vmatprep.mubr.f32.mxu0 0.0
    %2443 = vmatmul.mubr.f32.gmra.mxu0 %v2367
    %v2444 = vpop.f32.mrf.mxu0
    %v2445 = vadd.f32 0.0, %v2444
    %v2446 = vpop.f32.mrf.mxu0
    %2447 = vmatprep.mubr.f32.mxu0 0.0
    %2448 = vmatmul.mubr.f32.gmra.mxu0 %v2370
    %v2449 = vpop.f32.mrf.mxu0
    %v2450 = vadd.f32 0.0, %v2449
    %v2451 = vpop.f32.mrf.mxu0
    %2452 = vmatprep.mubr.f32.mxu0 0.0
    %2453 = vmatmul.mubr.f32.gmra.mxu0 %v2373
    %v2454 = vpop.f32.mrf.mxu0
    %v2455 = vadd.f32 0.0, %v2454
    %v2456 = vpop.f32.mrf.mxu0
    %2457 = vmatprep.mubr.f32.mxu0 0.0
    %2458 = vmatmul.mubr.f32.gmra.mxu0 %v2376
    %v2459 = vpop.f32.mrf.mxu0
    %v2460 = vadd.f32 0.0, %v2459
    %v2461 = vpop.f32.mrf.mxu0
    %2462 = vdwg.mxu0
    %v2463 = vadd.f32 %v2251, %v2445
    %v2464 = vadd.f32 %v2252, %v2450
    %v2465 = vadd.f32 %v2253, %v2455
    %v2466 = vadd.f32 %v2254, %v2460
    %s2467 = scalar_lea.vmem %s3, 640
    %v2468 = vld [vmem:[%s2467] sm:$0xff]
    %v2469 = vld [vmem:[%s2467 + $0x8] sm:$0xff]
    %v2470 = vld [vmem:[%s2467 + $0x10] sm:$0xff]
    %v2471 = vld [vmem:[%s2467 + $0x18] sm:$0xff]
    %v2472 = vld [vmem:[%s2467 + $0x20] sm:$0xff]
    %v2473 = vld [vmem:[%s2467 + $0x28] sm:$0xff]
    %v2474 = vld [vmem:[%s2467 + $0x30] sm:$0xff]
    %v2475 = vld [vmem:[%s2467 + $0x38] sm:$0xff]
    %v2477 = vsel %vm363, %v2469, 0
    %v2480 = vsel %vm363, %v2471, 0
    %v2483 = vsel %vm363, %v2473, 0
    %v2486 = vsel %vm363, %v2475, 0
    %2488 = vmatprep.subr.mxu0 0.0
    %2489 = vmatpush1.msra.mxu0 %v345
    %2490 = vmatprep.subr.mxu0 0.0
    %2491 = vmatpush1.msra.mxu0 %v344
    %2492 = vmatprep.subr.mxu0 0.0
    %2493 = vmatpush1.msra.mxu0 %v343
    %2494 = vmatprep.subr.mxu0 0.0
    %2495 = vmatpush1.msra.mxu0 %v342
    %2496 = vmatprep.subr.mxu0 0.0
    %2497 = vmatpush1.msra.mxu0 %v341
    %2498 = vmatprep.subr.mxu0 0.0
    %2499 = vmatpush1.msra.mxu0 %v340
    %2500 = vmatprep.subr.mxu0 0.0
    %2501 = vmatpush1.msra.mxu0 %v339
    %2502 = vmatprep.subr.mxu0 0.0
    %2503 = vmatpush1.msra.mxu0 %v338
    %2504 = vmatprep.subr.mxu0 0.0
    %2505 = vmatpush1.msra.mxu0 %v337
    %2506 = vmatprep.subr.mxu0 0.0
    %2507 = vmatpush1.msra.mxu0 %v336
    %2508 = vmatprep.subr.mxu0 0.0
    %2509 = vmatpush1.msra.mxu0 %v335
    %2510 = vmatprep.subr.mxu0 0.0
    %2511 = vmatpush1.msra.mxu0 %v334
    %2512 = vmatprep.subr.mxu0 0.0
    %2513 = vmatpush1.msra.mxu0 %v333
    %2514 = vmatprep.subr.mxu0 0.0
    %2515 = vmatpush1.msra.mxu0 %v332
    %2516 = vmatprep.subr.mxu0 0.0
    %2517 = vmatpush1.msra.mxu0 %v331
    %2518 = vmatprep.subr.mxu0 0.0
    %2519 = vmatpush1.msra.mxu0 %v330
    %2520 = vmatprep.subr.mxu0 0.0
    %2521 = vmatpush2.msra.mxu0 0.0
    %2522 = vmatprep.subr.mxu0 0.0
    %2523 = vmatpush2.msra.mxu0 0.0
    %2524 = vmatprep.subr.mxu0 0.0
    %2525 = vmatpush2.msra.mxu0 0.0
    %2526 = vmatprep.subr.mxu0 0.0
    %2527 = vmatpush2.msra.mxu0 0.0
    %2528 = vmatprep.subr.mxu0 0.0
    %2529 = vmatpush2.msra.mxu0 0.0
    %2530 = vmatprep.subr.mxu0 0.0
    %2531 = vmatpush2.msra.mxu0 0.0
    %2532 = vmatprep.subr.mxu0 0.0
    %2533 = vmatpush2.msra.mxu0 0.0
    %2534 = vmatprep.subr.mxu0 0.0
    %2535 = vmatpush2.msra.mxu0 %v354
    %2536 = vmatprep.subr.mxu0 0.0
    %2537 = vmatpush2.msra.mxu0 %v353
    %2538 = vmatprep.subr.mxu0 0.0
    %2539 = vmatpush2.msra.mxu0 %v352
    %2540 = vmatprep.subr.mxu0 0.0
    %2541 = vmatpush2.msra.mxu0 %v351
    %2542 = vmatprep.subr.mxu0 0.0
    %2543 = vmatpush2.msra.mxu0 %v350
    %2544 = vmatprep.subr.mxu0 0.0
    %2545 = vmatpush2.msra.mxu0 %v349
    %2546 = vmatprep.subr.mxu0 0.0
    %2547 = vmatpush2.msra.mxu0 %v348
    %2548 = vmatprep.subr.mxu0 0.0
    %2549 = vmatpush2.msra.mxu0 %v347
    %2550 = vmatprep.subr.mxu0 0.0
    %2551 = vmatpush2.msra.mxu0 %v346
    %2552 = vmatprep.mubr.f32.mxu0 %v2477
    %2553 = vmatmul.mubr.f32.gmra.mxu0 %v2468
    %v2554 = vpop.f32.mrf.mxu0
    %v2555 = vadd.f32 0.0, %v2554
    %v2556 = vpop.f32.mrf.mxu0
    %2557 = vmatprep.mubr.f32.mxu0 %v2480
    %2558 = vmatmul.mubr.f32.gmra.mxu0 %v2470
    %v2559 = vpop.f32.mrf.mxu0
    %v2560 = vadd.f32 0.0, %v2559
    %v2561 = vpop.f32.mrf.mxu0
    %2562 = vmatprep.mubr.f32.mxu0 %v2483
    %2563 = vmatmul.mubr.f32.gmra.mxu0 %v2472
    %v2564 = vpop.f32.mrf.mxu0
    %v2565 = vadd.f32 0.0, %v2564
    %v2566 = vpop.f32.mrf.mxu0
    %2567 = vmatprep.mubr.f32.mxu0 %v2486
    %2568 = vmatmul.mubr.f32.gmra.mxu0 %v2474
    %v2569 = vpop.f32.mrf.mxu0
    %v2570 = vadd.f32 0.0, %v2569
    %v2571 = vpop.f32.mrf.mxu0
    %2572 = vdwg.mxu0
    %s2573 = scalar_lea.vmem %s4, 320
    %v2574 = vld [vmem:[%s2573] sm:$0xff]
    %v2575 = vld [vmem:[%s2573 + $0x8] sm:$0xff]
    %v2576 = vld [vmem:[%s2573 + $0x10] sm:$0xff]
    %v2577 = vld [vmem:[%s2573 + $0x18] sm:$0xff]
    %v2579 = vsel %vm576, %v2555, 0
    %v2582 = vsel %vm576, %v2560, 0
    %v2585 = vsel %vm576, %v2565, 0
    %v2588 = vsel %vm576, %v2570, 0
    %2590 = vmatprep.subr.mxu0 0.0
    %2591 = vmatpush1.msra.mxu0 0.0
    %2592 = vmatprep.subr.mxu0 0.0
    %2593 = vmatpush1.msra.mxu0 0.0
    %2594 = vmatprep.subr.mxu0 0.0
    %2595 = vmatpush1.msra.mxu0 0.0
    %2596 = vmatprep.subr.mxu0 0.0
    %2597 = vmatpush1.msra.mxu0 0.0
    %2598 = vmatprep.subr.mxu0 0.0
    %2599 = vmatpush1.msra.mxu0 0.0
    %2600 = vmatprep.subr.mxu0 0.0
    %2601 = vmatpush1.msra.mxu0 0.0
    %2602 = vmatprep.subr.mxu0 0.0
    %2603 = vmatpush1.msra.mxu0 0.0
    %2604 = vmatprep.subr.mxu0 0.0
    %2605 = vmatpush1.msra.mxu0 0.0
    %2606 = vmatprep.subr.mxu0 0.0
    %2607 = vmatpush1.msra.mxu0 0.0
    %2608 = vmatprep.subr.mxu0 0.0
    %2609 = vmatpush1.msra.mxu0 0.0
    %2610 = vmatprep.subr.mxu0 0.0
    %2611 = vmatpush1.msra.mxu0 0.0
    %2612 = vmatprep.subr.mxu0 0.0
    %2613 = vmatpush1.msra.mxu0 0.0
    %2614 = vmatprep.subr.mxu0 0.0
    %2615 = vmatpush1.msra.mxu0 %v2577
    %2616 = vmatprep.subr.mxu0 0.0
    %2617 = vmatpush1.msra.mxu0 %v2576
    %2618 = vmatprep.subr.mxu0 0.0
    %2619 = vmatpush1.msra.mxu0 %v2575
    %2620 = vmatprep.subr.mxu0 0.0
    %2621 = vmatpush1.msra.mxu0 %v2574
    %2622 = vmatprep.subr.mxu0 0.0
    %2623 = vmatpush2.msra.mxu0 0.0
    %2624 = vmatprep.subr.mxu0 0.0
    %2625 = vmatpush2.msra.mxu0 0.0
    %2626 = vmatprep.subr.mxu0 0.0
    %2627 = vmatpush2.msra.mxu0 0.0
    %2628 = vmatprep.subr.mxu0 0.0
    %2629 = vmatpush2.msra.mxu0 0.0
    %2630 = vmatprep.subr.mxu0 0.0
    %2631 = vmatpush2.msra.mxu0 0.0
    %2632 = vmatprep.subr.mxu0 0.0
    %2633 = vmatpush2.msra.mxu0 0.0
    %2634 = vmatprep.subr.mxu0 0.0
    %2635 = vmatpush2.msra.mxu0 0.0
    %2636 = vmatprep.subr.mxu0 0.0
    %2637 = vmatpush2.msra.mxu0 0.0
    %2638 = vmatprep.subr.mxu0 0.0
    %2639 = vmatpush2.msra.mxu0 0.0
    %2640 = vmatprep.subr.mxu0 0.0
    %2641 = vmatpush2.msra.mxu0 0.0
    %2642 = vmatprep.subr.mxu0 0.0
    %2643 = vmatpush2.msra.mxu0 0.0
    %2644 = vmatprep.subr.mxu0 0.0
    %2645 = vmatpush2.msra.mxu0 0.0
    %2646 = vmatprep.subr.mxu0 0.0
    %2647 = vmatpush2.msra.mxu0 0.0
    %2648 = vmatprep.subr.mxu0 0.0
    %2649 = vmatpush2.msra.mxu0 0.0
    %2650 = vmatprep.subr.mxu0 0.0
    %2651 = vmatpush2.msra.mxu0 0.0
    %2652 = vmatprep.subr.mxu0 0.0
    %2653 = vmatpush2.msra.mxu0 0.0
    %2654 = vmatprep.mubr.f32.mxu0 0.0
    %2655 = vmatmul.mubr.f32.gmra.mxu0 %v2579
    %v2656 = vpop.f32.mrf.mxu0
    %v2657 = vadd.f32 0.0, %v2656
    %v2658 = vpop.f32.mrf.mxu0
    %2659 = vmatprep.mubr.f32.mxu0 0.0
    %2660 = vmatmul.mubr.f32.gmra.mxu0 %v2582
    %v2661 = vpop.f32.mrf.mxu0
    %v2662 = vadd.f32 0.0, %v2661
    %v2663 = vpop.f32.mrf.mxu0
    %2664 = vmatprep.mubr.f32.mxu0 0.0
    %2665 = vmatmul.mubr.f32.gmra.mxu0 %v2585
    %v2666 = vpop.f32.mrf.mxu0
    %v2667 = vadd.f32 0.0, %v2666
    %v2668 = vpop.f32.mrf.mxu0
    %2669 = vmatprep.mubr.f32.mxu0 0.0
    %2670 = vmatmul.mubr.f32.gmra.mxu0 %v2588
    %v2671 = vpop.f32.mrf.mxu0
    %v2672 = vadd.f32 0.0, %v2671
    %v2673 = vpop.f32.mrf.mxu0
    %2674 = vdwg.mxu0
    %v2675 = vadd.f32 %v2463, %v2657
    %v2676 = vadd.f32 %v2464, %v2662
    %v2677 = vadd.f32 %v2465, %v2667
    %v2678 = vadd.f32 %v2466, %v2672
    %s2679 = scalar_lea.vmem %s3, 704
    %v2680 = vld [vmem:[%s2679] sm:$0xff]
    %v2681 = vld [vmem:[%s2679 + $0x8] sm:$0xff]
    %v2682 = vld [vmem:[%s2679 + $0x10] sm:$0xff]
    %v2683 = vld [vmem:[%s2679 + $0x18] sm:$0xff]
    %v2684 = vld [vmem:[%s2679 + $0x20] sm:$0xff]
    %v2685 = vld [vmem:[%s2679 + $0x28] sm:$0xff]
    %v2686 = vld [vmem:[%s2679 + $0x30] sm:$0xff]
    %v2687 = vld [vmem:[%s2679 + $0x38] sm:$0xff]
    %v2689 = vsel %vm363, %v2681, 0
    %v2692 = vsel %vm363, %v2683, 0
    %v2695 = vsel %vm363, %v2685, 0
    %v2698 = vsel %vm363, %v2687, 0
    %2700 = vmatprep.subr.mxu0 0.0
    %2701 = vmatpush1.msra.mxu0 %v345
    %2702 = vmatprep.subr.mxu0 0.0
    %2703 = vmatpush1.msra.mxu0 %v344
    %2704 = vmatprep.subr.mxu0 0.0
    %2705 = vmatpush1.msra.mxu0 %v343
    %2706 = vmatprep.subr.mxu0 0.0
    %2707 = vmatpush1.msra.mxu0 %v342
    %2708 = vmatprep.subr.mxu0 0.0
    %2709 = vmatpush1.msra.mxu0 %v341
    %2710 = vmatprep.subr.mxu0 0.0
    %2711 = vmatpush1.msra.mxu0 %v340
    %2712 = vmatprep.subr.mxu0 0.0
    %2713 = vmatpush1.msra.mxu0 %v339
    %2714 = vmatprep.subr.mxu0 0.0
    %2715 = vmatpush1.msra.mxu0 %v338
    %2716 = vmatprep.subr.mxu0 0.0
    %2717 = vmatpush1.msra.mxu0 %v337
    %2718 = vmatprep.subr.mxu0 0.0
    %2719 = vmatpush1.msra.mxu0 %v336
    %2720 = vmatprep.subr.mxu0 0.0
    %2721 = vmatpush1.msra.mxu0 %v335
    %2722 = vmatprep.subr.mxu0 0.0
    %2723 = vmatpush1.msra.mxu0 %v334
    %2724 = vmatprep.subr.mxu0 0.0
    %2725 = vmatpush1.msra.mxu0 %v333
    %2726 = vmatprep.subr.mxu0 0.0
    %2727 = vmatpush1.msra.mxu0 %v332
    %2728 = vmatprep.subr.mxu0 0.0
    %2729 = vmatpush1.msra.mxu0 %v331
    %2730 = vmatprep.subr.mxu0 0.0
    %2731 = vmatpush1.msra.mxu0 %v330
    %2732 = vmatprep.subr.mxu0 0.0
    %2733 = vmatpush2.msra.mxu0 0.0
    %2734 = vmatprep.subr.mxu0 0.0
    %2735 = vmatpush2.msra.mxu0 0.0
    %2736 = vmatprep.subr.mxu0 0.0
    %2737 = vmatpush2.msra.mxu0 0.0
    %2738 = vmatprep.subr.mxu0 0.0
    %2739 = vmatpush2.msra.mxu0 0.0
    %2740 = vmatprep.subr.mxu0 0.0
    %2741 = vmatpush2.msra.mxu0 0.0
    %2742 = vmatprep.subr.mxu0 0.0
    %2743 = vmatpush2.msra.mxu0 0.0
    %2744 = vmatprep.subr.mxu0 0.0
    %2745 = vmatpush2.msra.mxu0 0.0
    %2746 = vmatprep.subr.mxu0 0.0
    %2747 = vmatpush2.msra.mxu0 %v354
    %2748 = vmatprep.subr.mxu0 0.0
    %2749 = vmatpush2.msra.mxu0 %v353
    %2750 = vmatprep.subr.mxu0 0.0
    %2751 = vmatpush2.msra.mxu0 %v352
    %2752 = vmatprep.subr.mxu0 0.0
    %2753 = vmatpush2.msra.mxu0 %v351
    %2754 = vmatprep.subr.mxu0 0.0
    %2755 = vmatpush2.msra.mxu0 %v350
    %2756 = vmatprep.subr.mxu0 0.0
    %2757 = vmatpush2.msra.mxu0 %v349
    %2758 = vmatprep.subr.mxu0 0.0
    %2759 = vmatpush2.msra.mxu0 %v348
    %2760 = vmatprep.subr.mxu0 0.0
    %2761 = vmatpush2.msra.mxu0 %v347
    %2762 = vmatprep.subr.mxu0 0.0
    %2763 = vmatpush2.msra.mxu0 %v346
    %2764 = vmatprep.mubr.f32.mxu0 %v2689
    %2765 = vmatmul.mubr.f32.gmra.mxu0 %v2680
    %v2766 = vpop.f32.mrf.mxu0
    %v2767 = vadd.f32 0.0, %v2766
    %v2768 = vpop.f32.mrf.mxu0
    %2769 = vmatprep.mubr.f32.mxu0 %v2692
    %2770 = vmatmul.mubr.f32.gmra.mxu0 %v2682
    %v2771 = vpop.f32.mrf.mxu0
    %v2772 = vadd.f32 0.0, %v2771
    %v2773 = vpop.f32.mrf.mxu0
    %2774 = vmatprep.mubr.f32.mxu0 %v2695
    %2775 = vmatmul.mubr.f32.gmra.mxu0 %v2684
    %v2776 = vpop.f32.mrf.mxu0
    %v2777 = vadd.f32 0.0, %v2776
    %v2778 = vpop.f32.mrf.mxu0
    %2779 = vmatprep.mubr.f32.mxu0 %v2698
    %2780 = vmatmul.mubr.f32.gmra.mxu0 %v2686
    %v2781 = vpop.f32.mrf.mxu0
    %v2782 = vadd.f32 0.0, %v2781
    %v2783 = vpop.f32.mrf.mxu0
    %2784 = vdwg.mxu0
    %s2785 = scalar_lea.vmem %s4, 352
    %v2786 = vld [vmem:[%s2785] sm:$0xff]
    %v2787 = vld [vmem:[%s2785 + $0x8] sm:$0xff]
    %v2788 = vld [vmem:[%s2785 + $0x10] sm:$0xff]
    %v2789 = vld [vmem:[%s2785 + $0x18] sm:$0xff]
    %v2791 = vsel %vm576, %v2767, 0
    %v2794 = vsel %vm576, %v2772, 0
    %v2797 = vsel %vm576, %v2777, 0
    %v2800 = vsel %vm576, %v2782, 0
    %2802 = vmatprep.subr.mxu0 0.0
    %2803 = vmatpush1.msra.mxu0 0.0
    %2804 = vmatprep.subr.mxu0 0.0
    %2805 = vmatpush1.msra.mxu0 0.0
    %2806 = vmatprep.subr.mxu0 0.0
    %2807 = vmatpush1.msra.mxu0 0.0
    %2808 = vmatprep.subr.mxu0 0.0
    %2809 = vmatpush1.msra.mxu0 0.0
    %2810 = vmatprep.subr.mxu0 0.0
    %2811 = vmatpush1.msra.mxu0 0.0
    %2812 = vmatprep.subr.mxu0 0.0
    %2813 = vmatpush1.msra.mxu0 0.0
    %2814 = vmatprep.subr.mxu0 0.0
    %2815 = vmatpush1.msra.mxu0 0.0
    %2816 = vmatprep.subr.mxu0 0.0
    %2817 = vmatpush1.msra.mxu0 0.0
    %2818 = vmatprep.subr.mxu0 0.0
    %2819 = vmatpush1.msra.mxu0 0.0
    %2820 = vmatprep.subr.mxu0 0.0
    %2821 = vmatpush1.msra.mxu0 0.0
    %2822 = vmatprep.subr.mxu0 0.0
    %2823 = vmatpush1.msra.mxu0 0.0
    %2824 = vmatprep.subr.mxu0 0.0
    %2825 = vmatpush1.msra.mxu0 0.0
    %2826 = vmatprep.subr.mxu0 0.0
    %2827 = vmatpush1.msra.mxu0 %v2789
    %2828 = vmatprep.subr.mxu0 0.0
    %2829 = vmatpush1.msra.mxu0 %v2788
    %2830 = vmatprep.subr.mxu0 0.0
    %2831 = vmatpush1.msra.mxu0 %v2787
    %2832 = vmatprep.subr.mxu0 0.0
    %2833 = vmatpush1.msra.mxu0 %v2786
    %2834 = vmatprep.subr.mxu0 0.0
    %2835 = vmatpush2.msra.mxu0 0.0
    %2836 = vmatprep.subr.mxu0 0.0
    %2837 = vmatpush2.msra.mxu0 0.0
    %2838 = vmatprep.subr.mxu0 0.0
    %2839 = vmatpush2.msra.mxu0 0.0
    %2840 = vmatprep.subr.mxu0 0.0
    %2841 = vmatpush2.msra.mxu0 0.0
    %2842 = vmatprep.subr.mxu0 0.0
    %2843 = vmatpush2.msra.mxu0 0.0
    %2844 = vmatprep.subr.mxu0 0.0
    %2845 = vmatpush2.msra.mxu0 0.0
    %2846 = vmatprep.subr.mxu0 0.0
    %2847 = vmatpush2.msra.mxu0 0.0
    %2848 = vmatprep.subr.mxu0 0.0
    %2849 = vmatpush2.msra.mxu0 0.0
    %2850 = vmatprep.subr.mxu0 0.0
    %2851 = vmatpush2.msra.mxu0 0.0
    %2852 = vmatprep.subr.mxu0 0.0
    %2853 = vmatpush2.msra.mxu0 0.0
    %2854 = vmatprep.subr.mxu0 0.0
    %2855 = vmatpush2.msra.mxu0 0.0
    %2856 = vmatprep.subr.mxu0 0.0
    %2857 = vmatpush2.msra.mxu0 0.0
    %2858 = vmatprep.subr.mxu0 0.0
    %2859 = vmatpush2.msra.mxu0 0.0
    %2860 = vmatprep.subr.mxu0 0.0
    %2861 = vmatpush2.msra.mxu0 0.0
    %2862 = vmatprep.subr.mxu0 0.0
    %2863 = vmatpush2.msra.mxu0 0.0
    %2864 = vmatprep.subr.mxu0 0.0
    %2865 = vmatpush2.msra.mxu0 0.0
    %2866 = vmatprep.mubr.f32.mxu0 0.0
    %2867 = vmatmul.mubr.f32.gmra.mxu0 %v2791
    %v2868 = vpop.f32.mrf.mxu0
    %v2869 = vadd.f32 0.0, %v2868
    %v2870 = vpop.f32.mrf.mxu0
    %2871 = vmatprep.mubr.f32.mxu0 0.0
    %2872 = vmatmul.mubr.f32.gmra.mxu0 %v2794
    %v2873 = vpop.f32.mrf.mxu0
    %v2874 = vadd.f32 0.0, %v2873
    %v2875 = vpop.f32.mrf.mxu0
    %2876 = vmatprep.mubr.f32.mxu0 0.0
    %2877 = vmatmul.mubr.f32.gmra.mxu0 %v2797
    %v2878 = vpop.f32.mrf.mxu0
    %v2879 = vadd.f32 0.0, %v2878
    %v2880 = vpop.f32.mrf.mxu0
    %2881 = vmatprep.mubr.f32.mxu0 0.0
    %2882 = vmatmul.mubr.f32.gmra.mxu0 %v2800
    %v2883 = vpop.f32.mrf.mxu0
    %v2884 = vadd.f32 0.0, %v2883
    %v2885 = vpop.f32.mrf.mxu0
    %2886 = vdwg.mxu0
    %v2887 = vadd.f32 %v2675, %v2869
    %v2888 = vadd.f32 %v2676, %v2874
    %v2889 = vadd.f32 %v2677, %v2879
    %v2890 = vadd.f32 %v2678, %v2884
    %s2891 = scalar_lea.vmem %s3, 768
    %v2892 = vld [vmem:[%s2891] sm:$0xff]
    %v2893 = vld [vmem:[%s2891 + $0x8] sm:$0xff]
    %v2894 = vld [vmem:[%s2891 + $0x10] sm:$0xff]
    %v2895 = vld [vmem:[%s2891 + $0x18] sm:$0xff]
    %v2896 = vld [vmem:[%s2891 + $0x20] sm:$0xff]
    %v2897 = vld [vmem:[%s2891 + $0x28] sm:$0xff]
    %v2898 = vld [vmem:[%s2891 + $0x30] sm:$0xff]
    %v2899 = vld [vmem:[%s2891 + $0x38] sm:$0xff]
    %v2901 = vsel %vm363, %v2893, 0
    %v2904 = vsel %vm363, %v2895, 0
    %v2907 = vsel %vm363, %v2897, 0
    %v2910 = vsel %vm363, %v2899, 0
    %2912 = vmatprep.subr.mxu0 0.0
    %2913 = vmatpush1.msra.mxu0 %v345
    %2914 = vmatprep.subr.mxu0 0.0
    %2915 = vmatpush1.msra.mxu0 %v344
    %2916 = vmatprep.subr.mxu0 0.0
    %2917 = vmatpush1.msra.mxu0 %v343
    %2918 = vmatprep.subr.mxu0 0.0
    %2919 = vmatpush1.msra.mxu0 %v342
    %2920 = vmatprep.subr.mxu0 0.0
    %2921 = vmatpush1.msra.mxu0 %v341
    %2922 = vmatprep.subr.mxu0 0.0
    %2923 = vmatpush1.msra.mxu0 %v340
    %2924 = vmatprep.subr.mxu0 0.0
    %2925 = vmatpush1.msra.mxu0 %v339
    %2926 = vmatprep.subr.mxu0 0.0
    %2927 = vmatpush1.msra.mxu0 %v338
    %2928 = vmatprep.subr.mxu0 0.0
    %2929 = vmatpush1.msra.mxu0 %v337
    %2930 = vmatprep.subr.mxu0 0.0
    %2931 = vmatpush1.msra.mxu0 %v336
    %2932 = vmatprep.subr.mxu0 0.0
    %2933 = vmatpush1.msra.mxu0 %v335
    %2934 = vmatprep.subr.mxu0 0.0
    %2935 = vmatpush1.msra.mxu0 %v334
    %2936 = vmatprep.subr.mxu0 0.0
    %2937 = vmatpush1.msra.mxu0 %v333
    %2938 = vmatprep.subr.mxu0 0.0
    %2939 = vmatpush1.msra.mxu0 %v332
    %2940 = vmatprep.subr.mxu0 0.0
    %2941 = vmatpush1.msra.mxu0 %v331
    %2942 = vmatprep.subr.mxu0 0.0
    %2943 = vmatpush1.msra.mxu0 %v330
    %2944 = vmatprep.subr.mxu0 0.0
    %2945 = vmatpush2.msra.mxu0 0.0
    %2946 = vmatprep.subr.mxu0 0.0
    %2947 = vmatpush2.msra.mxu0 0.0
    %2948 = vmatprep.subr.mxu0 0.0
    %2949 = vmatpush2.msra.mxu0 0.0
    %2950 = vmatprep.subr.mxu0 0.0
    %2951 = vmatpush2.msra.mxu0 0.0
    %2952 = vmatprep.subr.mxu0 0.0
    %2953 = vmatpush2.msra.mxu0 0.0
    %2954 = vmatprep.subr.mxu0 0.0
    %2955 = vmatpush2.msra.mxu0 0.0
    %2956 = vmatprep.subr.mxu0 0.0
    %2957 = vmatpush2.msra.mxu0 0.0
    %2958 = vmatprep.subr.mxu0 0.0
    %2959 = vmatpush2.msra.mxu0 %v354
    %2960 = vmatprep.subr.mxu0 0.0
    %2961 = vmatpush2.msra.mxu0 %v353
    %2962 = vmatprep.subr.mxu0 0.0
    %2963 = vmatpush2.msra.mxu0 %v352
    %2964 = vmatprep.subr.mxu0 0.0
    %2965 = vmatpush2.msra.mxu0 %v351
    %2966 = vmatprep.subr.mxu0 0.0
    %2967 = vmatpush2.msra.mxu0 %v350
    %2968 = vmatprep.subr.mxu0 0.0
    %2969 = vmatpush2.msra.mxu0 %v349
    %2970 = vmatprep.subr.mxu0 0.0
    %2971 = vmatpush2.msra.mxu0 %v348
    %2972 = vmatprep.subr.mxu0 0.0
    %2973 = vmatpush2.msra.mxu0 %v347
    %2974 = vmatprep.subr.mxu0 0.0
    %2975 = vmatpush2.msra.mxu0 %v346
    %2976 = vmatprep.mubr.f32.mxu0 %v2901
    %2977 = vmatmul.mubr.f32.gmra.mxu0 %v2892
    %v2978 = vpop.f32.mrf.mxu0
    %v2979 = vadd.f32 0.0, %v2978
    %v2980 = vpop.f32.mrf.mxu0
    %2981 = vmatprep.mubr.f32.mxu0 %v2904
    %2982 = vmatmul.mubr.f32.gmra.mxu0 %v2894
    %v2983 = vpop.f32.mrf.mxu0
    %v2984 = vadd.f32 0.0, %v2983
    %v2985 = vpop.f32.mrf.mxu0
    %2986 = vmatprep.mubr.f32.mxu0 %v2907
    %2987 = vmatmul.mubr.f32.gmra.mxu0 %v2896
    %v2988 = vpop.f32.mrf.mxu0
    %v2989 = vadd.f32 0.0, %v2988
    %v2990 = vpop.f32.mrf.mxu0
    %2991 = vmatprep.mubr.f32.mxu0 %v2910
    %2992 = vmatmul.mubr.f32.gmra.mxu0 %v2898
    %v2993 = vpop.f32.mrf.mxu0
    %v2994 = vadd.f32 0.0, %v2993
    %v2995 = vpop.f32.mrf.mxu0
    %2996 = vdwg.mxu0
    %s2997 = scalar_lea.vmem %s4, 384
    %v2998 = vld [vmem:[%s2997] sm:$0xff]
    %v2999 = vld [vmem:[%s2997 + $0x8] sm:$0xff]
    %v3000 = vld [vmem:[%s2997 + $0x10] sm:$0xff]
    %v3001 = vld [vmem:[%s2997 + $0x18] sm:$0xff]
    %v3003 = vsel %vm576, %v2979, 0
    %v3006 = vsel %vm576, %v2984, 0
    %v3009 = vsel %vm576, %v2989, 0
    %v3012 = vsel %vm576, %v2994, 0
    %3014 = vmatprep.subr.mxu0 0.0
    %3015 = vmatpush1.msra.mxu0 0.0
    %3016 = vmatprep.subr.mxu0 0.0
    %3017 = vmatpush1.msra.mxu0 0.0
    %3018 = vmatprep.subr.mxu0 0.0
    %3019 = vmatpush1.msra.mxu0 0.0
    %3020 = vmatprep.subr.mxu0 0.0
    %3021 = vmatpush1.msra.mxu0 0.0
    %3022 = vmatprep.subr.mxu0 0.0
    %3023 = vmatpush1.msra.mxu0 0.0
    %3024 = vmatprep.subr.mxu0 0.0
    %3025 = vmatpush1.msra.mxu0 0.0
    %3026 = vmatprep.subr.mxu0 0.0
    %3027 = vmatpush1.msra.mxu0 0.0
    %3028 = vmatprep.subr.mxu0 0.0
    %3029 = vmatpush1.msra.mxu0 0.0
    %3030 = vmatprep.subr.mxu0 0.0
    %3031 = vmatpush1.msra.mxu0 0.0
    %3032 = vmatprep.subr.mxu0 0.0
    %3033 = vmatpush1.msra.mxu0 0.0
    %3034 = vmatprep.subr.mxu0 0.0
    %3035 = vmatpush1.msra.mxu0 0.0
    %3036 = vmatprep.subr.mxu0 0.0
    %3037 = vmatpush1.msra.mxu0 0.0
    %3038 = vmatprep.subr.mxu0 0.0
    %3039 = vmatpush1.msra.mxu0 %v3001
    %3040 = vmatprep.subr.mxu0 0.0
    %3041 = vmatpush1.msra.mxu0 %v3000
    %3042 = vmatprep.subr.mxu0 0.0
    %3043 = vmatpush1.msra.mxu0 %v2999
    %3044 = vmatprep.subr.mxu0 0.0
    %3045 = vmatpush1.msra.mxu0 %v2998
    %3046 = vmatprep.subr.mxu0 0.0
    %3047 = vmatpush2.msra.mxu0 0.0
    %3048 = vmatprep.subr.mxu0 0.0
    %3049 = vmatpush2.msra.mxu0 0.0
    %3050 = vmatprep.subr.mxu0 0.0
    %3051 = vmatpush2.msra.mxu0 0.0
    %3052 = vmatprep.subr.mxu0 0.0
    %3053 = vmatpush2.msra.mxu0 0.0
    %3054 = vmatprep.subr.mxu0 0.0
    %3055 = vmatpush2.msra.mxu0 0.0
    %3056 = vmatprep.subr.mxu0 0.0
    %3057 = vmatpush2.msra.mxu0 0.0
    %3058 = vmatprep.subr.mxu0 0.0
    %3059 = vmatpush2.msra.mxu0 0.0
    %3060 = vmatprep.subr.mxu0 0.0
    %3061 = vmatpush2.msra.mxu0 0.0
    %3062 = vmatprep.subr.mxu0 0.0
    %3063 = vmatpush2.msra.mxu0 0.0
    %3064 = vmatprep.subr.mxu0 0.0
    %3065 = vmatpush2.msra.mxu0 0.0
    %3066 = vmatprep.subr.mxu0 0.0
    %3067 = vmatpush2.msra.mxu0 0.0
    %3068 = vmatprep.subr.mxu0 0.0
    %3069 = vmatpush2.msra.mxu0 0.0
    %3070 = vmatprep.subr.mxu0 0.0
    %3071 = vmatpush2.msra.mxu0 0.0
    %3072 = vmatprep.subr.mxu0 0.0
    %3073 = vmatpush2.msra.mxu0 0.0
    %3074 = vmatprep.subr.mxu0 0.0
    %3075 = vmatpush2.msra.mxu0 0.0
    %3076 = vmatprep.subr.mxu0 0.0
    %3077 = vmatpush2.msra.mxu0 0.0
    %3078 = vmatprep.mubr.f32.mxu0 0.0
    %3079 = vmatmul.mubr.f32.gmra.mxu0 %v3003
    %v3080 = vpop.f32.mrf.mxu0
    %v3081 = vadd.f32 0.0, %v3080
    %v3082 = vpop.f32.mrf.mxu0
    %3083 = vmatprep.mubr.f32.mxu0 0.0
    %3084 = vmatmul.mubr.f32.gmra.mxu0 %v3006
    %v3085 = vpop.f32.mrf.mxu0
    %v3086 = vadd.f32 0.0, %v3085
    %v3087 = vpop.f32.mrf.mxu0
    %3088 = vmatprep.mubr.f32.mxu0 0.0
    %3089 = vmatmul.mubr.f32.gmra.mxu0 %v3009
    %v3090 = vpop.f32.mrf.mxu0
    %v3091 = vadd.f32 0.0, %v3090
    %v3092 = vpop.f32.mrf.mxu0
    %3093 = vmatprep.mubr.f32.mxu0 0.0
    %3094 = vmatmul.mubr.f32.gmra.mxu0 %v3012
    %v3095 = vpop.f32.mrf.mxu0
    %v3096 = vadd.f32 0.0, %v3095
    %v3097 = vpop.f32.mrf.mxu0
    %3098 = vdwg.mxu0
    %v3099 = vadd.f32 %v2887, %v3081
    %v3100 = vadd.f32 %v2888, %v3086
    %v3101 = vadd.f32 %v2889, %v3091
    %v3102 = vadd.f32 %v2890, %v3096
    %s3103 = scalar_lea.vmem %s3, 832
    %v3104 = vld [vmem:[%s3103] sm:$0xff]
    %v3105 = vld [vmem:[%s3103 + $0x8] sm:$0xff]
    %v3106 = vld [vmem:[%s3103 + $0x10] sm:$0xff]
    %v3107 = vld [vmem:[%s3103 + $0x18] sm:$0xff]
    %v3108 = vld [vmem:[%s3103 + $0x20] sm:$0xff]
    %v3109 = vld [vmem:[%s3103 + $0x28] sm:$0xff]
    %v3110 = vld [vmem:[%s3103 + $0x30] sm:$0xff]
    %v3111 = vld [vmem:[%s3103 + $0x38] sm:$0xff]
    %v3113 = vsel %vm363, %v3105, 0
    %v3116 = vsel %vm363, %v3107, 0
    %v3119 = vsel %vm363, %v3109, 0
    %v3122 = vsel %vm363, %v3111, 0
    %3124 = vmatprep.subr.mxu0 0.0
    %3125 = vmatpush1.msra.mxu0 %v345
    %3126 = vmatprep.subr.mxu0 0.0
    %3127 = vmatpush1.msra.mxu0 %v344
    %3128 = vmatprep.subr.mxu0 0.0
    %3129 = vmatpush1.msra.mxu0 %v343
    %3130 = vmatprep.subr.mxu0 0.0
    %3131 = vmatpush1.msra.mxu0 %v342
    %3132 = vmatprep.subr.mxu0 0.0
    %3133 = vmatpush1.msra.mxu0 %v341
    %3134 = vmatprep.subr.mxu0 0.0
    %3135 = vmatpush1.msra.mxu0 %v340
    %3136 = vmatprep.subr.mxu0 0.0
    %3137 = vmatpush1.msra.mxu0 %v339
    %3138 = vmatprep.subr.mxu0 0.0
    %3139 = vmatpush1.msra.mxu0 %v338
    %3140 = vmatprep.subr.mxu0 0.0
    %3141 = vmatpush1.msra.mxu0 %v337
    %3142 = vmatprep.subr.mxu0 0.0
    %3143 = vmatpush1.msra.mxu0 %v336
    %3144 = vmatprep.subr.mxu0 0.0
    %3145 = vmatpush1.msra.mxu0 %v335
    %3146 = vmatprep.subr.mxu0 0.0
    %3147 = vmatpush1.msra.mxu0 %v334
    %3148 = vmatprep.subr.mxu0 0.0
    %3149 = vmatpush1.msra.mxu0 %v333
    %3150 = vmatprep.subr.mxu0 0.0
    %3151 = vmatpush1.msra.mxu0 %v332
    %3152 = vmatprep.subr.mxu0 0.0
    %3153 = vmatpush1.msra.mxu0 %v331
    %3154 = vmatprep.subr.mxu0 0.0
    %3155 = vmatpush1.msra.mxu0 %v330
    %3156 = vmatprep.subr.mxu0 0.0
    %3157 = vmatpush2.msra.mxu0 0.0
    %3158 = vmatprep.subr.mxu0 0.0
    %3159 = vmatpush2.msra.mxu0 0.0
    %3160 = vmatprep.subr.mxu0 0.0
    %3161 = vmatpush2.msra.mxu0 0.0
    %3162 = vmatprep.subr.mxu0 0.0
    %3163 = vmatpush2.msra.mxu0 0.0
    %3164 = vmatprep.subr.mxu0 0.0
    %3165 = vmatpush2.msra.mxu0 0.0
    %3166 = vmatprep.subr.mxu0 0.0
    %3167 = vmatpush2.msra.mxu0 0.0
    %3168 = vmatprep.subr.mxu0 0.0
    %3169 = vmatpush2.msra.mxu0 0.0
    %3170 = vmatprep.subr.mxu0 0.0
    %3171 = vmatpush2.msra.mxu0 %v354
    %3172 = vmatprep.subr.mxu0 0.0
    %3173 = vmatpush2.msra.mxu0 %v353
    %3174 = vmatprep.subr.mxu0 0.0
    %3175 = vmatpush2.msra.mxu0 %v352
    %3176 = vmatprep.subr.mxu0 0.0
    %3177 = vmatpush2.msra.mxu0 %v351
    %3178 = vmatprep.subr.mxu0 0.0
    %3179 = vmatpush2.msra.mxu0 %v350
    %3180 = vmatprep.subr.mxu0 0.0
    %3181 = vmatpush2.msra.mxu0 %v349
    %3182 = vmatprep.subr.mxu0 0.0
    %3183 = vmatpush2.msra.mxu0 %v348
    %3184 = vmatprep.subr.mxu0 0.0
    %3185 = vmatpush2.msra.mxu0 %v347
    %3186 = vmatprep.subr.mxu0 0.0
    %3187 = vmatpush2.msra.mxu0 %v346
    %3188 = vmatprep.mubr.f32.mxu0 %v3113
    %3189 = vmatmul.mubr.f32.gmra.mxu0 %v3104
    %v3190 = vpop.f32.mrf.mxu0
    %v3191 = vadd.f32 0.0, %v3190
    %v3192 = vpop.f32.mrf.mxu0
    %3193 = vmatprep.mubr.f32.mxu0 %v3116
    %3194 = vmatmul.mubr.f32.gmra.mxu0 %v3106
    %v3195 = vpop.f32.mrf.mxu0
    %v3196 = vadd.f32 0.0, %v3195
    %v3197 = vpop.f32.mrf.mxu0
    %3198 = vmatprep.mubr.f32.mxu0 %v3119
    %3199 = vmatmul.mubr.f32.gmra.mxu0 %v3108
    %v3200 = vpop.f32.mrf.mxu0
    %v3201 = vadd.f32 0.0, %v3200
    %v3202 = vpop.f32.mrf.mxu0
    %3203 = vmatprep.mubr.f32.mxu0 %v3122
    %3204 = vmatmul.mubr.f32.gmra.mxu0 %v3110
    %v3205 = vpop.f32.mrf.mxu0
    %v3206 = vadd.f32 0.0, %v3205
    %v3207 = vpop.f32.mrf.mxu0
    %3208 = vdwg.mxu0
    %s3209 = scalar_lea.vmem %s4, 416
    %v3210 = vld [vmem:[%s3209] sm:$0xff]
    %v3211 = vld [vmem:[%s3209 + $0x8] sm:$0xff]
    %v3212 = vld [vmem:[%s3209 + $0x10] sm:$0xff]
    %v3213 = vld [vmem:[%s3209 + $0x18] sm:$0xff]
    %v3215 = vsel %vm576, %v3191, 0
    %v3218 = vsel %vm576, %v3196, 0
    %v3221 = vsel %vm576, %v3201, 0
    %v3224 = vsel %vm576, %v3206, 0
    %3226 = vmatprep.subr.mxu0 0.0
    %3227 = vmatpush1.msra.mxu0 0.0
    %3228 = vmatprep.subr.mxu0 0.0
    %3229 = vmatpush1.msra.mxu0 0.0
    %3230 = vmatprep.subr.mxu0 0.0
    %3231 = vmatpush1.msra.mxu0 0.0
    %3232 = vmatprep.subr.mxu0 0.0
    %3233 = vmatpush1.msra.mxu0 0.0
    %3234 = vmatprep.subr.mxu0 0.0
    %3235 = vmatpush1.msra.mxu0 0.0
    %3236 = vmatprep.subr.mxu0 0.0
    %3237 = vmatpush1.msra.mxu0 0.0
    %3238 = vmatprep.subr.mxu0 0.0
    %3239 = vmatpush1.msra.mxu0 0.0
    %3240 = vmatprep.subr.mxu0 0.0
    %3241 = vmatpush1.msra.mxu0 0.0
    %3242 = vmatprep.subr.mxu0 0.0
    %3243 = vmatpush1.msra.mxu0 0.0
    %3244 = vmatprep.subr.mxu0 0.0
    %3245 = vmatpush1.msra.mxu0 0.0
    %3246 = vmatprep.subr.mxu0 0.0
    %3247 = vmatpush1.msra.mxu0 0.0
    %3248 = vmatprep.subr.mxu0 0.0
    %3249 = vmatpush1.msra.mxu0 0.0
    %3250 = vmatprep.subr.mxu0 0.0
    %3251 = vmatpush1.msra.mxu0 %v3213
    %3252 = vmatprep.subr.mxu0 0.0
    %3253 = vmatpush1.msra.mxu0 %v3212
    %3254 = vmatprep.subr.mxu0 0.0
    %3255 = vmatpush1.msra.mxu0 %v3211
    %3256 = vmatprep.subr.mxu0 0.0
    %3257 = vmatpush1.msra.mxu0 %v3210
    %3258 = vmatprep.subr.mxu0 0.0
    %3259 = vmatpush2.msra.mxu0 0.0
    %3260 = vmatprep.subr.mxu0 0.0
    %3261 = vmatpush2.msra.mxu0 0.0
    %3262 = vmatprep.subr.mxu0 0.0
    %3263 = vmatpush2.msra.mxu0 0.0
    %3264 = vmatprep.subr.mxu0 0.0
    %3265 = vmatpush2.msra.mxu0 0.0
    %3266 = vmatprep.subr.mxu0 0.0
    %3267 = vmatpush2.msra.mxu0 0.0
    %3268 = vmatprep.subr.mxu0 0.0
    %3269 = vmatpush2.msra.mxu0 0.0
    %3270 = vmatprep.subr.mxu0 0.0
    %3271 = vmatpush2.msra.mxu0 0.0
    %3272 = vmatprep.subr.mxu0 0.0
    %3273 = vmatpush2.msra.mxu0 0.0
    %3274 = vmatprep.subr.mxu0 0.0
    %3275 = vmatpush2.msra.mxu0 0.0
    %3276 = vmatprep.subr.mxu0 0.0
    %3277 = vmatpush2.msra.mxu0 0.0
    %3278 = vmatprep.subr.mxu0 0.0
    %3279 = vmatpush2.msra.mxu0 0.0
    %3280 = vmatprep.subr.mxu0 0.0
    %3281 = vmatpush2.msra.mxu0 0.0
    %3282 = vmatprep.subr.mxu0 0.0
    %3283 = vmatpush2.msra.mxu0 0.0
    %3284 = vmatprep.subr.mxu0 0.0
    %3285 = vmatpush2.msra.mxu0 0.0
    %3286 = vmatprep.subr.mxu0 0.0
    %3287 = vmatpush2.msra.mxu0 0.0
    %3288 = vmatprep.subr.mxu0 0.0
    %3289 = vmatpush2.msra.mxu0 0.0
    %3290 = vmatprep.mubr.f32.mxu0 0.0
    %3291 = vmatmul.mubr.f32.gmra.mxu0 %v3215
    %v3292 = vpop.f32.mrf.mxu0
    %v3293 = vadd.f32 0.0, %v3292
    %v3294 = vpop.f32.mrf.mxu0
    %3295 = vmatprep.mubr.f32.mxu0 0.0
    %3296 = vmatmul.mubr.f32.gmra.mxu0 %v3218
    %v3297 = vpop.f32.mrf.mxu0
    %v3298 = vadd.f32 0.0, %v3297
    %v3299 = vpop.f32.mrf.mxu0
    %3300 = vmatprep.mubr.f32.mxu0 0.0
    %3301 = vmatmul.mubr.f32.gmra.mxu0 %v3221
    %v3302 = vpop.f32.mrf.mxu0
    %v3303 = vadd.f32 0.0, %v3302
    %v3304 = vpop.f32.mrf.mxu0
    %3305 = vmatprep.mubr.f32.mxu0 0.0
    %3306 = vmatmul.mubr.f32.gmra.mxu0 %v3224
    %v3307 = vpop.f32.mrf.mxu0
    %v3308 = vadd.f32 0.0, %v3307
    %v3309 = vpop.f32.mrf.mxu0
    %3310 = vdwg.mxu0
    %v3311 = vadd.f32 %v3099, %v3293
    %v3312 = vadd.f32 %v3100, %v3298
    %v3313 = vadd.f32 %v3101, %v3303
    %v3314 = vadd.f32 %v3102, %v3308
    %s3315 = scalar_lea.vmem %s3, 896
    %v3316 = vld [vmem:[%s3315] sm:$0xff]
    %v3317 = vld [vmem:[%s3315 + $0x8] sm:$0xff]
    %v3318 = vld [vmem:[%s3315 + $0x10] sm:$0xff]
    %v3319 = vld [vmem:[%s3315 + $0x18] sm:$0xff]
    %v3320 = vld [vmem:[%s3315 + $0x20] sm:$0xff]
    %v3321 = vld [vmem:[%s3315 + $0x28] sm:$0xff]
    %v3322 = vld [vmem:[%s3315 + $0x30] sm:$0xff]
    %v3323 = vld [vmem:[%s3315 + $0x38] sm:$0xff]
    %v3325 = vsel %vm363, %v3317, 0
    %v3328 = vsel %vm363, %v3319, 0
    %v3331 = vsel %vm363, %v3321, 0
    %v3334 = vsel %vm363, %v3323, 0
    %3336 = vmatprep.subr.mxu0 0.0
    %3337 = vmatpush1.msra.mxu0 %v345
    %3338 = vmatprep.subr.mxu0 0.0
    %3339 = vmatpush1.msra.mxu0 %v344
    %3340 = vmatprep.subr.mxu0 0.0
    %3341 = vmatpush1.msra.mxu0 %v343
    %3342 = vmatprep.subr.mxu0 0.0
    %3343 = vmatpush1.msra.mxu0 %v342
    %3344 = vmatprep.subr.mxu0 0.0
    %3345 = vmatpush1.msra.mxu0 %v341
    %3346 = vmatprep.subr.mxu0 0.0
    %3347 = vmatpush1.msra.mxu0 %v340
    %3348 = vmatprep.subr.mxu0 0.0
    %3349 = vmatpush1.msra.mxu0 %v339
    %3350 = vmatprep.subr.mxu0 0.0
    %3351 = vmatpush1.msra.mxu0 %v338
    %3352 = vmatprep.subr.mxu0 0.0
    %3353 = vmatpush1.msra.mxu0 %v337
    %3354 = vmatprep.subr.mxu0 0.0
    %3355 = vmatpush1.msra.mxu0 %v336
    %3356 = vmatprep.subr.mxu0 0.0
    %3357 = vmatpush1.msra.mxu0 %v335
    %3358 = vmatprep.subr.mxu0 0.0
    %3359 = vmatpush1.msra.mxu0 %v334
    %3360 = vmatprep.subr.mxu0 0.0
    %3361 = vmatpush1.msra.mxu0 %v333
    %3362 = vmatprep.subr.mxu0 0.0
    %3363 = vmatpush1.msra.mxu0 %v332
    %3364 = vmatprep.subr.mxu0 0.0
    %3365 = vmatpush1.msra.mxu0 %v331
    %3366 = vmatprep.subr.mxu0 0.0
    %3367 = vmatpush1.msra.mxu0 %v330
    %3368 = vmatprep.subr.mxu0 0.0
    %3369 = vmatpush2.msra.mxu0 0.0
    %3370 = vmatprep.subr.mxu0 0.0
    %3371 = vmatpush2.msra.mxu0 0.0
    %3372 = vmatprep.subr.mxu0 0.0
    %3373 = vmatpush2.msra.mxu0 0.0
    %3374 = vmatprep.subr.mxu0 0.0
    %3375 = vmatpush2.msra.mxu0 0.0
    %3376 = vmatprep.subr.mxu0 0.0
    %3377 = vmatpush2.msra.mxu0 0.0
    %3378 = vmatprep.subr.mxu0 0.0
    %3379 = vmatpush2.msra.mxu0 0.0
    %3380 = vmatprep.subr.mxu0 0.0
    %3381 = vmatpush2.msra.mxu0 0.0
    %3382 = vmatprep.subr.mxu0 0.0
    %3383 = vmatpush2.msra.mxu0 %v354
    %3384 = vmatprep.subr.mxu0 0.0
    %3385 = vmatpush2.msra.mxu0 %v353
    %3386 = vmatprep.subr.mxu0 0.0
    %3387 = vmatpush2.msra.mxu0 %v352
    %3388 = vmatprep.subr.mxu0 0.0
    %3389 = vmatpush2.msra.mxu0 %v351
    %3390 = vmatprep.subr.mxu0 0.0
    %3391 = vmatpush2.msra.mxu0 %v350
    %3392 = vmatprep.subr.mxu0 0.0
    %3393 = vmatpush2.msra.mxu0 %v349
    %3394 = vmatprep.subr.mxu0 0.0
    %3395 = vmatpush2.msra.mxu0 %v348
    %3396 = vmatprep.subr.mxu0 0.0
    %3397 = vmatpush2.msra.mxu0 %v347
    %3398 = vmatprep.subr.mxu0 0.0
    %3399 = vmatpush2.msra.mxu0 %v346
    %3400 = vmatprep.mubr.f32.mxu0 %v3325
    %3401 = vmatmul.mubr.f32.gmra.mxu0 %v3316
    %v3402 = vpop.f32.mrf.mxu0
    %v3403 = vadd.f32 0.0, %v3402
    %v3404 = vpop.f32.mrf.mxu0
    %3405 = vmatprep.mubr.f32.mxu0 %v3328
    %3406 = vmatmul.mubr.f32.gmra.mxu0 %v3318
    %v3407 = vpop.f32.mrf.mxu0
    %v3408 = vadd.f32 0.0, %v3407
    %v3409 = vpop.f32.mrf.mxu0
    %3410 = vmatprep.mubr.f32.mxu0 %v3331
    %3411 = vmatmul.mubr.f32.gmra.mxu0 %v3320
    %v3412 = vpop.f32.mrf.mxu0
    %v3413 = vadd.f32 0.0, %v3412
    %v3414 = vpop.f32.mrf.mxu0
    %3415 = vmatprep.mubr.f32.mxu0 %v3334
    %3416 = vmatmul.mubr.f32.gmra.mxu0 %v3322
    %v3417 = vpop.f32.mrf.mxu0
    %v3418 = vadd.f32 0.0, %v3417
    %v3419 = vpop.f32.mrf.mxu0
    %3420 = vdwg.mxu0
    %s3421 = scalar_lea.vmem %s4, 448
    %v3422 = vld [vmem:[%s3421] sm:$0xff]
    %v3423 = vld [vmem:[%s3421 + $0x8] sm:$0xff]
    %v3424 = vld [vmem:[%s3421 + $0x10] sm:$0xff]
    %v3425 = vld [vmem:[%s3421 + $0x18] sm:$0xff]
    %v3427 = vsel %vm576, %v3403, 0
    %v3430 = vsel %vm576, %v3408, 0
    %v3433 = vsel %vm576, %v3413, 0
    %v3436 = vsel %vm576, %v3418, 0
    %3438 = vmatprep.subr.mxu0 0.0
    %3439 = vmatpush1.msra.mxu0 0.0
    %3440 = vmatprep.subr.mxu0 0.0
    %3441 = vmatpush1.msra.mxu0 0.0
    %3442 = vmatprep.subr.mxu0 0.0
    %3443 = vmatpush1.msra.mxu0 0.0
    %3444 = vmatprep.subr.mxu0 0.0
    %3445 = vmatpush1.msra.mxu0 0.0
    %3446 = vmatprep.subr.mxu0 0.0
    %3447 = vmatpush1.msra.mxu0 0.0
    %3448 = vmatprep.subr.mxu0 0.0
    %3449 = vmatpush1.msra.mxu0 0.0
    %3450 = vmatprep.subr.mxu0 0.0
    %3451 = vmatpush1.msra.mxu0 0.0
    %3452 = vmatprep.subr.mxu0 0.0
    %3453 = vmatpush1.msra.mxu0 0.0
    %3454 = vmatprep.subr.mxu0 0.0
    %3455 = vmatpush1.msra.mxu0 0.0
    %3456 = vmatprep.subr.mxu0 0.0
    %3457 = vmatpush1.msra.mxu0 0.0
    %3458 = vmatprep.subr.mxu0 0.0
    %3459 = vmatpush1.msra.mxu0 0.0
    %3460 = vmatprep.subr.mxu0 0.0
    %3461 = vmatpush1.msra.mxu0 0.0
    %3462 = vmatprep.subr.mxu0 0.0
    %3463 = vmatpush1.msra.mxu0 %v3425
    %3464 = vmatprep.subr.mxu0 0.0
    %3465 = vmatpush1.msra.mxu0 %v3424
    %3466 = vmatprep.subr.mxu0 0.0
    %3467 = vmatpush1.msra.mxu0 %v3423
    %3468 = vmatprep.subr.mxu0 0.0
    %3469 = vmatpush1.msra.mxu0 %v3422
    %3470 = vmatprep.subr.mxu0 0.0
    %3471 = vmatpush2.msra.mxu0 0.0
    %3472 = vmatprep.subr.mxu0 0.0
    %3473 = vmatpush2.msra.mxu0 0.0
    %3474 = vmatprep.subr.mxu0 0.0
    %3475 = vmatpush2.msra.mxu0 0.0
    %3476 = vmatprep.subr.mxu0 0.0
    %3477 = vmatpush2.msra.mxu0 0.0
    %3478 = vmatprep.subr.mxu0 0.0
    %3479 = vmatpush2.msra.mxu0 0.0
    %3480 = vmatprep.subr.mxu0 0.0
    %3481 = vmatpush2.msra.mxu0 0.0
    %3482 = vmatprep.subr.mxu0 0.0
    %3483 = vmatpush2.msra.mxu0 0.0
    %3484 = vmatprep.subr.mxu0 0.0
    %3485 = vmatpush2.msra.mxu0 0.0
    %3486 = vmatprep.subr.mxu0 0.0
    %3487 = vmatpush2.msra.mxu0 0.0
    %3488 = vmatprep.subr.mxu0 0.0
    %3489 = vmatpush2.msra.mxu0 0.0
    %3490 = vmatprep.subr.mxu0 0.0
    %3491 = vmatpush2.msra.mxu0 0.0
    %3492 = vmatprep.subr.mxu0 0.0
    %3493 = vmatpush2.msra.mxu0 0.0
    %3494 = vmatprep.subr.mxu0 0.0
    %3495 = vmatpush2.msra.mxu0 0.0
    %3496 = vmatprep.subr.mxu0 0.0
    %3497 = vmatpush2.msra.mxu0 0.0
    %3498 = vmatprep.subr.mxu0 0.0
    %3499 = vmatpush2.msra.mxu0 0.0
    %3500 = vmatprep.subr.mxu0 0.0
    %3501 = vmatpush2.msra.mxu0 0.0
    %3502 = vmatprep.mubr.f32.mxu0 0.0
    %3503 = vmatmul.mubr.f32.gmra.mxu0 %v3427
    %v3504 = vpop.f32.mrf.mxu0
    %v3505 = vadd.f32 0.0, %v3504
    %v3506 = vpop.f32.mrf.mxu0
    %3507 = vmatprep.mubr.f32.mxu0 0.0
    %3508 = vmatmul.mubr.f32.gmra.mxu0 %v3430
    %v3509 = vpop.f32.mrf.mxu0
    %v3510 = vadd.f32 0.0, %v3509
    %v3511 = vpop.f32.mrf.mxu0
    %3512 = vmatprep.mubr.f32.mxu0 0.0
    %3513 = vmatmul.mubr.f32.gmra.mxu0 %v3433
    %v3514 = vpop.f32.mrf.mxu0
    %v3515 = vadd.f32 0.0, %v3514
    %v3516 = vpop.f32.mrf.mxu0
    %3517 = vmatprep.mubr.f32.mxu0 0.0
    %3518 = vmatmul.mubr.f32.gmra.mxu0 %v3436
    %v3519 = vpop.f32.mrf.mxu0
    %v3520 = vadd.f32 0.0, %v3519
    %v3521 = vpop.f32.mrf.mxu0
    %3522 = vdwg.mxu0
    %v3523 = vadd.f32 %v3311, %v3505
    %v3524 = vadd.f32 %v3312, %v3510
    %v3525 = vadd.f32 %v3313, %v3515
    %v3526 = vadd.f32 %v3314, %v3520
    %s3527 = scalar_lea.vmem %s3, 960
    %v3528 = vld [vmem:[%s3527] sm:$0xff]
    %v3529 = vld [vmem:[%s3527 + $0x8] sm:$0xff]
    %v3530 = vld [vmem:[%s3527 + $0x10] sm:$0xff]
    %v3531 = vld [vmem:[%s3527 + $0x18] sm:$0xff]
    %v3532 = vld [vmem:[%s3527 + $0x20] sm:$0xff]
    %v3533 = vld [vmem:[%s3527 + $0x28] sm:$0xff]
    %v3534 = vld [vmem:[%s3527 + $0x30] sm:$0xff]
    %v3535 = vld [vmem:[%s3527 + $0x38] sm:$0xff]
    %v3537 = vsel %vm363, %v3529, 0
    %v3540 = vsel %vm363, %v3531, 0
    %v3543 = vsel %vm363, %v3533, 0
    %v3546 = vsel %vm363, %v3535, 0
    %3548 = vmatprep.subr.mxu0 0.0
    %3549 = vmatpush1.msra.mxu0 %v345
    %3550 = vmatprep.subr.mxu0 0.0
    %3551 = vmatpush1.msra.mxu0 %v344
    %3552 = vmatprep.subr.mxu0 0.0
    %3553 = vmatpush1.msra.mxu0 %v343
    %3554 = vmatprep.subr.mxu0 0.0
    %3555 = vmatpush1.msra.mxu0 %v342
    %3556 = vmatprep.subr.mxu0 0.0
    %3557 = vmatpush1.msra.mxu0 %v341
    %3558 = vmatprep.subr.mxu0 0.0
    %3559 = vmatpush1.msra.mxu0 %v340
    %3560 = vmatprep.subr.mxu0 0.0
    %3561 = vmatpush1.msra.mxu0 %v339
    %3562 = vmatprep.subr.mxu0 0.0
    %3563 = vmatpush1.msra.mxu0 %v338
    %3564 = vmatprep.subr.mxu0 0.0
    %3565 = vmatpush1.msra.mxu0 %v337
    %3566 = vmatprep.subr.mxu0 0.0
    %3567 = vmatpush1.msra.mxu0 %v336
    %3568 = vmatprep.subr.mxu0 0.0
    %3569 = vmatpush1.msra.mxu0 %v335
    %3570 = vmatprep.subr.mxu0 0.0
    %3571 = vmatpush1.msra.mxu0 %v334
    %3572 = vmatprep.subr.mxu0 0.0
    %3573 = vmatpush1.msra.mxu0 %v333
    %3574 = vmatprep.subr.mxu0 0.0
    %3575 = vmatpush1.msra.mxu0 %v332
    %3576 = vmatprep.subr.mxu0 0.0
    %3577 = vmatpush1.msra.mxu0 %v331
    %3578 = vmatprep.subr.mxu0 0.0
    %3579 = vmatpush1.msra.mxu0 %v330
    %3580 = vmatprep.subr.mxu0 0.0
    %3581 = vmatpush2.msra.mxu0 0.0
    %3582 = vmatprep.subr.mxu0 0.0
    %3583 = vmatpush2.msra.mxu0 0.0
    %3584 = vmatprep.subr.mxu0 0.0
    %3585 = vmatpush2.msra.mxu0 0.0
    %3586 = vmatprep.subr.mxu0 0.0
    %3587 = vmatpush2.msra.mxu0 0.0
    %3588 = vmatprep.subr.mxu0 0.0
    %3589 = vmatpush2.msra.mxu0 0.0
    %3590 = vmatprep.subr.mxu0 0.0
    %3591 = vmatpush2.msra.mxu0 0.0
    %3592 = vmatprep.subr.mxu0 0.0
    %3593 = vmatpush2.msra.mxu0 0.0
    %3594 = vmatprep.subr.mxu0 0.0
    %3595 = vmatpush2.msra.mxu0 %v354
    %3596 = vmatprep.subr.mxu0 0.0
    %3597 = vmatpush2.msra.mxu0 %v353
    %3598 = vmatprep.subr.mxu0 0.0
    %3599 = vmatpush2.msra.mxu0 %v352
    %3600 = vmatprep.subr.mxu0 0.0
    %3601 = vmatpush2.msra.mxu0 %v351
    %3602 = vmatprep.subr.mxu0 0.0
    %3603 = vmatpush2.msra.mxu0 %v350
    %3604 = vmatprep.subr.mxu0 0.0
    %3605 = vmatpush2.msra.mxu0 %v349
    %3606 = vmatprep.subr.mxu0 0.0
    %3607 = vmatpush2.msra.mxu0 %v348
    %3608 = vmatprep.subr.mxu0 0.0
    %3609 = vmatpush2.msra.mxu0 %v347
    %3610 = vmatprep.subr.mxu0 0.0
    %3611 = vmatpush2.msra.mxu0 %v346
    %3612 = vmatprep.mubr.f32.mxu0 %v3537
    %3613 = vmatmul.mubr.f32.gmra.mxu0 %v3528
    %v3614 = vpop.f32.mrf.mxu0
    %v3615 = vadd.f32 0.0, %v3614
    %v3616 = vpop.f32.mrf.mxu0
    %3617 = vmatprep.mubr.f32.mxu0 %v3540
    %3618 = vmatmul.mubr.f32.gmra.mxu0 %v3530
    %v3619 = vpop.f32.mrf.mxu0
    %v3620 = vadd.f32 0.0, %v3619
    %v3621 = vpop.f32.mrf.mxu0
    %3622 = vmatprep.mubr.f32.mxu0 %v3543
    %3623 = vmatmul.mubr.f32.gmra.mxu0 %v3532
    %v3624 = vpop.f32.mrf.mxu0
    %v3625 = vadd.f32 0.0, %v3624
    %v3626 = vpop.f32.mrf.mxu0
    %3627 = vmatprep.mubr.f32.mxu0 %v3546
    %3628 = vmatmul.mubr.f32.gmra.mxu0 %v3534
    %v3629 = vpop.f32.mrf.mxu0
    %v3630 = vadd.f32 0.0, %v3629
    %v3631 = vpop.f32.mrf.mxu0
    %3632 = vdwg.mxu0
    %s3633 = scalar_lea.vmem %s4, 480
    %v3634 = vld [vmem:[%s3633] sm:$0xff]
    %v3635 = vld [vmem:[%s3633 + $0x8] sm:$0xff]
    %v3636 = vld [vmem:[%s3633 + $0x10] sm:$0xff]
    %v3637 = vld [vmem:[%s3633 + $0x18] sm:$0xff]
    %v3639 = vsel %vm576, %v3615, 0
    %v3642 = vsel %vm576, %v3620, 0
    %v3645 = vsel %vm576, %v3625, 0
    %v3648 = vsel %vm576, %v3630, 0
    %3650 = vmatprep.subr.mxu0 0.0
    %3651 = vmatpush1.msra.mxu0 0.0
    %3652 = vmatprep.subr.mxu0 0.0
    %3653 = vmatpush1.msra.mxu0 0.0
    %3654 = vmatprep.subr.mxu0 0.0
    %3655 = vmatpush1.msra.mxu0 0.0
    %3656 = vmatprep.subr.mxu0 0.0
    %3657 = vmatpush1.msra.mxu0 0.0
    %3658 = vmatprep.subr.mxu0 0.0
    %3659 = vmatpush1.msra.mxu0 0.0
    %3660 = vmatprep.subr.mxu0 0.0
    %3661 = vmatpush1.msra.mxu0 0.0
    %3662 = vmatprep.subr.mxu0 0.0
    %3663 = vmatpush1.msra.mxu0 0.0
    %3664 = vmatprep.subr.mxu0 0.0
    %3665 = vmatpush1.msra.mxu0 0.0
    %3666 = vmatprep.subr.mxu0 0.0
    %3667 = vmatpush1.msra.mxu0 0.0
    %3668 = vmatprep.subr.mxu0 0.0
    %3669 = vmatpush1.msra.mxu0 0.0
    %3670 = vmatprep.subr.mxu0 0.0
    %3671 = vmatpush1.msra.mxu0 0.0
    %3672 = vmatprep.subr.mxu0 0.0
    %3673 = vmatpush1.msra.mxu0 0.0
    %3674 = vmatprep.subr.mxu0 0.0
    %3675 = vmatpush1.msra.mxu0 %v3637
    %3676 = vmatprep.subr.mxu0 0.0
    %3677 = vmatpush1.msra.mxu0 %v3636
    %3678 = vmatprep.subr.mxu0 0.0
    %3679 = vmatpush1.msra.mxu0 %v3635
    %3680 = vmatprep.subr.mxu0 0.0
    %3681 = vmatpush1.msra.mxu0 %v3634
    %3682 = vmatprep.subr.mxu0 0.0
    %3683 = vmatpush2.msra.mxu0 0.0
    %3684 = vmatprep.subr.mxu0 0.0
    %3685 = vmatpush2.msra.mxu0 0.0
    %3686 = vmatprep.subr.mxu0 0.0
    %3687 = vmatpush2.msra.mxu0 0.0
    %3688 = vmatprep.subr.mxu0 0.0
    %3689 = vmatpush2.msra.mxu0 0.0
    %3690 = vmatprep.subr.mxu0 0.0
    %3691 = vmatpush2.msra.mxu0 0.0
    %3692 = vmatprep.subr.mxu0 0.0
    %3693 = vmatpush2.msra.mxu0 0.0
    %3694 = vmatprep.subr.mxu0 0.0
    %3695 = vmatpush2.msra.mxu0 0.0
    %3696 = vmatprep.subr.mxu0 0.0
    %3697 = vmatpush2.msra.mxu0 0.0
    %3698 = vmatprep.subr.mxu0 0.0
    %3699 = vmatpush2.msra.mxu0 0.0
    %3700 = vmatprep.subr.mxu0 0.0
    %3701 = vmatpush2.msra.mxu0 0.0
    %3702 = vmatprep.subr.mxu0 0.0
    %3703 = vmatpush2.msra.mxu0 0.0
    %3704 = vmatprep.subr.mxu0 0.0
    %3705 = vmatpush2.msra.mxu0 0.0
    %3706 = vmatprep.subr.mxu0 0.0
    %3707 = vmatpush2.msra.mxu0 0.0
    %3708 = vmatprep.subr.mxu0 0.0
    %3709 = vmatpush2.msra.mxu0 0.0
    %3710 = vmatprep.subr.mxu0 0.0
    %3711 = vmatpush2.msra.mxu0 0.0
    %3712 = vmatprep.subr.mxu0 0.0
    %3713 = vmatpush2.msra.mxu0 0.0
    %3714 = vmatprep.mubr.f32.mxu0 0.0
    %3715 = vmatmul.mubr.f32.gmra.mxu0 %v3639
    %v3716 = vpop.f32.mrf.mxu0
    %v3717 = vadd.f32 0.0, %v3716
    %v3718 = vpop.f32.mrf.mxu0
    %3719 = vmatprep.mubr.f32.mxu0 0.0
    %3720 = vmatmul.mubr.f32.gmra.mxu0 %v3642
    %v3721 = vpop.f32.mrf.mxu0
    %v3722 = vadd.f32 0.0, %v3721
    %v3723 = vpop.f32.mrf.mxu0
    %3724 = vmatprep.mubr.f32.mxu0 0.0
    %3725 = vmatmul.mubr.f32.gmra.mxu0 %v3645
    %v3726 = vpop.f32.mrf.mxu0
    %v3727 = vadd.f32 0.0, %v3726
    %v3728 = vpop.f32.mrf.mxu0
    %3729 = vmatprep.mubr.f32.mxu0 0.0
    %3730 = vmatmul.mubr.f32.gmra.mxu0 %v3648
    %v3731 = vpop.f32.mrf.mxu0
    %v3732 = vadd.f32 0.0, %v3731
    %v3733 = vpop.f32.mrf.mxu0
    %3734 = vdwg.mxu0
    %v3735 = vadd.f32 %v3523, %v3717
    %v3736 = vadd.f32 %v3524, %v3722
    %v3737 = vadd.f32 %v3525, %v3727
    %v3738 = vadd.f32 %v3526, %v3732
    %v3739 = vld [vmem:[%s5] sm:$0x1]
    %v3741 = vlaneseq
    %v3742 = vshrl.u32 %v3741, 7
    %v3743 = vsub.s32 0, %v3742
    %v3744 = vrot.slane %v3739, %v3743
    %v3746 = vadd.f32 %v3735, %v3744
    %v3747 = vadd.f32 %v3736, %v3744
    %v3748 = vadd.f32 %v3737, %v3744
    %v3749 = vadd.f32 %v3738, %v3744
    %v3750 = vmax.f32 %v3746, 0.0
    %v3751 = vmax.f32 %v3747, 0.0
    %v3752 = vmax.f32 %v3748, 0.0
    %v3753 = vmax.f32 %v3749, 0.0
    %v3754 = vld [vmem:[%s6] sm:$0xff]
    %v3756 = vsel %vm576, %v3754, 0
    %3758 = vmatprep.subr.mxu0 0.0
    %3759 = vmatpush1.msra.mxu0 0.0
    %3760 = vmatprep.subr.mxu0 0.0
    %3761 = vmatpush1.msra.mxu0 0.0
    %3762 = vmatprep.subr.mxu0 0.0
    %3763 = vmatpush1.msra.mxu0 0.0
    %3764 = vmatprep.subr.mxu0 0.0
    %3765 = vmatpush1.msra.mxu0 0.0
    %3766 = vmatprep.subr.mxu0 0.0
    %3767 = vmatpush1.msra.mxu0 0.0
    %3768 = vmatprep.subr.mxu0 0.0
    %3769 = vmatpush1.msra.mxu0 0.0
    %3770 = vmatprep.subr.mxu0 0.0
    %3771 = vmatpush1.msra.mxu0 0.0
    %3772 = vmatprep.subr.mxu0 0.0
    %3773 = vmatpush1.msra.mxu0 0.0
    %3774 = vmatprep.subr.mxu0 0.0
    %3775 = vmatpush1.msra.mxu0 0.0
    %3776 = vmatprep.subr.mxu0 0.0
    %3777 = vmatpush1.msra.mxu0 0.0
    %3778 = vmatprep.subr.mxu0 0.0
    %3779 = vmatpush1.msra.mxu0 0.0
    %3780 = vmatprep.subr.mxu0 0.0
    %3781 = vmatpush1.msra.mxu0 0.0
    %3782 = vmatprep.subr.mxu0 0.0
    %3783 = vmatpush1.msra.mxu0 %v3753
    %3784 = vmatprep.subr.mxu0 0.0
    %3785 = vmatpush1.msra.mxu0 %v3752
    %3786 = vmatprep.subr.mxu0 0.0
    %3787 = vmatpush1.msra.mxu0 %v3751
    %3788 = vmatprep.subr.mxu0 0.0
    %3789 = vmatpush1.msra.mxu0 %v3750
    %3790 = vmatprep.subr.mxu0 0.0
    %3791 = vmatpush2.msra.mxu0 0.0
    %3792 = vmatprep.subr.mxu0 0.0
    %3793 = vmatpush2.msra.mxu0 0.0
    %3794 = vmatprep.subr.mxu0 0.0
    %3795 = vmatpush2.msra.mxu0 0.0
    %3796 = vmatprep.subr.mxu0 0.0
    %3797 = vmatpush2.msra.mxu0 0.0
    %3798 = vmatprep.subr.mxu0 0.0
    %3799 = vmatpush2.msra.mxu0 0.0
    %3800 = vmatprep.subr.mxu0 0.0
    %3801 = vmatpush2.msra.mxu0 0.0
    %3802 = vmatprep.subr.mxu0 0.0
    %3803 = vmatpush2.msra.mxu0 0.0
    %3804 = vmatprep.subr.mxu0 0.0
    %3805 = vmatpush2.msra.mxu0 0.0
    %3806 = vmatprep.subr.mxu0 0.0
    %3807 = vmatpush2.msra.mxu0 0.0
    %3808 = vmatprep.subr.mxu0 0.0
    %3809 = vmatpush2.msra.mxu0 0.0
    %3810 = vmatprep.subr.mxu0 0.0
    %3811 = vmatpush2.msra.mxu0 0.0
    %3812 = vmatprep.subr.mxu0 0.0
    %3813 = vmatpush2.msra.mxu0 0.0
    %3814 = vmatprep.subr.mxu0 0.0
    %3815 = vmatpush2.msra.mxu0 0.0
    %3816 = vmatprep.subr.mxu0 0.0
    %3817 = vmatpush2.msra.mxu0 0.0
    %3818 = vmatprep.subr.mxu0 0.0
    %3819 = vmatpush2.msra.mxu0 0.0
    %3820 = vmatprep.subr.mxu0 0.0
    %3821 = vmatpush2.msra.mxu0 0.0
    %3822 = vmatprep.mubr.f32.mxu0 0.0
    %3823 = vmatmul.mubr.f32.gmra.mxu0 %v3756
    %v3824 = vpop.f32.mrf.mxu0
    %v3825 = vadd.f32 0.0, %v3824
    %v3826 = vpop.f32.mrf.mxu0
    %3827 = vdwg.mxu0
    %v3828 = vld [vmem:[%s7] sm:$0xff]
    %v3829 = vld [vmem:[%s7 + $0x8] sm:$0xff]
    %v3830 = vld [vmem:[%s7 + $0x10] sm:$0xff]
    %v3831 = vld [vmem:[%s7 + $0x18] sm:$0xff]
    %v3832 = vld [vmem:[%s7 + $0x20] sm:$0xff]
    %v3833 = vld [vmem:[%s7 + $0x28] sm:$0xff]
    %v3834 = vld [vmem:[%s7 + $0x30] sm:$0xff]
    %v3835 = vld [vmem:[%s7 + $0x38] sm:$0xff]
    %s3836 = scalar_lea.vmem %s6, 8
    %v3837 = vld [vmem:[%s3836] sm:$0xff]
    %v3839 = vsel %vm576, %v3837, 0
    %3841 = vmatprep.subr.mxu0 0.0
    %3842 = vmatpush1.msra.mxu0 0.0
    %3843 = vmatprep.subr.mxu0 0.0
    %3844 = vmatpush1.msra.mxu0 0.0
    %3845 = vmatprep.subr.mxu0 0.0
    %3846 = vmatpush1.msra.mxu0 0.0
    %3847 = vmatprep.subr.mxu0 0.0
    %3848 = vmatpush1.msra.mxu0 0.0
    %3849 = vmatprep.subr.mxu0 0.0
    %3850 = vmatpush1.msra.mxu0 0.0
    %3851 = vmatprep.subr.mxu0 0.0
    %3852 = vmatpush1.msra.mxu0 0.0
    %3853 = vmatprep.subr.mxu0 0.0
    %3854 = vmatpush1.msra.mxu0 0.0
    %3855 = vmatprep.subr.mxu0 0.0
    %3856 = vmatpush1.msra.mxu0 0.0
    %3857 = vmatprep.subr.mxu0 0.0
    %3858 = vmatpush1.msra.mxu0 0.0
    %3859 = vmatprep.subr.mxu0 0.0
    %3860 = vmatpush1.msra.mxu0 0.0
    %3861 = vmatprep.subr.mxu0 0.0
    %3862 = vmatpush1.msra.mxu0 0.0
    %3863 = vmatprep.subr.mxu0 0.0
    %3864 = vmatpush1.msra.mxu0 0.0
    %3865 = vmatprep.subr.mxu0 0.0
    %3866 = vmatpush1.msra.mxu0 %v3753
    %3867 = vmatprep.subr.mxu0 0.0
    %3868 = vmatpush1.msra.mxu0 %v3752
    %3869 = vmatprep.subr.mxu0 0.0
    %3870 = vmatpush1.msra.mxu0 %v3751
    %3871 = vmatprep.subr.mxu0 0.0
    %3872 = vmatpush1.msra.mxu0 %v3750
    %3873 = vmatprep.subr.mxu0 0.0
    %3874 = vmatpush2.msra.mxu0 0.0
    %3875 = vmatprep.subr.mxu0 0.0
    %3876 = vmatpush2.msra.mxu0 0.0
    %3877 = vmatprep.subr.mxu0 0.0
    %3878 = vmatpush2.msra.mxu0 0.0
    %3879 = vmatprep.subr.mxu0 0.0
    %3880 = vmatpush2.msra.mxu0 0.0
    %3881 = vmatprep.subr.mxu0 0.0
    %3882 = vmatpush2.msra.mxu0 0.0
    %3883 = vmatprep.subr.mxu0 0.0
    %3884 = vmatpush2.msra.mxu0 0.0
    %3885 = vmatprep.subr.mxu0 0.0
    %3886 = vmatpush2.msra.mxu0 0.0
    %3887 = vmatprep.subr.mxu0 0.0
    %3888 = vmatpush2.msra.mxu0 0.0
    %3889 = vmatprep.subr.mxu0 0.0
    %3890 = vmatpush2.msra.mxu0 0.0
    %3891 = vmatprep.subr.mxu0 0.0
    %3892 = vmatpush2.msra.mxu0 0.0
    %3893 = vmatprep.subr.mxu0 0.0
    %3894 = vmatpush2.msra.mxu0 0.0
    %3895 = vmatprep.subr.mxu0 0.0
    %3896 = vmatpush2.msra.mxu0 0.0
    %3897 = vmatprep.subr.mxu0 0.0
    %3898 = vmatpush2.msra.mxu0 0.0
    %3899 = vmatprep.subr.mxu0 0.0
    %3900 = vmatpush2.msra.mxu0 0.0
    %3901 = vmatprep.subr.mxu0 0.0
    %3902 = vmatpush2.msra.mxu0 0.0
    %3903 = vmatprep.subr.mxu0 0.0
    %3904 = vmatpush2.msra.mxu0 0.0
    %3905 = vmatprep.mubr.f32.mxu0 0.0
    %3906 = vmatmul.mubr.f32.gmra.mxu0 %v3839
    %v3907 = vpop.f32.mrf.mxu0
    %v3908 = vadd.f32 0.0, %v3907
    %v3909 = vpop.f32.mrf.mxu0
    %3910 = vdwg.mxu0
    %s3911 = scalar_lea.vmem %s7, 64
    %v3912 = vld [vmem:[%s3911] sm:$0xff]
    %v3913 = vld [vmem:[%s3911 + $0x8] sm:$0xff]
    %v3914 = vld [vmem:[%s3911 + $0x10] sm:$0xff]
    %v3915 = vld [vmem:[%s3911 + $0x18] sm:$0xff]
    %v3916 = vld [vmem:[%s3911 + $0x20] sm:$0xff]
    %v3917 = vld [vmem:[%s3911 + $0x28] sm:$0xff]
    %v3918 = vld [vmem:[%s3911 + $0x30] sm:$0xff]
    %v3919 = vld [vmem:[%s3911 + $0x38] sm:$0xff]
    %vm3920 = vcmask 523264
    %v3922 = vsel %vm3920, %v3908, 0
    %3924 = vmatprep.subr.mxu0 0.0
    %3925 = vmatpush1.msra.mxu0 0.0
    %3926 = vmatprep.subr.mxu0 0.0
    %3927 = vmatpush1.msra.mxu0 0.0
    %3928 = vmatprep.subr.mxu0 0.0
    %3929 = vmatpush1.msra.mxu0 0.0
    %3930 = vmatprep.subr.mxu0 0.0
    %3931 = vmatpush1.msra.mxu0 0.0
    %3932 = vmatprep.subr.mxu0 0.0
    %3933 = vmatpush1.msra.mxu0 0.0
    %3934 = vmatprep.subr.mxu0 0.0
    %3935 = vmatpush1.msra.mxu0 0.0
    %3936 = vmatprep.subr.mxu0 0.0
    %3937 = vmatpush1.msra.mxu0 0.0
    %3938 = vmatprep.subr.mxu0 0.0
    %3939 = vmatpush1.msra.mxu0 0.0
    %3940 = vmatprep.subr.mxu0 0.0
    %3941 = vmatpush1.msra.mxu0 %v3919
    %3942 = vmatprep.subr.mxu0 0.0
    %3943 = vmatpush1.msra.mxu0 %v3918
    %3944 = vmatprep.subr.mxu0 0.0
    %3945 = vmatpush1.msra.mxu0 %v3917
    %3946 = vmatprep.subr.mxu0 0.0
    %3947 = vmatpush1.msra.mxu0 %v3916
    %3948 = vmatprep.subr.mxu0 0.0
    %3949 = vmatpush1.msra.mxu0 %v3915
    %3950 = vmatprep.subr.mxu0 0.0
    %3951 = vmatpush1.msra.mxu0 %v3914
    %3952 = vmatprep.subr.mxu0 0.0
    %3953 = vmatpush1.msra.mxu0 %v3913
    %3954 = vmatprep.subr.mxu0 0.0
    %3955 = vmatpush1.msra.mxu0 %v3912
    %3956 = vmatprep.subr.mxu0 0.0
    %3957 = vmatpush2.msra.mxu0 0.0
    %3958 = vmatprep.subr.mxu0 0.0
    %3959 = vmatpush2.msra.mxu0 0.0
    %3960 = vmatprep.subr.mxu0 0.0
    %3961 = vmatpush2.msra.mxu0 0.0
    %3962 = vmatprep.subr.mxu0 0.0
    %3963 = vmatpush2.msra.mxu0 0.0
    %3964 = vmatprep.subr.mxu0 0.0
    %3965 = vmatpush2.msra.mxu0 0.0
    %3966 = vmatprep.subr.mxu0 0.0
    %3967 = vmatpush2.msra.mxu0 0.0
    %3968 = vmatprep.subr.mxu0 0.0
    %3969 = vmatpush2.msra.mxu0 0.0
    %3970 = vmatprep.subr.mxu0 0.0
    %3971 = vmatpush2.msra.mxu0 0.0
    %3972 = vmatprep.subr.mxu0 0.0
    %3973 = vmatpush2.msra.mxu0 0.0
    %3974 = vmatprep.subr.mxu0 0.0
    %3975 = vmatpush2.msra.mxu0 0.0
    %3976 = vmatprep.subr.mxu0 0.0
    %3977 = vmatpush2.msra.mxu0 0.0
    %3978 = vmatprep.subr.mxu0 0.0
    %3979 = vmatpush2.msra.mxu0 0.0
    %3980 = vmatprep.subr.mxu0 0.0
    %3981 = vmatpush2.msra.mxu0 0.0
    %3982 = vmatprep.subr.mxu0 0.0
    %3983 = vmatpush2.msra.mxu0 0.0
    %3984 = vmatprep.subr.mxu0 0.0
    %3985 = vmatpush2.msra.mxu0 0.0
    %3986 = vmatprep.subr.mxu0 0.0
    %3987 = vmatpush2.msra.mxu0 0.0
    %3988 = vmatprep.mubr.f32.mxu0 0.0
    %3989 = vmatmul.mubr.f32.gmra.mxu0 %v3922
    %v3990 = vpop.f32.mrf.mxu0
    %v3991 = vadd.f32 0.0, %v3990
    %v3992 = vpop.f32.mrf.mxu0
    %3993 = vdwg.mxu0
    %v3995 = vsel %vm3920, %v3825, 0
    %3997 = vmatprep.subr.mxu0 0.0
    %3998 = vmatpush1.msra.mxu0 0.0
    %3999 = vmatprep.subr.mxu0 0.0
    %4000 = vmatpush1.msra.mxu0 0.0
    %4001 = vmatprep.subr.mxu0 0.0
    %4002 = vmatpush1.msra.mxu0 0.0
    %4003 = vmatprep.subr.mxu0 0.0
    %4004 = vmatpush1.msra.mxu0 0.0
    %4005 = vmatprep.subr.mxu0 0.0
    %4006 = vmatpush1.msra.mxu0 0.0
    %4007 = vmatprep.subr.mxu0 0.0
    %4008 = vmatpush1.msra.mxu0 0.0
    %4009 = vmatprep.subr.mxu0 0.0
    %4010 = vmatpush1.msra.mxu0 0.0
    %4011 = vmatprep.subr.mxu0 0.0
    %4012 = vmatpush1.msra.mxu0 0.0
    %4013 = vmatprep.subr.mxu0 0.0
    %4014 = vmatpush1.msra.mxu0 %v3835
    %4015 = vmatprep.subr.mxu0 0.0
    %4016 = vmatpush1.msra.mxu0 %v3834
    %4017 = vmatprep.subr.mxu0 0.0
    %4018 = vmatpush1.msra.mxu0 %v3833
    %4019 = vmatprep.subr.mxu0 0.0
    %4020 = vmatpush1.msra.mxu0 %v3832
    %4021 = vmatprep.subr.mxu0 0.0
    %4022 = vmatpush1.msra.mxu0 %v3831
    %4023 = vmatprep.subr.mxu0 0.0
    %4024 = vmatpush1.msra.mxu0 %v3830
    %4025 = vmatprep.subr.mxu0 0.0
    %4026 = vmatpush1.msra.mxu0 %v3829
    %4027 = vmatprep.subr.mxu0 0.0
    %4028 = vmatpush1.msra.mxu0 %v3828
    %4029 = vmatprep.subr.mxu0 0.0
    %4030 = vmatpush2.msra.mxu0 0.0
    %4031 = vmatprep.subr.mxu0 0.0
    %4032 = vmatpush2.msra.mxu0 0.0
    %4033 = vmatprep.subr.mxu0 0.0
    %4034 = vmatpush2.msra.mxu0 0.0
    %4035 = vmatprep.subr.mxu0 0.0
    %4036 = vmatpush2.msra.mxu0 0.0
    %4037 = vmatprep.subr.mxu0 0.0
    %4038 = vmatpush2.msra.mxu0 0.0
    %4039 = vmatprep.subr.mxu0 0.0
    %4040 = vmatpush2.msra.mxu0 0.0
    %4041 = vmatprep.subr.mxu0 0.0
    %4042 = vmatpush2.msra.mxu0 0.0
    %4043 = vmatprep.subr.mxu0 0.0
    %4044 = vmatpush2.msra.mxu0 0.0
    %4045 = vmatprep.subr.mxu0 0.0
    %4046 = vmatpush2.msra.mxu0 0.0
    %4047 = vmatprep.subr.mxu0 0.0
    %4048 = vmatpush2.msra.mxu0 0.0
    %4049 = vmatprep.subr.mxu0 0.0
    %4050 = vmatpush2.msra.mxu0 0.0
    %4051 = vmatprep.subr.mxu0 0.0
    %4052 = vmatpush2.msra.mxu0 0.0
    %4053 = vmatprep.subr.mxu0 0.0
    %4054 = vmatpush2.msra.mxu0 0.0
    %4055 = vmatprep.subr.mxu0 0.0
    %4056 = vmatpush2.msra.mxu0 0.0
    %4057 = vmatprep.subr.mxu0 0.0
    %4058 = vmatpush2.msra.mxu0 0.0
    %4059 = vmatprep.subr.mxu0 0.0
    %4060 = vmatpush2.msra.mxu0 0.0
    %4061 = vmatprep.mubr.f32.mxu0 0.0
    %4062 = vmatmul.mubr.f32.gmra.mxu0 %v3995
    %v4063 = vpop.f32.mrf.mxu0
    %v4064 = vadd.f32 %v3991, %v4063
    %v4065 = vpop.f32.mrf.mxu0
    %4066 = vdwg.mxu0
    %s4067 = scalar_lea.vmem %s6, 16
    %v4068 = vld [vmem:[%s4067] sm:$0xff]
    %v4070 = vsel %vm576, %v4068, 0
    %4072 = vmatprep.subr.mxu0 0.0
    %4073 = vmatpush1.msra.mxu0 0.0
    %4074 = vmatprep.subr.mxu0 0.0
    %4075 = vmatpush1.msra.mxu0 0.0
    %4076 = vmatprep.subr.mxu0 0.0
    %4077 = vmatpush1.msra.mxu0 0.0
    %4078 = vmatprep.subr.mxu0 0.0
    %4079 = vmatpush1.msra.mxu0 0.0
    %4080 = vmatprep.subr.mxu0 0.0
    %4081 = vmatpush1.msra.mxu0 0.0
    %4082 = vmatprep.subr.mxu0 0.0
    %4083 = vmatpush1.msra.mxu0 0.0
    %4084 = vmatprep.subr.mxu0 0.0
    %4085 = vmatpush1.msra.mxu0 0.0
    %4086 = vmatprep.subr.mxu0 0.0
    %4087 = vmatpush1.msra.mxu0 0.0
    %4088 = vmatprep.subr.mxu0 0.0
    %4089 = vmatpush1.msra.mxu0 0.0
    %4090 = vmatprep.subr.mxu0 0.0
    %4091 = vmatpush1.msra.mxu0 0.0
    %4092 = vmatprep.subr.mxu0 0.0
    %4093 = vmatpush1.msra.mxu0 0.0
    %4094 = vmatprep.subr.mxu0 0.0
    %4095 = vmatpush1.msra.mxu0 0.0
    %4096 = vmatprep.subr.mxu0 0.0
    %4097 = vmatpush1.msra.mxu0 %v3753
    %4098 = vmatprep.subr.mxu0 0.0
    %4099 = vmatpush1.msra.mxu0 %v3752
    %4100 = vmatprep.subr.mxu0 0.0
    %4101 = vmatpush1.msra.mxu0 %v3751
    %4102 = vmatprep.subr.mxu0 0.0
    %4103 = vmatpush1.msra.mxu0 %v3750
    %4104 = vmatprep.subr.mxu0 0.0
    %4105 = vmatpush2.msra.mxu0 0.0
    %4106 = vmatprep.subr.mxu0 0.0
    %4107 = vmatpush2.msra.mxu0 0.0
    %4108 = vmatprep.subr.mxu0 0.0
    %4109 = vmatpush2.msra.mxu0 0.0
    %4110 = vmatprep.subr.mxu0 0.0
    %4111 = vmatpush2.msra.mxu0 0.0
    %4112 = vmatprep.subr.mxu0 0.0
    %4113 = vmatpush2.msra.mxu0 0.0
    %4114 = vmatprep.subr.mxu0 0.0
    %4115 = vmatpush2.msra.mxu0 0.0
    %4116 = vmatprep.subr.mxu0 0.0
    %4117 = vmatpush2.msra.mxu0 0.0
    %4118 = vmatprep.subr.mxu0 0.0
    %4119 = vmatpush2.msra.mxu0 0.0
    %4120 = vmatprep.subr.mxu0 0.0
    %4121 = vmatpush2.msra.mxu0 0.0
    %4122 = vmatprep.subr.mxu0 0.0
    %4123 = vmatpush2.msra.mxu0 0.0
    %4124 = vmatprep.subr.mxu0 0.0
    %4125 = vmatpush2.msra.mxu0 0.0
    %4126 = vmatprep.subr.mxu0 0.0
    %4127 = vmatpush2.msra.mxu0 0.0
    %4128 = vmatprep.subr.mxu0 0.0
    %4129 = vmatpush2.msra.mxu0 0.0
    %4130 = vmatprep.subr.mxu0 0.0
    %4131 = vmatpush2.msra.mxu0 0.0
    %4132 = vmatprep.subr.mxu0 0.0
    %4133 = vmatpush2.msra.mxu0 0.0
    %4134 = vmatprep.subr.mxu0 0.0
    %4135 = vmatpush2.msra.mxu0 0.0
    %4136 = vmatprep.mubr.f32.mxu0 0.0
    %4137 = vmatmul.mubr.f32.gmra.mxu0 %v4070
    %v4138 = vpop.f32.mrf.mxu0
    %v4139 = vadd.f32 0.0, %v4138
    %v4140 = vpop.f32.mrf.mxu0
    %4141 = vdwg.mxu0
    %s4142 = scalar_lea.vmem %s7, 128
    %v4143 = vld [vmem:[%s4142] sm:$0xff]
    %v4144 = vld [vmem:[%s4142 + $0x8] sm:$0xff]
    %v4145 = vld [vmem:[%s4142 + $0x10] sm:$0xff]
    %v4146 = vld [vmem:[%s4142 + $0x18] sm:$0xff]
    %v4147 = vld [vmem:[%s4142 + $0x20] sm:$0xff]
    %v4148 = vld [vmem:[%s4142 + $0x28] sm:$0xff]
    %v4149 = vld [vmem:[%s4142 + $0x30] sm:$0xff]
    %v4150 = vld [vmem:[%s4142 + $0x38] sm:$0xff]
    %v4152 = vsel %vm3920, %v4139, 0
    %4154 = vmatprep.subr.mxu0 0.0
    %4155 = vmatpush1.msra.mxu0 0.0
    %4156 = vmatprep.subr.mxu0 0.0
    %4157 = vmatpush1.msra.mxu0 0.0
    %4158 = vmatprep.subr.mxu0 0.0
    %4159 = vmatpush1.msra.mxu0 0.0
    %4160 = vmatprep.subr.mxu0 0.0
    %4161 = vmatpush1.msra.mxu0 0.0
    %4162 = vmatprep.subr.mxu0 0.0
    %4163 = vmatpush1.msra.mxu0 0.0
    %4164 = vmatprep.subr.mxu0 0.0
    %4165 = vmatpush1.msra.mxu0 0.0
    %4166 = vmatprep.subr.mxu0 0.0
    %4167 = vmatpush1.msra.mxu0 0.0
    %4168 = vmatprep.subr.mxu0 0.0
    %4169 = vmatpush1.msra.mxu0 0.0
    %4170 = vmatprep.subr.mxu0 0.0
    %4171 = vmatpush1.msra.mxu0 %v4150
    %4172 = vmatprep.subr.mxu0 0.0
    %4173 = vmatpush1.msra.mxu0 %v4149
    %4174 = vmatprep.subr.mxu0 0.0
    %4175 = vmatpush1.msra.mxu0 %v4148
    %4176 = vmatprep.subr.mxu0 0.0
    %4177 = vmatpush1.msra.mxu0 %v4147
    %4178 = vmatprep.subr.mxu0 0.0
    %4179 = vmatpush1.msra.mxu0 %v4146
    %4180 = vmatprep.subr.mxu0 0.0
    %4181 = vmatpush1.msra.mxu0 %v4145
    %4182 = vmatprep.subr.mxu0 0.0
    %4183 = vmatpush1.msra.mxu0 %v4144
    %4184 = vmatprep.subr.mxu0 0.0
    %4185 = vmatpush1.msra.mxu0 %v4143
    %4186 = vmatprep.subr.mxu0 0.0
    %4187 = vmatpush2.msra.mxu0 0.0
    %4188 = vmatprep.subr.mxu0 0.0
    %4189 = vmatpush2.msra.mxu0 0.0
    %4190 = vmatprep.subr.mxu0 0.0
    %4191 = vmatpush2.msra.mxu0 0.0
    %4192 = vmatprep.subr.mxu0 0.0
    %4193 = vmatpush2.msra.mxu0 0.0
    %4194 = vmatprep.subr.mxu0 0.0
    %4195 = vmatpush2.msra.mxu0 0.0
    %4196 = vmatprep.subr.mxu0 0.0
    %4197 = vmatpush2.msra.mxu0 0.0
    %4198 = vmatprep.subr.mxu0 0.0
    %4199 = vmatpush2.msra.mxu0 0.0
    %4200 = vmatprep.subr.mxu0 0.0
    %4201 = vmatpush2.msra.mxu0 0.0
    %4202 = vmatprep.subr.mxu0 0.0
    %4203 = vmatpush2.msra.mxu0 0.0
    %4204 = vmatprep.subr.mxu0 0.0
    %4205 = vmatpush2.msra.mxu0 0.0
    %4206 = vmatprep.subr.mxu0 0.0
    %4207 = vmatpush2.msra.mxu0 0.0
    %4208 = vmatprep.subr.mxu0 0.0
    %4209 = vmatpush2.msra.mxu0 0.0
    %4210 = vmatprep.subr.mxu0 0.0
    %4211 = vmatpush2.msra.mxu0 0.0
    %4212 = vmatprep.subr.mxu0 0.0
    %4213 = vmatpush2.msra.mxu0 0.0
    %4214 = vmatprep.subr.mxu0 0.0
    %4215 = vmatpush2.msra.mxu0 0.0
    %4216 = vmatprep.subr.mxu0 0.0
    %4217 = vmatpush2.msra.mxu0 0.0
    %4218 = vmatprep.mubr.f32.mxu0 0.0
    %4219 = vmatmul.mubr.f32.gmra.mxu0 %v4152
    %v4220 = vpop.f32.mrf.mxu0
    %v4221 = vadd.f32 0.0, %v4220
    %v4222 = vpop.f32.mrf.mxu0
    %4223 = vdwg.mxu0
    %v4224 = vadd.f32 %v4064, %v4221
    %s4225 = scalar_lea.vmem %s6, 24
    %v4226 = vld [vmem:[%s4225] sm:$0xff]
    %v4228 = vsel %vm576, %v4226, 0
    %4230 = vmatprep.subr.mxu0 0.0
    %4231 = vmatpush1.msra.mxu0 0.0
    %4232 = vmatprep.subr.mxu0 0.0
    %4233 = vmatpush1.msra.mxu0 0.0
    %4234 = vmatprep.subr.mxu0 0.0
    %4235 = vmatpush1.msra.mxu0 0.0
    %4236 = vmatprep.subr.mxu0 0.0
    %4237 = vmatpush1.msra.mxu0 0.0
    %4238 = vmatprep.subr.mxu0 0.0
    %4239 = vmatpush1.msra.mxu0 0.0
    %4240 = vmatprep.subr.mxu0 0.0
    %4241 = vmatpush1.msra.mxu0 0.0
    %4242 = vmatprep.subr.mxu0 0.0
    %4243 = vmatpush1.msra.mxu0 0.0
    %4244 = vmatprep.subr.mxu0 0.0
    %4245 = vmatpush1.msra.mxu0 0.0
    %4246 = vmatprep.subr.mxu0 0.0
    %4247 = vmatpush1.msra.mxu0 0.0
    %4248 = vmatprep.subr.mxu0 0.0
    %4249 = vmatpush1.msra.mxu0 0.0
    %4250 = vmatprep.subr.mxu0 0.0
    %4251 = vmatpush1.msra.mxu0 0.0
    %4252 = vmatprep.subr.mxu0 0.0
    %4253 = vmatpush1.msra.mxu0 0.0
    %4254 = vmatprep.subr.mxu0 0.0
    %4255 = vmatpush1.msra.mxu0 %v3753
    %4256 = vmatprep.subr.mxu0 0.0
    %4257 = vmatpush1.msra.mxu0 %v3752
    %4258 = vmatprep.subr.mxu0 0.0
    %4259 = vmatpush1.msra.mxu0 %v3751
    %4260 = vmatprep.subr.mxu0 0.0
    %4261 = vmatpush1.msra.mxu0 %v3750
    %4262 = vmatprep.subr.mxu0 0.0
    %4263 = vmatpush2.msra.mxu0 0.0
    %4264 = vmatprep.subr.mxu0 0.0
    %4265 = vmatpush2.msra.mxu0 0.0
    %4266 = vmatprep.subr.mxu0 0.0
    %4267 = vmatpush2.msra.mxu0 0.0
    %4268 = vmatprep.subr.mxu0 0.0
    %4269 = vmatpush2.msra.mxu0 0.0
    %4270 = vmatprep.subr.mxu0 0.0
    %4271 = vmatpush2.msra.mxu0 0.0
    %4272 = vmatprep.subr.mxu0 0.0
    %4273 = vmatpush2.msra.mxu0 0.0
    %4274 = vmatprep.subr.mxu0 0.0
    %4275 = vmatpush2.msra.mxu0 0.0
    %4276 = vmatprep.subr.mxu0 0.0
    %4277 = vmatpush2.msra.mxu0 0.0
    %4278 = vmatprep.subr.mxu0 0.0
    %4279 = vmatpush2.msra.mxu0 0.0
    %4280 = vmatprep.subr.mxu0 0.0
    %4281 = vmatpush2.msra.mxu0 0.0
    %4282 = vmatprep.subr.mxu0 0.0
    %4283 = vmatpush2.msra.mxu0 0.0
    %4284 = vmatprep.subr.mxu0 0.0
    %4285 = vmatpush2.msra.mxu0 0.0
    %4286 = vmatprep.subr.mxu0 0.0
    %4287 = vmatpush2.msra.mxu0 0.0
    %4288 = vmatprep.subr.mxu0 0.0
    %4289 = vmatpush2.msra.mxu0 0.0
    %4290 = vmatprep.subr.mxu0 0.0
    %4291 = vmatpush2.msra.mxu0 0.0
    %4292 = vmatprep.subr.mxu0 0.0
    %4293 = vmatpush2.msra.mxu0 0.0
    %4294 = vmatprep.mubr.f32.mxu0 0.0
    %4295 = vmatmul.mubr.f32.gmra.mxu0 %v4228
    %v4296 = vpop.f32.mrf.mxu0
    %v4297 = vadd.f32 0.0, %v4296
    %v4298 = vpop.f32.mrf.mxu0
    %4299 = vdwg.mxu0
    %s4300 = scalar_lea.vmem %s7, 192
    %v4301 = vld [vmem:[%s4300] sm:$0xff]
    %v4302 = vld [vmem:[%s4300 + $0x8] sm:$0xff]
    %v4303 = vld [vmem:[%s4300 + $0x10] sm:$0xff]
    %v4304 = vld [vmem:[%s4300 + $0x18] sm:$0xff]
    %v4305 = vld [vmem:[%s4300 + $0x20] sm:$0xff]
    %v4306 = vld [vmem:[%s4300 + $0x28] sm:$0xff]
    %v4307 = vld [vmem:[%s4300 + $0x30] sm:$0xff]
    %v4308 = vld [vmem:[%s4300 + $0x38] sm:$0xff]
    %v4310 = vsel %vm3920, %v4297, 0
    %4312 = vmatprep.subr.mxu0 0.0
    %4313 = vmatpush1.msra.mxu0 0.0
    %4314 = vmatprep.subr.mxu0 0.0
    %4315 = vmatpush1.msra.mxu0 0.0
    %4316 = vmatprep.subr.mxu0 0.0
    %4317 = vmatpush1.msra.mxu0 0.0
    %4318 = vmatprep.subr.mxu0 0.0
    %4319 = vmatpush1.msra.mxu0 0.0
    %4320 = vmatprep.subr.mxu0 0.0
    %4321 = vmatpush1.msra.mxu0 0.0
    %4322 = vmatprep.subr.mxu0 0.0
    %4323 = vmatpush1.msra.mxu0 0.0
    %4324 = vmatprep.subr.mxu0 0.0
    %4325 = vmatpush1.msra.mxu0 0.0
    %4326 = vmatprep.subr.mxu0 0.0
    %4327 = vmatpush1.msra.mxu0 0.0
    %4328 = vmatprep.subr.mxu0 0.0
    %4329 = vmatpush1.msra.mxu0 %v4308
    %4330 = vmatprep.subr.mxu0 0.0
    %4331 = vmatpush1.msra.mxu0 %v4307
    %4332 = vmatprep.subr.mxu0 0.0
    %4333 = vmatpush1.msra.mxu0 %v4306
    %4334 = vmatprep.subr.mxu0 0.0
    %4335 = vmatpush1.msra.mxu0 %v4305
    %4336 = vmatprep.subr.mxu0 0.0
    %4337 = vmatpush1.msra.mxu0 %v4304
    %4338 = vmatprep.subr.mxu0 0.0
    %4339 = vmatpush1.msra.mxu0 %v4303
    %4340 = vmatprep.subr.mxu0 0.0
    %4341 = vmatpush1.msra.mxu0 %v4302
    %4342 = vmatprep.subr.mxu0 0.0
    %4343 = vmatpush1.msra.mxu0 %v4301
    %4344 = vmatprep.subr.mxu0 0.0
    %4345 = vmatpush2.msra.mxu0 0.0
    %4346 = vmatprep.subr.mxu0 0.0
    %4347 = vmatpush2.msra.mxu0 0.0
    %4348 = vmatprep.subr.mxu0 0.0
    %4349 = vmatpush2.msra.mxu0 0.0
    %4350 = vmatprep.subr.mxu0 0.0
    %4351 = vmatpush2.msra.mxu0 0.0
    %4352 = vmatprep.subr.mxu0 0.0
    %4353 = vmatpush2.msra.mxu0 0.0
    %4354 = vmatprep.subr.mxu0 0.0
    %4355 = vmatpush2.msra.mxu0 0.0
    %4356 = vmatprep.subr.mxu0 0.0
    %4357 = vmatpush2.msra.mxu0 0.0
    %4358 = vmatprep.subr.mxu0 0.0
    %4359 = vmatpush2.msra.mxu0 0.0
    %4360 = vmatprep.subr.mxu0 0.0
    %4361 = vmatpush2.msra.mxu0 0.0
    %4362 = vmatprep.subr.mxu0 0.0
    %4363 = vmatpush2.msra.mxu0 0.0
    %4364 = vmatprep.subr.mxu0 0.0
    %4365 = vmatpush2.msra.mxu0 0.0
    %4366 = vmatprep.subr.mxu0 0.0
    %4367 = vmatpush2.msra.mxu0 0.0
    %4368 = vmatprep.subr.mxu0 0.0
    %4369 = vmatpush2.msra.mxu0 0.0
    %4370 = vmatprep.subr.mxu0 0.0
    %4371 = vmatpush2.msra.mxu0 0.0
    %4372 = vmatprep.subr.mxu0 0.0
    %4373 = vmatpush2.msra.mxu0 0.0
    %4374 = vmatprep.subr.mxu0 0.0
    %4375 = vmatpush2.msra.mxu0 0.0
    %4376 = vmatprep.mubr.f32.mxu0 0.0
    %4377 = vmatmul.mubr.f32.gmra.mxu0 %v4310
    %v4378 = vpop.f32.mrf.mxu0
    %v4379 = vadd.f32 0.0, %v4378
    %v4380 = vpop.f32.mrf.mxu0
    %4381 = vdwg.mxu0
    %v4382 = vadd.f32 %v4224, %v4379
    %s4383 = scalar_lea.vmem %s6, 32
    %v4384 = vld [vmem:[%s4383] sm:$0xff]
    %v4386 = vsel %vm576, %v4384, 0
    %4388 = vmatprep.subr.mxu0 0.0
    %4389 = vmatpush1.msra.mxu0 0.0
    %4390 = vmatprep.subr.mxu0 0.0
    %4391 = vmatpush1.msra.mxu0 0.0
    %4392 = vmatprep.subr.mxu0 0.0
    %4393 = vmatpush1.msra.mxu0 0.0
    %4394 = vmatprep.subr.mxu0 0.0
    %4395 = vmatpush1.msra.mxu0 0.0
    %4396 = vmatprep.subr.mxu0 0.0
    %4397 = vmatpush1.msra.mxu0 0.0
    %4398 = vmatprep.subr.mxu0 0.0
    %4399 = vmatpush1.msra.mxu0 0.0
    %4400 = vmatprep.subr.mxu0 0.0
    %4401 = vmatpush1.msra.mxu0 0.0
    %4402 = vmatprep.subr.mxu0 0.0
    %4403 = vmatpush1.msra.mxu0 0.0
    %4404 = vmatprep.subr.mxu0 0.0
    %4405 = vmatpush1.msra.mxu0 0.0
    %4406 = vmatprep.subr.mxu0 0.0
    %4407 = vmatpush1.msra.mxu0 0.0
    %4408 = vmatprep.subr.mxu0 0.0
    %4409 = vmatpush1.msra.mxu0 0.0
    %4410 = vmatprep.subr.mxu0 0.0
    %4411 = vmatpush1.msra.mxu0 0.0
    %4412 = vmatprep.subr.mxu0 0.0
    %4413 = vmatpush1.msra.mxu0 %v3753
    %4414 = vmatprep.subr.mxu0 0.0
    %4415 = vmatpush1.msra.mxu0 %v3752
    %4416 = vmatprep.subr.mxu0 0.0
    %4417 = vmatpush1.msra.mxu0 %v3751
    %4418 = vmatprep.subr.mxu0 0.0
    %4419 = vmatpush1.msra.mxu0 %v3750
    %4420 = vmatprep.subr.mxu0 0.0
    %4421 = vmatpush2.msra.mxu0 0.0
    %4422 = vmatprep.subr.mxu0 0.0
    %4423 = vmatpush2.msra.mxu0 0.0
    %4424 = vmatprep.subr.mxu0 0.0
    %4425 = vmatpush2.msra.mxu0 0.0
    %4426 = vmatprep.subr.mxu0 0.0
    %4427 = vmatpush2.msra.mxu0 0.0
    %4428 = vmatprep.subr.mxu0 0.0
    %4429 = vmatpush2.msra.mxu0 0.0
    %4430 = vmatprep.subr.mxu0 0.0
    %4431 = vmatpush2.msra.mxu0 0.0
    %4432 = vmatprep.subr.mxu0 0.0
    %4433 = vmatpush2.msra.mxu0 0.0
    %4434 = vmatprep.subr.mxu0 0.0
    %4435 = vmatpush2.msra.mxu0 0.0
    %4436 = vmatprep.subr.mxu0 0.0
    %4437 = vmatpush2.msra.mxu0 0.0
    %4438 = vmatprep.subr.mxu0 0.0
    %4439 = vmatpush2.msra.mxu0 0.0
    %4440 = vmatprep.subr.mxu0 0.0
    %4441 = vmatpush2.msra.mxu0 0.0
    %4442 = vmatprep.subr.mxu0 0.0
    %4443 = vmatpush2.msra.mxu0 0.0
    %4444 = vmatprep.subr.mxu0 0.0
    %4445 = vmatpush2.msra.mxu0 0.0
    %4446 = vmatprep.subr.mxu0 0.0
    %4447 = vmatpush2.msra.mxu0 0.0
    %4448 = vmatprep.subr.mxu0 0.0
    %4449 = vmatpush2.msra.mxu0 0.0
    %4450 = vmatprep.subr.mxu0 0.0
    %4451 = vmatpush2.msra.mxu0 0.0
    %4452 = vmatprep.mubr.f32.mxu0 0.0
    %4453 = vmatmul.mubr.f32.gmra.mxu0 %v4386
    %v4454 = vpop.f32.mrf.mxu0
    %v4455 = vadd.f32 0.0, %v4454
    %v4456 = vpop.f32.mrf.mxu0
    %4457 = vdwg.mxu0
    %s4458 = scalar_lea.vmem %s7, 256
    %v4459 = vld [vmem:[%s4458] sm:$0xff]
    %v4460 = vld [vmem:[%s4458 + $0x8] sm:$0xff]
    %v4461 = vld [vmem:[%s4458 + $0x10] sm:$0xff]
    %v4462 = vld [vmem:[%s4458 + $0x18] sm:$0xff]
    %v4463 = vld [vmem:[%s4458 + $0x20] sm:$0xff]
    %v4464 = vld [vmem:[%s4458 + $0x28] sm:$0xff]
    %v4465 = vld [vmem:[%s4458 + $0x30] sm:$0xff]
    %v4466 = vld [vmem:[%s4458 + $0x38] sm:$0xff]
    %v4468 = vsel %vm3920, %v4455, 0
    %4470 = vmatprep.subr.mxu0 0.0
    %4471 = vmatpush1.msra.mxu0 0.0
    %4472 = vmatprep.subr.mxu0 0.0
    %4473 = vmatpush1.msra.mxu0 0.0
    %4474 = vmatprep.subr.mxu0 0.0
    %4475 = vmatpush1.msra.mxu0 0.0
    %4476 = vmatprep.subr.mxu0 0.0
    %4477 = vmatpush1.msra.mxu0 0.0
    %4478 = vmatprep.subr.mxu0 0.0
    %4479 = vmatpush1.msra.mxu0 0.0
    %4480 = vmatprep.subr.mxu0 0.0
    %4481 = vmatpush1.msra.mxu0 0.0
    %4482 = vmatprep.subr.mxu0 0.0
    %4483 = vmatpush1.msra.mxu0 0.0
    %4484 = vmatprep.subr.mxu0 0.0
    %4485 = vmatpush1.msra.mxu0 0.0
    %4486 = vmatprep.subr.mxu0 0.0
    %4487 = vmatpush1.msra.mxu0 %v4466
    %4488 = vmatprep.subr.mxu0 0.0
    %4489 = vmatpush1.msra.mxu0 %v4465
    %4490 = vmatprep.subr.mxu0 0.0
    %4491 = vmatpush1.msra.mxu0 %v4464
    %4492 = vmatprep.subr.mxu0 0.0
    %4493 = vmatpush1.msra.mxu0 %v4463
    %4494 = vmatprep.subr.mxu0 0.0
    %4495 = vmatpush1.msra.mxu0 %v4462
    %4496 = vmatprep.subr.mxu0 0.0
    %4497 = vmatpush1.msra.mxu0 %v4461
    %4498 = vmatprep.subr.mxu0 0.0
    %4499 = vmatpush1.msra.mxu0 %v4460
    %4500 = vmatprep.subr.mxu0 0.0
    %4501 = vmatpush1.msra.mxu0 %v4459
    %4502 = vmatprep.subr.mxu0 0.0
    %4503 = vmatpush2.msra.mxu0 0.0
    %4504 = vmatprep.subr.mxu0 0.0
    %4505 = vmatpush2.msra.mxu0 0.0
    %4506 = vmatprep.subr.mxu0 0.0
    %4507 = vmatpush2.msra.mxu0 0.0
    %4508 = vmatprep.subr.mxu0 0.0
    %4509 = vmatpush2.msra.mxu0 0.0
    %4510 = vmatprep.subr.mxu0 0.0
    %4511 = vmatpush2.msra.mxu0 0.0
    %4512 = vmatprep.subr.mxu0 0.0
    %4513 = vmatpush2.msra.mxu0 0.0
    %4514 = vmatprep.subr.mxu0 0.0
    %4515 = vmatpush2.msra.mxu0 0.0
    %4516 = vmatprep.subr.mxu0 0.0
    %4517 = vmatpush2.msra.mxu0 0.0
    %4518 = vmatprep.subr.mxu0 0.0
    %4519 = vmatpush2.msra.mxu0 0.0
    %4520 = vmatprep.subr.mxu0 0.0
    %4521 = vmatpush2.msra.mxu0 0.0
    %4522 = vmatprep.subr.mxu0 0.0
    %4523 = vmatpush2.msra.mxu0 0.0
    %4524 = vmatprep.subr.mxu0 0.0
    %4525 = vmatpush2.msra.mxu0 0.0
    %4526 = vmatprep.subr.mxu0 0.0
    %4527 = vmatpush2.msra.mxu0 0.0
    %4528 = vmatprep.subr.mxu0 0.0
    %4529 = vmatpush2.msra.mxu0 0.0
    %4530 = vmatprep.subr.mxu0 0.0
    %4531 = vmatpush2.msra.mxu0 0.0
    %4532 = vmatprep.subr.mxu0 0.0
    %4533 = vmatpush2.msra.mxu0 0.0
    %4534 = vmatprep.mubr.f32.mxu0 0.0
    %4535 = vmatmul.mubr.f32.gmra.mxu0 %v4468
    %v4536 = vpop.f32.mrf.mxu0
    %v4537 = vadd.f32 0.0, %v4536
    %v4538 = vpop.f32.mrf.mxu0
    %4539 = vdwg.mxu0
    %v4540 = vadd.f32 %v4382, %v4537
    %s4541 = scalar_lea.vmem %s6, 40
    %v4542 = vld [vmem:[%s4541] sm:$0xff]
    %v4544 = vsel %vm576, %v4542, 0
    %4546 = vmatprep.subr.mxu0 0.0
    %4547 = vmatpush1.msra.mxu0 0.0
    %4548 = vmatprep.subr.mxu0 0.0
    %4549 = vmatpush1.msra.mxu0 0.0
    %4550 = vmatprep.subr.mxu0 0.0
    %4551 = vmatpush1.msra.mxu0 0.0
    %4552 = vmatprep.subr.mxu0 0.0
    %4553 = vmatpush1.msra.mxu0 0.0
    %4554 = vmatprep.subr.mxu0 0.0
    %4555 = vmatpush1.msra.mxu0 0.0
    %4556 = vmatprep.subr.mxu0 0.0
    %4557 = vmatpush1.msra.mxu0 0.0
    %4558 = vmatprep.subr.mxu0 0.0
    %4559 = vmatpush1.msra.mxu0 0.0
    %4560 = vmatprep.subr.mxu0 0.0
    %4561 = vmatpush1.msra.mxu0 0.0
    %4562 = vmatprep.subr.mxu0 0.0
    %4563 = vmatpush1.msra.mxu0 0.0
    %4564 = vmatprep.subr.mxu0 0.0
    %4565 = vmatpush1.msra.mxu0 0.0
    %4566 = vmatprep.subr.mxu0 0.0
    %4567 = vmatpush1.msra.mxu0 0.0
    %4568 = vmatprep.subr.mxu0 0.0
    %4569 = vmatpush1.msra.mxu0 0.0
    %4570 = vmatprep.subr.mxu0 0.0
    %4571 = vmatpush1.msra.mxu0 %v3753
    %4572 = vmatprep.subr.mxu0 0.0
    %4573 = vmatpush1.msra.mxu0 %v3752
    %4574 = vmatprep.subr.mxu0 0.0
    %4575 = vmatpush1.msra.mxu0 %v3751
    %4576 = vmatprep.subr.mxu0 0.0
    %4577 = vmatpush1.msra.mxu0 %v3750
    %4578 = vmatprep.subr.mxu0 0.0
    %4579 = vmatpush2.msra.mxu0 0.0
    %4580 = vmatprep.subr.mxu0 0.0
    %4581 = vmatpush2.msra.mxu0 0.0
    %4582 = vmatprep.subr.mxu0 0.0
    %4583 = vmatpush2.msra.mxu0 0.0
    %4584 = vmatprep.subr.mxu0 0.0
    %4585 = vmatpush2.msra.mxu0 0.0
    %4586 = vmatprep.subr.mxu0 0.0
    %4587 = vmatpush2.msra.mxu0 0.0
    %4588 = vmatprep.subr.mxu0 0.0
    %4589 = vmatpush2.msra.mxu0 0.0
    %4590 = vmatprep.subr.mxu0 0.0
    %4591 = vmatpush2.msra.mxu0 0.0
    %4592 = vmatprep.subr.mxu0 0.0
    %4593 = vmatpush2.msra.mxu0 0.0
    %4594 = vmatprep.subr.mxu0 0.0
    %4595 = vmatpush2.msra.mxu0 0.0
    %4596 = vmatprep.subr.mxu0 0.0
    %4597 = vmatpush2.msra.mxu0 0.0
    %4598 = vmatprep.subr.mxu0 0.0
    %4599 = vmatpush2.msra.mxu0 0.0
    %4600 = vmatprep.subr.mxu0 0.0
    %4601 = vmatpush2.msra.mxu0 0.0
    %4602 = vmatprep.subr.mxu0 0.0
    %4603 = vmatpush2.msra.mxu0 0.0
    %4604 = vmatprep.subr.mxu0 0.0
    %4605 = vmatpush2.msra.mxu0 0.0
    %4606 = vmatprep.subr.mxu0 0.0
    %4607 = vmatpush2.msra.mxu0 0.0
    %4608 = vmatprep.subr.mxu0 0.0
    %4609 = vmatpush2.msra.mxu0 0.0
    %4610 = vmatprep.mubr.f32.mxu0 0.0
    %4611 = vmatmul.mubr.f32.gmra.mxu0 %v4544
    %v4612 = vpop.f32.mrf.mxu0
    %v4613 = vadd.f32 0.0, %v4612
    %v4614 = vpop.f32.mrf.mxu0
    %4615 = vdwg.mxu0
    %s4616 = scalar_lea.vmem %s7, 320
    %v4617 = vld [vmem:[%s4616] sm:$0xff]
    %v4618 = vld [vmem:[%s4616 + $0x8] sm:$0xff]
    %v4619 = vld [vmem:[%s4616 + $0x10] sm:$0xff]
    %v4620 = vld [vmem:[%s4616 + $0x18] sm:$0xff]
    %v4621 = vld [vmem:[%s4616 + $0x20] sm:$0xff]
    %v4622 = vld [vmem:[%s4616 + $0x28] sm:$0xff]
    %v4623 = vld [vmem:[%s4616 + $0x30] sm:$0xff]
    %v4624 = vld [vmem:[%s4616 + $0x38] sm:$0xff]
    %v4626 = vsel %vm3920, %v4613, 0
    %4628 = vmatprep.subr.mxu0 0.0
    %4629 = vmatpush1.msra.mxu0 0.0
    %4630 = vmatprep.subr.mxu0 0.0
    %4631 = vmatpush1.msra.mxu0 0.0
    %4632 = vmatprep.subr.mxu0 0.0
    %4633 = vmatpush1.msra.mxu0 0.0
    %4634 = vmatprep.subr.mxu0 0.0
    %4635 = vmatpush1.msra.mxu0 0.0
    %4636 = vmatprep.subr.mxu0 0.0
    %4637 = vmatpush1.msra.mxu0 0.0
    %4638 = vmatprep.subr.mxu0 0.0
    %4639 = vmatpush1.msra.mxu0 0.0
    %4640 = vmatprep.subr.mxu0 0.0
    %4641 = vmatpush1.msra.mxu0 0.0
    %4642 = vmatprep.subr.mxu0 0.0
    %4643 = vmatpush1.msra.mxu0 0.0
    %4644 = vmatprep.subr.mxu0 0.0
    %4645 = vmatpush1.msra.mxu0 %v4624
    %4646 = vmatprep.subr.mxu0 0.0
    %4647 = vmatpush1.msra.mxu0 %v4623
    %4648 = vmatprep.subr.mxu0 0.0
    %4649 = vmatpush1.msra.mxu0 %v4622
    %4650 = vmatprep.subr.mxu0 0.0
    %4651 = vmatpush1.msra.mxu0 %v4621
    %4652 = vmatprep.subr.mxu0 0.0
    %4653 = vmatpush1.msra.mxu0 %v4620
    %4654 = vmatprep.subr.mxu0 0.0
    %4655 = vmatpush1.msra.mxu0 %v4619
    %4656 = vmatprep.subr.mxu0 0.0
    %4657 = vmatpush1.msra.mxu0 %v4618
    %4658 = vmatprep.subr.mxu0 0.0
    %4659 = vmatpush1.msra.mxu0 %v4617
    %4660 = vmatprep.subr.mxu0 0.0
    %4661 = vmatpush2.msra.mxu0 0.0
    %4662 = vmatprep.subr.mxu0 0.0
    %4663 = vmatpush2.msra.mxu0 0.0
    %4664 = vmatprep.subr.mxu0 0.0
    %4665 = vmatpush2.msra.mxu0 0.0
    %4666 = vmatprep.subr.mxu0 0.0
    %4667 = vmatpush2.msra.mxu0 0.0
    %4668 = vmatprep.subr.mxu0 0.0
    %4669 = vmatpush2.msra.mxu0 0.0
    %4670 = vmatprep.subr.mxu0 0.0
    %4671 = vmatpush2.msra.mxu0 0.0
    %4672 = vmatprep.subr.mxu0 0.0
    %4673 = vmatpush2.msra.mxu0 0.0
    %4674 = vmatprep.subr.mxu0 0.0
    %4675 = vmatpush2.msra.mxu0 0.0
    %4676 = vmatprep.subr.mxu0 0.0
    %4677 = vmatpush2.msra.mxu0 0.0
    %4678 = vmatprep.subr.mxu0 0.0
    %4679 = vmatpush2.msra.mxu0 0.0
    %4680 = vmatprep.subr.mxu0 0.0
    %4681 = vmatpush2.msra.mxu0 0.0
    %4682 = vmatprep.subr.mxu0 0.0
    %4683 = vmatpush2.msra.mxu0 0.0
    %4684 = vmatprep.subr.mxu0 0.0
    %4685 = vmatpush2.msra.mxu0 0.0
    %4686 = vmatprep.subr.mxu0 0.0
    %4687 = vmatpush2.msra.mxu0 0.0
    %4688 = vmatprep.subr.mxu0 0.0
    %4689 = vmatpush2.msra.mxu0 0.0
    %4690 = vmatprep.subr.mxu0 0.0
    %4691 = vmatpush2.msra.mxu0 0.0
    %4692 = vmatprep.mubr.f32.mxu0 0.0
    %4693 = vmatmul.mubr.f32.gmra.mxu0 %v4626
    %v4694 = vpop.f32.mrf.mxu0
    %v4695 = vadd.f32 0.0, %v4694
    %v4696 = vpop.f32.mrf.mxu0
    %4697 = vdwg.mxu0
    %v4698 = vadd.f32 %v4540, %v4695
    %s4699 = scalar_lea.vmem %s6, 48
    %v4700 = vld [vmem:[%s4699] sm:$0xff]
    %v4702 = vsel %vm576, %v4700, 0
    %4704 = vmatprep.subr.mxu0 0.0
    %4705 = vmatpush1.msra.mxu0 0.0
    %4706 = vmatprep.subr.mxu0 0.0
    %4707 = vmatpush1.msra.mxu0 0.0
    %4708 = vmatprep.subr.mxu0 0.0
    %4709 = vmatpush1.msra.mxu0 0.0
    %4710 = vmatprep.subr.mxu0 0.0
    %4711 = vmatpush1.msra.mxu0 0.0
    %4712 = vmatprep.subr.mxu0 0.0
    %4713 = vmatpush1.msra.mxu0 0.0
    %4714 = vmatprep.subr.mxu0 0.0
    %4715 = vmatpush1.msra.mxu0 0.0
    %4716 = vmatprep.subr.mxu0 0.0
    %4717 = vmatpush1.msra.mxu0 0.0
    %4718 = vmatprep.subr.mxu0 0.0
    %4719 = vmatpush1.msra.mxu0 0.0
    %4720 = vmatprep.subr.mxu0 0.0
    %4721 = vmatpush1.msra.mxu0 0.0
    %4722 = vmatprep.subr.mxu0 0.0
    %4723 = vmatpush1.msra.mxu0 0.0
    %4724 = vmatprep.subr.mxu0 0.0
    %4725 = vmatpush1.msra.mxu0 0.0
    %4726 = vmatprep.subr.mxu0 0.0
    %4727 = vmatpush1.msra.mxu0 0.0
    %4728 = vmatprep.subr.mxu0 0.0
    %4729 = vmatpush1.msra.mxu0 %v3753
    %4730 = vmatprep.subr.mxu0 0.0
    %4731 = vmatpush1.msra.mxu0 %v3752
    %4732 = vmatprep.subr.mxu0 0.0
    %4733 = vmatpush1.msra.mxu0 %v3751
    %4734 = vmatprep.subr.mxu0 0.0
    %4735 = vmatpush1.msra.mxu0 %v3750
    %4736 = vmatprep.subr.mxu0 0.0
    %4737 = vmatpush2.msra.mxu0 0.0
    %4738 = vmatprep.subr.mxu0 0.0
    %4739 = vmatpush2.msra.mxu0 0.0
    %4740 = vmatprep.subr.mxu0 0.0
    %4741 = vmatpush2.msra.mxu0 0.0
    %4742 = vmatprep.subr.mxu0 0.0
    %4743 = vmatpush2.msra.mxu0 0.0
    %4744 = vmatprep.subr.mxu0 0.0
    %4745 = vmatpush2.msra.mxu0 0.0
    %4746 = vmatprep.subr.mxu0 0.0
    %4747 = vmatpush2.msra.mxu0 0.0
    %4748 = vmatprep.subr.mxu0 0.0
    %4749 = vmatpush2.msra.mxu0 0.0
    %4750 = vmatprep.subr.mxu0 0.0
    %4751 = vmatpush2.msra.mxu0 0.0
    %4752 = vmatprep.subr.mxu0 0.0
    %4753 = vmatpush2.msra.mxu0 0.0
    %4754 = vmatprep.subr.mxu0 0.0
    %4755 = vmatpush2.msra.mxu0 0.0
    %4756 = vmatprep.subr.mxu0 0.0
    %4757 = vmatpush2.msra.mxu0 0.0
    %4758 = vmatprep.subr.mxu0 0.0
    %4759 = vmatpush2.msra.mxu0 0.0
    %4760 = vmatprep.subr.mxu0 0.0
    %4761 = vmatpush2.msra.mxu0 0.0
    %4762 = vmatprep.subr.mxu0 0.0
    %4763 = vmatpush2.msra.mxu0 0.0
    %4764 = vmatprep.subr.mxu0 0.0
    %4765 = vmatpush2.msra.mxu0 0.0
    %4766 = vmatprep.subr.mxu0 0.0
    %4767 = vmatpush2.msra.mxu0 0.0
    %4768 = vmatprep.mubr.f32.mxu0 0.0
    %4769 = vmatmul.mubr.f32.gmra.mxu0 %v4702
    %v4770 = vpop.f32.mrf.mxu0
    %v4771 = vadd.f32 0.0, %v4770
    %v4772 = vpop.f32.mrf.mxu0
    %4773 = vdwg.mxu0
    %s4774 = scalar_lea.vmem %s7, 384
    %v4775 = vld [vmem:[%s4774] sm:$0xff]
    %v4776 = vld [vmem:[%s4774 + $0x8] sm:$0xff]
    %v4777 = vld [vmem:[%s4774 + $0x10] sm:$0xff]
    %v4778 = vld [vmem:[%s4774 + $0x18] sm:$0xff]
    %v4779 = vld [vmem:[%s4774 + $0x20] sm:$0xff]
    %v4780 = vld [vmem:[%s4774 + $0x28] sm:$0xff]
    %v4781 = vld [vmem:[%s4774 + $0x30] sm:$0xff]
    %v4782 = vld [vmem:[%s4774 + $0x38] sm:$0xff]
    %v4784 = vsel %vm3920, %v4771, 0
    %4786 = vmatprep.subr.mxu0 0.0
    %4787 = vmatpush1.msra.mxu0 0.0
    %4788 = vmatprep.subr.mxu0 0.0
    %4789 = vmatpush1.msra.mxu0 0.0
    %4790 = vmatprep.subr.mxu0 0.0
    %4791 = vmatpush1.msra.mxu0 0.0
    %4792 = vmatprep.subr.mxu0 0.0
    %4793 = vmatpush1.msra.mxu0 0.0
    %4794 = vmatprep.subr.mxu0 0.0
    %4795 = vmatpush1.msra.mxu0 0.0
    %4796 = vmatprep.subr.mxu0 0.0
    %4797 = vmatpush1.msra.mxu0 0.0
    %4798 = vmatprep.subr.mxu0 0.0
    %4799 = vmatpush1.msra.mxu0 0.0
    %4800 = vmatprep.subr.mxu0 0.0
    %4801 = vmatpush1.msra.mxu0 0.0
    %4802 = vmatprep.subr.mxu0 0.0
    %4803 = vmatpush1.msra.mxu0 %v4782
    %4804 = vmatprep.subr.mxu0 0.0
    %4805 = vmatpush1.msra.mxu0 %v4781
    %4806 = vmatprep.subr.mxu0 0.0
    %4807 = vmatpush1.msra.mxu0 %v4780
    %4808 = vmatprep.subr.mxu0 0.0
    %4809 = vmatpush1.msra.mxu0 %v4779
    %4810 = vmatprep.subr.mxu0 0.0
    %4811 = vmatpush1.msra.mxu0 %v4778
    %4812 = vmatprep.subr.mxu0 0.0
    %4813 = vmatpush1.msra.mxu0 %v4777
    %4814 = vmatprep.subr.mxu0 0.0
    %4815 = vmatpush1.msra.mxu0 %v4776
    %4816 = vmatprep.subr.mxu0 0.0
    %4817 = vmatpush1.msra.mxu0 %v4775
    %4818 = vmatprep.subr.mxu0 0.0
    %4819 = vmatpush2.msra.mxu0 0.0
    %4820 = vmatprep.subr.mxu0 0.0
    %4821 = vmatpush2.msra.mxu0 0.0
    %4822 = vmatprep.subr.mxu0 0.0
    %4823 = vmatpush2.msra.mxu0 0.0
    %4824 = vmatprep.subr.mxu0 0.0
    %4825 = vmatpush2.msra.mxu0 0.0
    %4826 = vmatprep.subr.mxu0 0.0
    %4827 = vmatpush2.msra.mxu0 0.0
    %4828 = vmatprep.subr.mxu0 0.0
    %4829 = vmatpush2.msra.mxu0 0.0
    %4830 = vmatprep.subr.mxu0 0.0
    %4831 = vmatpush2.msra.mxu0 0.0
    %4832 = vmatprep.subr.mxu0 0.0
    %4833 = vmatpush2.msra.mxu0 0.0
    %4834 = vmatprep.subr.mxu0 0.0
    %4835 = vmatpush2.msra.mxu0 0.0
    %4836 = vmatprep.subr.mxu0 0.0
    %4837 = vmatpush2.msra.mxu0 0.0
    %4838 = vmatprep.subr.mxu0 0.0
    %4839 = vmatpush2.msra.mxu0 0.0
    %4840 = vmatprep.subr.mxu0 0.0
    %4841 = vmatpush2.msra.mxu0 0.0
    %4842 = vmatprep.subr.mxu0 0.0
    %4843 = vmatpush2.msra.mxu0 0.0
    %4844 = vmatprep.subr.mxu0 0.0
    %4845 = vmatpush2.msra.mxu0 0.0
    %4846 = vmatprep.subr.mxu0 0.0
    %4847 = vmatpush2.msra.mxu0 0.0
    %4848 = vmatprep.subr.mxu0 0.0
    %4849 = vmatpush2.msra.mxu0 0.0
    %4850 = vmatprep.mubr.f32.mxu0 0.0
    %4851 = vmatmul.mubr.f32.gmra.mxu0 %v4784
    %v4852 = vpop.f32.mrf.mxu0
    %v4853 = vadd.f32 0.0, %v4852
    %v4854 = vpop.f32.mrf.mxu0
    %4855 = vdwg.mxu0
    %v4856 = vadd.f32 %v4698, %v4853
    %s4857 = scalar_lea.vmem %s6, 56
    %v4858 = vld [vmem:[%s4857] sm:$0xff]
    %v4860 = vsel %vm576, %v4858, 0
    %4862 = vmatprep.subr.mxu0 0.0
    %4863 = vmatpush1.msra.mxu0 0.0
    %4864 = vmatprep.subr.mxu0 0.0
    %4865 = vmatpush1.msra.mxu0 0.0
    %4866 = vmatprep.subr.mxu0 0.0
    %4867 = vmatpush1.msra.mxu0 0.0
    %4868 = vmatprep.subr.mxu0 0.0
    %4869 = vmatpush1.msra.mxu0 0.0
    %4870 = vmatprep.subr.mxu0 0.0
    %4871 = vmatpush1.msra.mxu0 0.0
    %4872 = vmatprep.subr.mxu0 0.0
    %4873 = vmatpush1.msra.mxu0 0.0
    %4874 = vmatprep.subr.mxu0 0.0
    %4875 = vmatpush1.msra.mxu0 0.0
    %4876 = vmatprep.subr.mxu0 0.0
    %4877 = vmatpush1.msra.mxu0 0.0
    %4878 = vmatprep.subr.mxu0 0.0
    %4879 = vmatpush1.msra.mxu0 0.0
    %4880 = vmatprep.subr.mxu0 0.0
    %4881 = vmatpush1.msra.mxu0 0.0
    %4882 = vmatprep.subr.mxu0 0.0
    %4883 = vmatpush1.msra.mxu0 0.0
    %4884 = vmatprep.subr.mxu0 0.0
    %4885 = vmatpush1.msra.mxu0 0.0
    %4886 = vmatprep.subr.mxu0 0.0
    %4887 = vmatpush1.msra.mxu0 %v3753
    %4888 = vmatprep.subr.mxu0 0.0
    %4889 = vmatpush1.msra.mxu0 %v3752
    %4890 = vmatprep.subr.mxu0 0.0
    %4891 = vmatpush1.msra.mxu0 %v3751
    %4892 = vmatprep.subr.mxu0 0.0
    %4893 = vmatpush1.msra.mxu0 %v3750
    %4894 = vmatprep.subr.mxu0 0.0
    %4895 = vmatpush2.msra.mxu0 0.0
    %4896 = vmatprep.subr.mxu0 0.0
    %4897 = vmatpush2.msra.mxu0 0.0
    %4898 = vmatprep.subr.mxu0 0.0
    %4899 = vmatpush2.msra.mxu0 0.0
    %4900 = vmatprep.subr.mxu0 0.0
    %4901 = vmatpush2.msra.mxu0 0.0
    %4902 = vmatprep.subr.mxu0 0.0
    %4903 = vmatpush2.msra.mxu0 0.0
    %4904 = vmatprep.subr.mxu0 0.0
    %4905 = vmatpush2.msra.mxu0 0.0
    %4906 = vmatprep.subr.mxu0 0.0
    %4907 = vmatpush2.msra.mxu0 0.0
    %4908 = vmatprep.subr.mxu0 0.0
    %4909 = vmatpush2.msra.mxu0 0.0
    %4910 = vmatprep.subr.mxu0 0.0
    %4911 = vmatpush2.msra.mxu0 0.0
    %4912 = vmatprep.subr.mxu0 0.0
    %4913 = vmatpush2.msra.mxu0 0.0
    %4914 = vmatprep.subr.mxu0 0.0
    %4915 = vmatpush2.msra.mxu0 0.0
    %4916 = vmatprep.subr.mxu0 0.0
    %4917 = vmatpush2.msra.mxu0 0.0
    %4918 = vmatprep.subr.mxu0 0.0
    %4919 = vmatpush2.msra.mxu0 0.0
    %4920 = vmatprep.subr.mxu0 0.0
    %4921 = vmatpush2.msra.mxu0 0.0
    %4922 = vmatprep.subr.mxu0 0.0
    %4923 = vmatpush2.msra.mxu0 0.0
    %4924 = vmatprep.subr.mxu0 0.0
    %4925 = vmatpush2.msra.mxu0 0.0
    %4926 = vmatprep.mubr.f32.mxu0 0.0
    %4927 = vmatmul.mubr.f32.gmra.mxu0 %v4860
    %v4928 = vpop.f32.mrf.mxu0
    %v4929 = vadd.f32 0.0, %v4928
    %v4930 = vpop.f32.mrf.mxu0
    %4931 = vdwg.mxu0
    %s4932 = scalar_lea.vmem %s7, 448
    %v4933 = vld [vmem:[%s4932] sm:$0xff]
    %v4934 = vld [vmem:[%s4932 + $0x8] sm:$0xff]
    %v4935 = vld [vmem:[%s4932 + $0x10] sm:$0xff]
    %v4936 = vld [vmem:[%s4932 + $0x18] sm:$0xff]
    %v4937 = vld [vmem:[%s4932 + $0x20] sm:$0xff]
    %v4938 = vld [vmem:[%s4932 + $0x28] sm:$0xff]
    %v4939 = vld [vmem:[%s4932 + $0x30] sm:$0xff]
    %v4940 = vld [vmem:[%s4932 + $0x38] sm:$0xff]
    %v4942 = vsel %vm3920, %v4929, 0
    %4944 = vmatprep.subr.mxu0 0.0
    %4945 = vmatpush1.msra.mxu0 0.0
    %4946 = vmatprep.subr.mxu0 0.0
    %4947 = vmatpush1.msra.mxu0 0.0
    %4948 = vmatprep.subr.mxu0 0.0
    %4949 = vmatpush1.msra.mxu0 0.0
    %4950 = vmatprep.subr.mxu0 0.0
    %4951 = vmatpush1.msra.mxu0 0.0
    %4952 = vmatprep.subr.mxu0 0.0
    %4953 = vmatpush1.msra.mxu0 0.0
    %4954 = vmatprep.subr.mxu0 0.0
    %4955 = vmatpush1.msra.mxu0 0.0
    %4956 = vmatprep.subr.mxu0 0.0
    %4957 = vmatpush1.msra.mxu0 0.0
    %4958 = vmatprep.subr.mxu0 0.0
    %4959 = vmatpush1.msra.mxu0 0.0
    %4960 = vmatprep.subr.mxu0 0.0
    %4961 = vmatpush1.msra.mxu0 %v4940
    %4962 = vmatprep.subr.mxu0 0.0
    %4963 = vmatpush1.msra.mxu0 %v4939
    %4964 = vmatprep.subr.mxu0 0.0
    %4965 = vmatpush1.msra.mxu0 %v4938
    %4966 = vmatprep.subr.mxu0 0.0
    %4967 = vmatpush1.msra.mxu0 %v4937
    %4968 = vmatprep.subr.mxu0 0.0
    %4969 = vmatpush1.msra.mxu0 %v4936
    %4970 = vmatprep.subr.mxu0 0.0
    %4971 = vmatpush1.msra.mxu0 %v4935
    %4972 = vmatprep.subr.mxu0 0.0
    %4973 = vmatpush1.msra.mxu0 %v4934
    %4974 = vmatprep.subr.mxu0 0.0
    %4975 = vmatpush1.msra.mxu0 %v4933
    %4976 = vmatprep.subr.mxu0 0.0
    %4977 = vmatpush2.msra.mxu0 0.0
    %4978 = vmatprep.subr.mxu0 0.0
    %4979 = vmatpush2.msra.mxu0 0.0
    %4980 = vmatprep.subr.mxu0 0.0
    %4981 = vmatpush2.msra.mxu0 0.0
    %4982 = vmatprep.subr.mxu0 0.0
    %4983 = vmatpush2.msra.mxu0 0.0
    %4984 = vmatprep.subr.mxu0 0.0
    %4985 = vmatpush2.msra.mxu0 0.0
    %4986 = vmatprep.subr.mxu0 0.0
    %4987 = vmatpush2.msra.mxu0 0.0
    %4988 = vmatprep.subr.mxu0 0.0
    %4989 = vmatpush2.msra.mxu0 0.0
    %4990 = vmatprep.subr.mxu0 0.0
    %4991 = vmatpush2.msra.mxu0 0.0
    %4992 = vmatprep.subr.mxu0 0.0
    %4993 = vmatpush2.msra.mxu0 0.0
    %4994 = vmatprep.subr.mxu0 0.0
    %4995 = vmatpush2.msra.mxu0 0.0
    %4996 = vmatprep.subr.mxu0 0.0
    %4997 = vmatpush2.msra.mxu0 0.0
    %4998 = vmatprep.subr.mxu0 0.0
    %4999 = vmatpush2.msra.mxu0 0.0
    %5000 = vmatprep.subr.mxu0 0.0
    %5001 = vmatpush2.msra.mxu0 0.0
    %5002 = vmatprep.subr.mxu0 0.0
    %5003 = vmatpush2.msra.mxu0 0.0
    %5004 = vmatprep.subr.mxu0 0.0
    %5005 = vmatpush2.msra.mxu0 0.0
    %5006 = vmatprep.subr.mxu0 0.0
    %5007 = vmatpush2.msra.mxu0 0.0
    %5008 = vmatprep.mubr.f32.mxu0 0.0
    %5009 = vmatmul.mubr.f32.gmra.mxu0 %v4942
    %v5010 = vpop.f32.mrf.mxu0
    %v5011 = vadd.f32 0.0, %v5010
    %v5012 = vpop.f32.mrf.mxu0
    %5013 = vdwg.mxu0
    %v5014 = vadd.f32 %v4856, %v5011
    %s5015 = scalar_lea.vmem %s6, 64
    %v5016 = vld [vmem:[%s5015] sm:$0xff]
    %v5018 = vsel %vm576, %v5016, 0
    %5020 = vmatprep.subr.mxu0 0.0
    %5021 = vmatpush1.msra.mxu0 0.0
    %5022 = vmatprep.subr.mxu0 0.0
    %5023 = vmatpush1.msra.mxu0 0.0
    %5024 = vmatprep.subr.mxu0 0.0
    %5025 = vmatpush1.msra.mxu0 0.0
    %5026 = vmatprep.subr.mxu0 0.0
    %5027 = vmatpush1.msra.mxu0 0.0
    %5028 = vmatprep.subr.mxu0 0.0
    %5029 = vmatpush1.msra.mxu0 0.0
    %5030 = vmatprep.subr.mxu0 0.0
    %5031 = vmatpush1.msra.mxu0 0.0
    %5032 = vmatprep.subr.mxu0 0.0
    %5033 = vmatpush1.msra.mxu0 0.0
    %5034 = vmatprep.subr.mxu0 0.0
    %5035 = vmatpush1.msra.mxu0 0.0
    %5036 = vmatprep.subr.mxu0 0.0
    %5037 = vmatpush1.msra.mxu0 0.0
    %5038 = vmatprep.subr.mxu0 0.0
    %5039 = vmatpush1.msra.mxu0 0.0
    %5040 = vmatprep.subr.mxu0 0.0
    %5041 = vmatpush1.msra.mxu0 0.0
    %5042 = vmatprep.subr.mxu0 0.0
    %5043 = vmatpush1.msra.mxu0 0.0
    %5044 = vmatprep.subr.mxu0 0.0
    %5045 = vmatpush1.msra.mxu0 %v3753
    %5046 = vmatprep.subr.mxu0 0.0
    %5047 = vmatpush1.msra.mxu0 %v3752
    %5048 = vmatprep.subr.mxu0 0.0
    %5049 = vmatpush1.msra.mxu0 %v3751
    %5050 = vmatprep.subr.mxu0 0.0
    %5051 = vmatpush1.msra.mxu0 %v3750
    %5052 = vmatprep.subr.mxu0 0.0
    %5053 = vmatpush2.msra.mxu0 0.0
    %5054 = vmatprep.subr.mxu0 0.0
    %5055 = vmatpush2.msra.mxu0 0.0
    %5056 = vmatprep.subr.mxu0 0.0
    %5057 = vmatpush2.msra.mxu0 0.0
    %5058 = vmatprep.subr.mxu0 0.0
    %5059 = vmatpush2.msra.mxu0 0.0
    %5060 = vmatprep.subr.mxu0 0.0
    %5061 = vmatpush2.msra.mxu0 0.0
    %5062 = vmatprep.subr.mxu0 0.0
    %5063 = vmatpush2.msra.mxu0 0.0
    %5064 = vmatprep.subr.mxu0 0.0
    %5065 = vmatpush2.msra.mxu0 0.0
    %5066 = vmatprep.subr.mxu0 0.0
    %5067 = vmatpush2.msra.mxu0 0.0
    %5068 = vmatprep.subr.mxu0 0.0
    %5069 = vmatpush2.msra.mxu0 0.0
    %5070 = vmatprep.subr.mxu0 0.0
    %5071 = vmatpush2.msra.mxu0 0.0
    %5072 = vmatprep.subr.mxu0 0.0
    %5073 = vmatpush2.msra.mxu0 0.0
    %5074 = vmatprep.subr.mxu0 0.0
    %5075 = vmatpush2.msra.mxu0 0.0
    %5076 = vmatprep.subr.mxu0 0.0
    %5077 = vmatpush2.msra.mxu0 0.0
    %5078 = vmatprep.subr.mxu0 0.0
    %5079 = vmatpush2.msra.mxu0 0.0
    %5080 = vmatprep.subr.mxu0 0.0
    %5081 = vmatpush2.msra.mxu0 0.0
    %5082 = vmatprep.subr.mxu0 0.0
    %5083 = vmatpush2.msra.mxu0 0.0
    %5084 = vmatprep.mubr.f32.mxu0 0.0
    %5085 = vmatmul.mubr.f32.gmra.mxu0 %v5018
    %v5086 = vpop.f32.mrf.mxu0
    %v5087 = vadd.f32 0.0, %v5086
    %v5088 = vpop.f32.mrf.mxu0
    %5089 = vdwg.mxu0
    %s5090 = scalar_lea.vmem %s7, 512
    %v5091 = vld [vmem:[%s5090] sm:$0xff]
    %v5092 = vld [vmem:[%s5090 + $0x8] sm:$0xff]
    %v5093 = vld [vmem:[%s5090 + $0x10] sm:$0xff]
    %v5094 = vld [vmem:[%s5090 + $0x18] sm:$0xff]
    %v5095 = vld [vmem:[%s5090 + $0x20] sm:$0xff]
    %v5096 = vld [vmem:[%s5090 + $0x28] sm:$0xff]
    %v5097 = vld [vmem:[%s5090 + $0x30] sm:$0xff]
    %v5098 = vld [vmem:[%s5090 + $0x38] sm:$0xff]
    %v5100 = vsel %vm3920, %v5087, 0
    %5102 = vmatprep.subr.mxu0 0.0
    %5103 = vmatpush1.msra.mxu0 0.0
    %5104 = vmatprep.subr.mxu0 0.0
    %5105 = vmatpush1.msra.mxu0 0.0
    %5106 = vmatprep.subr.mxu0 0.0
    %5107 = vmatpush1.msra.mxu0 0.0
    %5108 = vmatprep.subr.mxu0 0.0
    %5109 = vmatpush1.msra.mxu0 0.0
    %5110 = vmatprep.subr.mxu0 0.0
    %5111 = vmatpush1.msra.mxu0 0.0
    %5112 = vmatprep.subr.mxu0 0.0
    %5113 = vmatpush1.msra.mxu0 0.0
    %5114 = vmatprep.subr.mxu0 0.0
    %5115 = vmatpush1.msra.mxu0 0.0
    %5116 = vmatprep.subr.mxu0 0.0
    %5117 = vmatpush1.msra.mxu0 0.0
    %5118 = vmatprep.subr.mxu0 0.0
    %5119 = vmatpush1.msra.mxu0 %v5098
    %5120 = vmatprep.subr.mxu0 0.0
    %5121 = vmatpush1.msra.mxu0 %v5097
    %5122 = vmatprep.subr.mxu0 0.0
    %5123 = vmatpush1.msra.mxu0 %v5096
    %5124 = vmatprep.subr.mxu0 0.0
    %5125 = vmatpush1.msra.mxu0 %v5095
    %5126 = vmatprep.subr.mxu0 0.0
    %5127 = vmatpush1.msra.mxu0 %v5094
    %5128 = vmatprep.subr.mxu0 0.0
    %5129 = vmatpush1.msra.mxu0 %v5093
    %5130 = vmatprep.subr.mxu0 0.0
    %5131 = vmatpush1.msra.mxu0 %v5092
    %5132 = vmatprep.subr.mxu0 0.0
    %5133 = vmatpush1.msra.mxu0 %v5091
    %5134 = vmatprep.subr.mxu0 0.0
    %5135 = vmatpush2.msra.mxu0 0.0
    %5136 = vmatprep.subr.mxu0 0.0
    %5137 = vmatpush2.msra.mxu0 0.0
    %5138 = vmatprep.subr.mxu0 0.0
    %5139 = vmatpush2.msra.mxu0 0.0
    %5140 = vmatprep.subr.mxu0 0.0
    %5141 = vmatpush2.msra.mxu0 0.0
    %5142 = vmatprep.subr.mxu0 0.0
    %5143 = vmatpush2.msra.mxu0 0.0
    %5144 = vmatprep.subr.mxu0 0.0
    %5145 = vmatpush2.msra.mxu0 0.0
    %5146 = vmatprep.subr.mxu0 0.0
    %5147 = vmatpush2.msra.mxu0 0.0
    %5148 = vmatprep.subr.mxu0 0.0
    %5149 = vmatpush2.msra.mxu0 0.0
    %5150 = vmatprep.subr.mxu0 0.0
    %5151 = vmatpush2.msra.mxu0 0.0
    %5152 = vmatprep.subr.mxu0 0.0
    %5153 = vmatpush2.msra.mxu0 0.0
    %5154 = vmatprep.subr.mxu0 0.0
    %5155 = vmatpush2.msra.mxu0 0.0
    %5156 = vmatprep.subr.mxu0 0.0
    %5157 = vmatpush2.msra.mxu0 0.0
    %5158 = vmatprep.subr.mxu0 0.0
    %5159 = vmatpush2.msra.mxu0 0.0
    %5160 = vmatprep.subr.mxu0 0.0
    %5161 = vmatpush2.msra.mxu0 0.0
    %5162 = vmatprep.subr.mxu0 0.0
    %5163 = vmatpush2.msra.mxu0 0.0
    %5164 = vmatprep.subr.mxu0 0.0
    %5165 = vmatpush2.msra.mxu0 0.0
    %5166 = vmatprep.mubr.f32.mxu0 0.0
    %5167 = vmatmul.mubr.f32.gmra.mxu0 %v5100
    %v5168 = vpop.f32.mrf.mxu0
    %v5169 = vadd.f32 0.0, %v5168
    %v5170 = vpop.f32.mrf.mxu0
    %5171 = vdwg.mxu0
    %v5172 = vadd.f32 %v5014, %v5169
    %v5173 = vld [vmem:[%s8] sm:$0x1]
    %v5175 = vlaneseq
    %v5176 = vshrl.u32 %v5175, 7
    %v5177 = vsub.s32 0, %v5176
    %v5178 = vrot.slane %v5173, %v5177
    %v5180 = vadd.f32 %v5172, %v5178
    %v5181 = vmax.f32 %v5180, 0.0
    %v5182 = vld [vmem:[%s9] sm:$0xff]
    %v5183 = vld [vmem:[%s9 + $0x8] sm:$0xff]
    %v5184 = vld [vmem:[%s9 + $0x10] sm:$0xff]
    %v5185 = vld [vmem:[%s9 + $0x18] sm:$0xff]
    %v5186 = vld [vmem:[%s9 + $0x20] sm:$0xff]
    %v5187 = vld [vmem:[%s9 + $0x28] sm:$0xff]
    %v5188 = vld [vmem:[%s9 + $0x30] sm:$0xff]
    %v5189 = vld [vmem:[%s9 + $0x38] sm:$0xff]
    %s5190 = scalar_lea.vmem %s9, 64
    %v5191 = vld [vmem:[%s5190] sm:$0xff]
    %v5192 = vld [vmem:[%s5190 + $0x8] sm:$0xff]
    %v5193 = vld [vmem:[%s5190 + $0x10] sm:$0xff]
    %v5194 = vld [vmem:[%s5190 + $0x18] sm:$0xff]
    %v5195 = vld [vmem:[%s5190 + $0x20] sm:$0xff]
    %v5196 = vld [vmem:[%s5190 + $0x28] sm:$0xff]
    %v5197 = vld [vmem:[%s5190 + $0x30] sm:$0xff]
    %v5198 = vld [vmem:[%s5190 + $0x38] sm:$0xff]
    %v5200 = vrot.slane %v5181, 2
    %v5201 = vsel %vm3920, %v5200, 0
    %5203 = vmatprep.subr.mxu0 0.0
    %5204 = vmatpush1.msra.mxu0 0.0
    %5205 = vmatprep.subr.mxu0 0.0
    %5206 = vmatpush1.msra.mxu0 0.0
    %5207 = vmatprep.subr.mxu0 0.0
    %5208 = vmatpush1.msra.mxu0 0.0
    %5209 = vmatprep.subr.mxu0 0.0
    %5210 = vmatpush1.msra.mxu0 0.0
    %5211 = vmatprep.subr.mxu0 0.0
    %5212 = vmatpush1.msra.mxu0 0.0
    %5213 = vmatprep.subr.mxu0 0.0
    %5214 = vmatpush1.msra.mxu0 0.0
    %5215 = vmatprep.subr.mxu0 0.0
    %5216 = vmatpush1.msra.mxu0 0.0
    %5217 = vmatprep.subr.mxu0 0.0
    %5218 = vmatpush1.msra.mxu0 0.0
    %5219 = vmatprep.subr.mxu0 0.0
    %5220 = vmatpush1.msra.mxu0 %v5198
    %5221 = vmatprep.subr.mxu0 0.0
    %5222 = vmatpush1.msra.mxu0 %v5197
    %5223 = vmatprep.subr.mxu0 0.0
    %5224 = vmatpush1.msra.mxu0 %v5196
    %5225 = vmatprep.subr.mxu0 0.0
    %5226 = vmatpush1.msra.mxu0 %v5195
    %5227 = vmatprep.subr.mxu0 0.0
    %5228 = vmatpush1.msra.mxu0 %v5194
    %5229 = vmatprep.subr.mxu0 0.0
    %5230 = vmatpush1.msra.mxu0 %v5193
    %5231 = vmatprep.subr.mxu0 0.0
    %5232 = vmatpush1.msra.mxu0 %v5192
    %5233 = vmatprep.subr.mxu0 0.0
    %5234 = vmatpush1.msra.mxu0 %v5191
    %5235 = vmatprep.subr.mxu0 0.0
    %5236 = vmatpush2.msra.mxu0 0.0
    %5237 = vmatprep.subr.mxu0 0.0
    %5238 = vmatpush2.msra.mxu0 0.0
    %5239 = vmatprep.subr.mxu0 0.0
    %5240 = vmatpush2.msra.mxu0 0.0
    %5241 = vmatprep.subr.mxu0 0.0
    %5242 = vmatpush2.msra.mxu0 0.0
    %5243 = vmatprep.subr.mxu0 0.0
    %5244 = vmatpush2.msra.mxu0 0.0
    %5245 = vmatprep.subr.mxu0 0.0
    %5246 = vmatpush2.msra.mxu0 0.0
    %5247 = vmatprep.subr.mxu0 0.0
    %5248 = vmatpush2.msra.mxu0 0.0
    %5249 = vmatprep.subr.mxu0 0.0
    %5250 = vmatpush2.msra.mxu0 0.0
    %5251 = vmatprep.subr.mxu0 0.0
    %5252 = vmatpush2.msra.mxu0 0.0
    %5253 = vmatprep.subr.mxu0 0.0
    %5254 = vmatpush2.msra.mxu0 0.0
    %5255 = vmatprep.subr.mxu0 0.0
    %5256 = vmatpush2.msra.mxu0 0.0
    %5257 = vmatprep.subr.mxu0 0.0
    %5258 = vmatpush2.msra.mxu0 0.0
    %5259 = vmatprep.subr.mxu0 0.0
    %5260 = vmatpush2.msra.mxu0 0.0
    %5261 = vmatprep.subr.mxu0 0.0
    %5262 = vmatpush2.msra.mxu0 0.0
    %5263 = vmatprep.subr.mxu0 0.0
    %5264 = vmatpush2.msra.mxu0 0.0
    %5265 = vmatprep.subr.mxu0 0.0
    %5266 = vmatpush2.msra.mxu0 0.0
    %5267 = vmatprep.mubr.f32.mxu0 0.0
    %5268 = vmatmul.mubr.f32.gmra.mxu0 %v5201
    %v5269 = vpop.f32.mrf.mxu0
    %v5270 = vadd.f32 0.0, %v5269
    %v5271 = vpop.f32.mrf.mxu0
    %5272 = vdwg.mxu0
    %v5273 = vsel %vm3920, %v5181, 0
    %5275 = vmatprep.subr.mxu0 0.0
    %5276 = vmatpush1.msra.mxu0 0.0
    %5277 = vmatprep.subr.mxu0 0.0
    %5278 = vmatpush1.msra.mxu0 0.0
    %5279 = vmatprep.subr.mxu0 0.0
    %5280 = vmatpush1.msra.mxu0 0.0
    %5281 = vmatprep.subr.mxu0 0.0
    %5282 = vmatpush1.msra.mxu0 0.0
    %5283 = vmatprep.subr.mxu0 0.0
    %5284 = vmatpush1.msra.mxu0 0.0
    %5285 = vmatprep.subr.mxu0 0.0
    %5286 = vmatpush1.msra.mxu0 0.0
    %5287 = vmatprep.subr.mxu0 0.0
    %5288 = vmatpush1.msra.mxu0 0.0
    %5289 = vmatprep.subr.mxu0 0.0
    %5290 = vmatpush1.msra.mxu0 0.0
    %5291 = vmatprep.subr.mxu0 0.0
    %5292 = vmatpush1.msra.mxu0 %v5189
    %5293 = vmatprep.subr.mxu0 0.0
    %5294 = vmatpush1.msra.mxu0 %v5188
    %5295 = vmatprep.subr.mxu0 0.0
    %5296 = vmatpush1.msra.mxu0 %v5187
    %5297 = vmatprep.subr.mxu0 0.0
    %5298 = vmatpush1.msra.mxu0 %v5186
    %5299 = vmatprep.subr.mxu0 0.0
    %5300 = vmatpush1.msra.mxu0 %v5185
    %5301 = vmatprep.subr.mxu0 0.0
    %5302 = vmatpush1.msra.mxu0 %v5184
    %5303 = vmatprep.subr.mxu0 0.0
    %5304 = vmatpush1.msra.mxu0 %v5183
    %5305 = vmatprep.subr.mxu0 0.0
    %5306 = vmatpush1.msra.mxu0 %v5182
    %5307 = vmatprep.subr.mxu0 0.0
    %5308 = vmatpush2.msra.mxu0 0.0
    %5309 = vmatprep.subr.mxu0 0.0
    %5310 = vmatpush2.msra.mxu0 0.0
    %5311 = vmatprep.subr.mxu0 0.0
    %5312 = vmatpush2.msra.mxu0 0.0
    %5313 = vmatprep.subr.mxu0 0.0
    %5314 = vmatpush2.msra.mxu0 0.0
    %5315 = vmatprep.subr.mxu0 0.0
    %5316 = vmatpush2.msra.mxu0 0.0
    %5317 = vmatprep.subr.mxu0 0.0
    %5318 = vmatpush2.msra.mxu0 0.0
    %5319 = vmatprep.subr.mxu0 0.0
    %5320 = vmatpush2.msra.mxu0 0.0
    %5321 = vmatprep.subr.mxu0 0.0
    %5322 = vmatpush2.msra.mxu0 0.0
    %5323 = vmatprep.subr.mxu0 0.0
    %5324 = vmatpush2.msra.mxu0 0.0
    %5325 = vmatprep.subr.mxu0 0.0
    %5326 = vmatpush2.msra.mxu0 0.0
    %5327 = vmatprep.subr.mxu0 0.0
    %5328 = vmatpush2.msra.mxu0 0.0
    %5329 = vmatprep.subr.mxu0 0.0
    %5330 = vmatpush2.msra.mxu0 0.0
    %5331 = vmatprep.subr.mxu0 0.0
    %5332 = vmatpush2.msra.mxu0 0.0
    %5333 = vmatprep.subr.mxu0 0.0
    %5334 = vmatpush2.msra.mxu0 0.0
    %5335 = vmatprep.subr.mxu0 0.0
    %5336 = vmatpush2.msra.mxu0 0.0
    %5337 = vmatprep.subr.mxu0 0.0
    %5338 = vmatpush2.msra.mxu0 0.0
    %5339 = vmatprep.mubr.f32.mxu0 0.0
    %5340 = vmatmul.mubr.f32.gmra.mxu0 %v5273
    %v5341 = vpop.f32.mrf.mxu0
    %v5342 = vadd.f32 %v5270, %v5341
    %v5343 = vpop.f32.mrf.mxu0
    %5344 = vdwg.mxu0
    %s5345 = scalar_lea.vmem %s9, 128
    %v5346 = vld [vmem:[%s5345] sm:$0xff]
    %v5347 = vld [vmem:[%s5345 + $0x8] sm:$0xff]
    %v5348 = vld [vmem:[%s5345 + $0x10] sm:$0xff]
    %v5349 = vld [vmem:[%s5345 + $0x18] sm:$0xff]
    %v5350 = vld [vmem:[%s5345 + $0x20] sm:$0xff]
    %v5351 = vld [vmem:[%s5345 + $0x28] sm:$0xff]
    %v5352 = vld [vmem:[%s5345 + $0x30] sm:$0xff]
    %v5353 = vld [vmem:[%s5345 + $0x38] sm:$0xff]
    %v5354 = vrot.slane %v5181, 4
    %v5355 = vsel %vm3920, %v5354, 0
    %5357 = vmatprep.subr.mxu0 0.0
    %5358 = vmatpush1.msra.mxu0 0.0
    %5359 = vmatprep.subr.mxu0 0.0
    %5360 = vmatpush1.msra.mxu0 0.0
    %5361 = vmatprep.subr.mxu0 0.0
    %5362 = vmatpush1.msra.mxu0 0.0
    %5363 = vmatprep.subr.mxu0 0.0
    %5364 = vmatpush1.msra.mxu0 0.0
    %5365 = vmatprep.subr.mxu0 0.0
    %5366 = vmatpush1.msra.mxu0 0.0
    %5367 = vmatprep.subr.mxu0 0.0
    %5368 = vmatpush1.msra.mxu0 0.0
    %5369 = vmatprep.subr.mxu0 0.0
    %5370 = vmatpush1.msra.mxu0 0.0
    %5371 = vmatprep.subr.mxu0 0.0
    %5372 = vmatpush1.msra.mxu0 0.0
    %5373 = vmatprep.subr.mxu0 0.0
    %5374 = vmatpush1.msra.mxu0 %v5353
    %5375 = vmatprep.subr.mxu0 0.0
    %5376 = vmatpush1.msra.mxu0 %v5352
    %5377 = vmatprep.subr.mxu0 0.0
    %5378 = vmatpush1.msra.mxu0 %v5351
    %5379 = vmatprep.subr.mxu0 0.0
    %5380 = vmatpush1.msra.mxu0 %v5350
    %5381 = vmatprep.subr.mxu0 0.0
    %5382 = vmatpush1.msra.mxu0 %v5349
    %5383 = vmatprep.subr.mxu0 0.0
    %5384 = vmatpush1.msra.mxu0 %v5348
    %5385 = vmatprep.subr.mxu0 0.0
    %5386 = vmatpush1.msra.mxu0 %v5347
    %5387 = vmatprep.subr.mxu0 0.0
    %5388 = vmatpush1.msra.mxu0 %v5346
    %5389 = vmatprep.subr.mxu0 0.0
    %5390 = vmatpush2.msra.mxu0 0.0
    %5391 = vmatprep.subr.mxu0 0.0
    %5392 = vmatpush2.msra.mxu0 0.0
    %5393 = vmatprep.subr.mxu0 0.0
    %5394 = vmatpush2.msra.mxu0 0.0
    %5395 = vmatprep.subr.mxu0 0.0
    %5396 = vmatpush2.msra.mxu0 0.0
    %5397 = vmatprep.subr.mxu0 0.0
    %5398 = vmatpush2.msra.mxu0 0.0
    %5399 = vmatprep.subr.mxu0 0.0
    %5400 = vmatpush2.msra.mxu0 0.0
    %5401 = vmatprep.subr.mxu0 0.0
    %5402 = vmatpush2.msra.mxu0 0.0
    %5403 = vmatprep.subr.mxu0 0.0
    %5404 = vmatpush2.msra.mxu0 0.0
    %5405 = vmatprep.subr.mxu0 0.0
    %5406 = vmatpush2.msra.mxu0 0.0
    %5407 = vmatprep.subr.mxu0 0.0
    %5408 = vmatpush2.msra.mxu0 0.0
    %5409 = vmatprep.subr.mxu0 0.0
    %5410 = vmatpush2.msra.mxu0 0.0
    %5411 = vmatprep.subr.mxu0 0.0
    %5412 = vmatpush2.msra.mxu0 0.0
    %5413 = vmatprep.subr.mxu0 0.0
    %5414 = vmatpush2.msra.mxu0 0.0
    %5415 = vmatprep.subr.mxu0 0.0
    %5416 = vmatpush2.msra.mxu0 0.0
    %5417 = vmatprep.subr.mxu0 0.0
    %5418 = vmatpush2.msra.mxu0 0.0
    %5419 = vmatprep.subr.mxu0 0.0
    %5420 = vmatpush2.msra.mxu0 0.0
    %5421 = vmatprep.mubr.f32.mxu0 0.0
    %5422 = vmatmul.mubr.f32.gmra.mxu0 %v5355
    %v5423 = vpop.f32.mrf.mxu0
    %v5424 = vadd.f32 0.0, %v5423
    %v5425 = vpop.f32.mrf.mxu0
    %5426 = vdwg.mxu0
    %v5427 = vadd.f32 %v5342, %v5424
    %s5428 = scalar_lea.vmem %s9, 192
    %v5429 = vld [vmem:[%s5428] sm:$0xff]
    %v5430 = vld [vmem:[%s5428 + $0x8] sm:$0xff]
    %v5431 = vld [vmem:[%s5428 + $0x10] sm:$0xff]
    %v5432 = vld [vmem:[%s5428 + $0x18] sm:$0xff]
    %v5433 = vld [vmem:[%s5428 + $0x20] sm:$0xff]
    %v5434 = vld [vmem:[%s5428 + $0x28] sm:$0xff]
    %v5435 = vld [vmem:[%s5428 + $0x30] sm:$0xff]
    %v5436 = vld [vmem:[%s5428 + $0x38] sm:$0xff]
    %v5437 = vrot.slane %v5181, 6
    %v5438 = vsel %vm3920, %v5437, 0
    %5440 = vmatprep.subr.mxu0 0.0
    %5441 = vmatpush1.msra.mxu0 0.0
    %5442 = vmatprep.subr.mxu0 0.0
    %5443 = vmatpush1.msra.mxu0 0.0
    %5444 = vmatprep.subr.mxu0 0.0
    %5445 = vmatpush1.msra.mxu0 0.0
    %5446 = vmatprep.subr.mxu0 0.0
    %5447 = vmatpush1.msra.mxu0 0.0
    %5448 = vmatprep.subr.mxu0 0.0
    %5449 = vmatpush1.msra.mxu0 0.0
    %5450 = vmatprep.subr.mxu0 0.0
    %5451 = vmatpush1.msra.mxu0 0.0
    %5452 = vmatprep.subr.mxu0 0.0
    %5453 = vmatpush1.msra.mxu0 0.0
    %5454 = vmatprep.subr.mxu0 0.0
    %5455 = vmatpush1.msra.mxu0 0.0
    %5456 = vmatprep.subr.mxu0 0.0
    %5457 = vmatpush1.msra.mxu0 %v5436
    %5458 = vmatprep.subr.mxu0 0.0
    %5459 = vmatpush1.msra.mxu0 %v5435
    %5460 = vmatprep.subr.mxu0 0.0
    %5461 = vmatpush1.msra.mxu0 %v5434
    %5462 = vmatprep.subr.mxu0 0.0
    %5463 = vmatpush1.msra.mxu0 %v5433
    %5464 = vmatprep.subr.mxu0 0.0
    %5465 = vmatpush1.msra.mxu0 %v5432
    %5466 = vmatprep.subr.mxu0 0.0
    %5467 = vmatpush1.msra.mxu0 %v5431
    %5468 = vmatprep.subr.mxu0 0.0
    %5469 = vmatpush1.msra.mxu0 %v5430
    %5470 = vmatprep.subr.mxu0 0.0
    %5471 = vmatpush1.msra.mxu0 %v5429
    %5472 = vmatprep.subr.mxu0 0.0
    %5473 = vmatpush2.msra.mxu0 0.0
    %5474 = vmatprep.subr.mxu0 0.0
    %5475 = vmatpush2.msra.mxu0 0.0
    %5476 = vmatprep.subr.mxu0 0.0
    %5477 = vmatpush2.msra.mxu0 0.0
    %5478 = vmatprep.subr.mxu0 0.0
    %5479 = vmatpush2.msra.mxu0 0.0
    %5480 = vmatprep.subr.mxu0 0.0
    %5481 = vmatpush2.msra.mxu0 0.0
    %5482 = vmatprep.subr.mxu0 0.0
    %5483 = vmatpush2.msra.mxu0 0.0
    %5484 = vmatprep.subr.mxu0 0.0
    %5485 = vmatpush2.msra.mxu0 0.0
    %5486 = vmatprep.subr.mxu0 0.0
    %5487 = vmatpush2.msra.mxu0 0.0
    %5488 = vmatprep.subr.mxu0 0.0
    %5489 = vmatpush2.msra.mxu0 0.0
    %5490 = vmatprep.subr.mxu0 0.0
    %5491 = vmatpush2.msra.mxu0 0.0
    %5492 = vmatprep.subr.mxu0 0.0
    %5493 = vmatpush2.msra.mxu0 0.0
    %5494 = vmatprep.subr.mxu0 0.0
    %5495 = vmatpush2.msra.mxu0 0.0
    %5496 = vmatprep.subr.mxu0 0.0
    %5497 = vmatpush2.msra.mxu0 0.0
    %5498 = vmatprep.subr.mxu0 0.0
    %5499 = vmatpush2.msra.mxu0 0.0
    %5500 = vmatprep.subr.mxu0 0.0
    %5501 = vmatpush2.msra.mxu0 0.0
    %5502 = vmatprep.subr.mxu0 0.0
    %5503 = vmatpush2.msra.mxu0 0.0
    %5504 = vmatprep.mubr.f32.mxu0 0.0
    %5505 = vmatmul.mubr.f32.gmra.mxu0 %v5438
    %v5506 = vpop.f32.mrf.mxu0
    %v5507 = vadd.f32 0.0, %v5506
    %v5508 = vpop.f32.mrf.mxu0
    %5509 = vdwg.mxu0
    %v5510 = vadd.f32 %v5427, %v5507
    %v5511 = vld [vmem:[%s10] sm:$0x1]
    %v5513 = vlaneseq
    %v5514 = vshrl.u32 %v5513, 7
    %v5515 = vsub.s32 0, %v5514
    %v5516 = vrot.slane %v5511, %v5515
    %v5518 = vadd.f32 %v5510, %v5516
    %v5519 = vmax.f32 %v5518, 0.0
    %v5520 = vld [vmem:[%s11] sm:$0xff]
    %v5521 = vld [vmem:[%s11 + $0x8] sm:$0xff]
    %v5522 = vld [vmem:[%s11 + $0x10] sm:$0xff]
    %v5523 = vld [vmem:[%s11 + $0x18] sm:$0xff]
    %v5524 = vld [vmem:[%s11 + $0x20] sm:$0xff]
    %v5525 = vld [vmem:[%s11 + $0x28] sm:$0xff]
    %v5526 = vld [vmem:[%s11 + $0x30] sm:$0xff]
    %v5527 = vld [vmem:[%s11 + $0x38] sm:$0xff]
    %v5528 = vld [vmem:[%s11 + $0x40] sm:$0xff]
    %v5529 = vld [vmem:[%s11 + $0x48] sm:$0xff]
    %v5530 = vld [vmem:[%s11 + $0x50] sm:$0xff]
    %v5531 = vld [vmem:[%s11 + $0x58] sm:$0xff]
    %v5532 = vld [vmem:[%s11 + $0x60] sm:$0xff]
    %v5533 = vld [vmem:[%s11 + $0x68] sm:$0xff]
    %v5534 = vld [vmem:[%s11 + $0x70] sm:$0xff]
    %v5535 = vld [vmem:[%s11 + $0x78] sm:$0xff]
    %v5536 = vld [vmem:[%s12] sm:$0x1]
    %v5538 = vlaneseq
    %v5539 = vshrl.u32 %v5538, 7
    %v5540 = vsub.s32 0, %v5539
    %v5541 = vrot.slane %v5536, %v5540
    %5543 = vmatprep.subr.mxu0 0.0
    %5544 = vmatpush1.msra.mxu0 %v5535
    %5545 = vmatprep.subr.mxu0 0.0
    %5546 = vmatpush1.msra.mxu0 %v5534
    %5547 = vmatprep.subr.mxu0 0.0
    %5548 = vmatpush1.msra.mxu0 %v5533
    %5549 = vmatprep.subr.mxu0 0.0
    %5550 = vmatpush1.msra.mxu0 %v5532
    %5551 = vmatprep.subr.mxu0 0.0
    %5552 = vmatpush1.msra.mxu0 %v5531
    %5553 = vmatprep.subr.mxu0 0.0
    %5554 = vmatpush1.msra.mxu0 %v5530
    %5555 = vmatprep.subr.mxu0 0.0
    %5556 = vmatpush1.msra.mxu0 %v5529
    %5557 = vmatprep.subr.mxu0 0.0
    %5558 = vmatpush1.msra.mxu0 %v5528
    %5559 = vmatprep.subr.mxu0 0.0
    %5560 = vmatpush1.msra.mxu0 %v5527
    %5561 = vmatprep.subr.mxu0 0.0
    %5562 = vmatpush1.msra.mxu0 %v5526
    %5563 = vmatprep.subr.mxu0 0.0
    %5564 = vmatpush1.msra.mxu0 %v5525
    %5565 = vmatprep.subr.mxu0 0.0
    %5566 = vmatpush1.msra.mxu0 %v5524
    %5567 = vmatprep.subr.mxu0 0.0
    %5568 = vmatpush1.msra.mxu0 %v5523
    %5569 = vmatprep.subr.mxu0 0.0
    %5570 = vmatpush1.msra.mxu0 %v5522
    %5571 = vmatprep.subr.mxu0 0.0
    %5572 = vmatpush1.msra.mxu0 %v5521
    %5573 = vmatprep.subr.mxu0 0.0
    %5574 = vmatpush1.msra.mxu0 %v5520
    %5575 = vmatprep.subr.mxu0 0.0
    %5576 = vmatpush2.msra.mxu0 0.0
    %5577 = vmatprep.subr.mxu0 0.0
    %5578 = vmatpush2.msra.mxu0 0.0
    %5579 = vmatprep.subr.mxu0 0.0
    %5580 = vmatpush2.msra.mxu0 0.0
    %5581 = vmatprep.subr.mxu0 0.0
    %5582 = vmatpush2.msra.mxu0 0.0
    %5583 = vmatprep.subr.mxu0 0.0
    %5584 = vmatpush2.msra.mxu0 0.0
    %5585 = vmatprep.subr.mxu0 0.0
    %5586 = vmatpush2.msra.mxu0 0.0
    %5587 = vmatprep.subr.mxu0 0.0
    %5588 = vmatpush2.msra.mxu0 0.0
    %5589 = vmatprep.subr.mxu0 0.0
    %5590 = vmatpush2.msra.mxu0 0.0
    %5591 = vmatprep.subr.mxu0 0.0
    %5592 = vmatpush2.msra.mxu0 0.0
    %5593 = vmatprep.subr.mxu0 0.0
    %5594 = vmatpush2.msra.mxu0 0.0
    %5595 = vmatprep.subr.mxu0 0.0
    %5596 = vmatpush2.msra.mxu0 0.0
    %5597 = vmatprep.subr.mxu0 0.0
    %5598 = vmatpush2.msra.mxu0 0.0
    %5599 = vmatprep.subr.mxu0 0.0
    %5600 = vmatpush2.msra.mxu0 0.0
    %5601 = vmatprep.subr.mxu0 0.0
    %5602 = vmatpush2.msra.mxu0 0.0
    %5603 = vmatprep.subr.mxu0 0.0
    %5604 = vmatpush2.msra.mxu0 0.0
    %5605 = vmatprep.subr.mxu0 0.0
    %5606 = vmatpush2.msra.mxu0 0.0
    %5607 = vmatprep.mubr.f32.mxu0 0.0
    %5608 = vmatmul.mubr.f32.gmra.mxu0 %v5519
    %v5609 = vpop.f32.mrf.mxu0
    %v5610 = vadd.f32 %v5541, %v5609
    %v5611 = vpop.f32.mrf.mxu0
    %5612 = vdwg.mxu0
    %v5613 = vmax.f32 %v5610, 0.0
    %v5614 = vld [vmem:[%s13] sm:$0xff]
    %v5615 = vld [vmem:[%s13 + $0x8] sm:$0xff]
    %v5616 = vld [vmem:[%s13 + $0x10] sm:$0xff]
    %v5617 = vld [vmem:[%s13 + $0x18] sm:$0xff]
    %v5618 = vld [vmem:[%s13 + $0x20] sm:$0xff]
    %v5619 = vld [vmem:[%s13 + $0x28] sm:$0xff]
    %v5620 = vld [vmem:[%s13 + $0x30] sm:$0xff]
    %v5621 = vld [vmem:[%s13 + $0x38] sm:$0xff]
    %v5622 = vld [vmem:[%s14] sm:$0x1]
    %v5624 = vlaneseq
    %v5625 = vshrl.u32 %v5624, 7
    %v5626 = vsub.s32 0, %v5625
    %v5627 = vrot.slane %v5622, %v5626
    %v5630 = vsel %vm3920, %v5613, 0
    %5632 = vmatprep.subr.mxu0 0.0
    %5633 = vmatpush1.msra.mxu0 0.0
    %5634 = vmatprep.subr.mxu0 0.0
    %5635 = vmatpush1.msra.mxu0 0.0
    %5636 = vmatprep.subr.mxu0 0.0
    %5637 = vmatpush1.msra.mxu0 0.0
    %5638 = vmatprep.subr.mxu0 0.0
    %5639 = vmatpush1.msra.mxu0 0.0
    %5640 = vmatprep.subr.mxu0 0.0
    %5641 = vmatpush1.msra.mxu0 0.0
    %5642 = vmatprep.subr.mxu0 0.0
    %5643 = vmatpush1.msra.mxu0 0.0
    %5644 = vmatprep.subr.mxu0 0.0
    %5645 = vmatpush1.msra.mxu0 0.0
    %5646 = vmatprep.subr.mxu0 0.0
    %5647 = vmatpush1.msra.mxu0 0.0
    %5648 = vmatprep.subr.mxu0 0.0
    %5649 = vmatpush1.msra.mxu0 %v5621
    %5650 = vmatprep.subr.mxu0 0.0
    %5651 = vmatpush1.msra.mxu0 %v5620
    %5652 = vmatprep.subr.mxu0 0.0
    %5653 = vmatpush1.msra.mxu0 %v5619
    %5654 = vmatprep.subr.mxu0 0.0
    %5655 = vmatpush1.msra.mxu0 %v5618
    %5656 = vmatprep.subr.mxu0 0.0
    %5657 = vmatpush1.msra.mxu0 %v5617
    %5658 = vmatprep.subr.mxu0 0.0
    %5659 = vmatpush1.msra.mxu0 %v5616
    %5660 = vmatprep.subr.mxu0 0.0
    %5661 = vmatpush1.msra.mxu0 %v5615
    %5662 = vmatprep.subr.mxu0 0.0
    %5663 = vmatpush1.msra.mxu0 %v5614
    %5664 = vmatprep.subr.mxu0 0.0
    %5665 = vmatpush2.msra.mxu0 0.0
    %5666 = vmatprep.subr.mxu0 0.0
    %5667 = vmatpush2.msra.mxu0 0.0
    %5668 = vmatprep.subr.mxu0 0.0
    %5669 = vmatpush2.msra.mxu0 0.0
    %5670 = vmatprep.subr.mxu0 0.0
    %5671 = vmatpush2.msra.mxu0 0.0
    %5672 = vmatprep.subr.mxu0 0.0
    %5673 = vmatpush2.msra.mxu0 0.0
    %5674 = vmatprep.subr.mxu0 0.0
    %5675 = vmatpush2.msra.mxu0 0.0
    %5676 = vmatprep.subr.mxu0 0.0
    %5677 = vmatpush2.msra.mxu0 0.0
    %5678 = vmatprep.subr.mxu0 0.0
    %5679 = vmatpush2.msra.mxu0 0.0
    %5680 = vmatprep.subr.mxu0 0.0
    %5681 = vmatpush2.msra.mxu0 0.0
    %5682 = vmatprep.subr.mxu0 0.0
    %5683 = vmatpush2.msra.mxu0 0.0
    %5684 = vmatprep.subr.mxu0 0.0
    %5685 = vmatpush2.msra.mxu0 0.0
    %5686 = vmatprep.subr.mxu0 0.0
    %5687 = vmatpush2.msra.mxu0 0.0
    %5688 = vmatprep.subr.mxu0 0.0
    %5689 = vmatpush2.msra.mxu0 0.0
    %5690 = vmatprep.subr.mxu0 0.0
    %5691 = vmatpush2.msra.mxu0 0.0
    %5692 = vmatprep.subr.mxu0 0.0
    %5693 = vmatpush2.msra.mxu0 0.0
    %5694 = vmatprep.subr.mxu0 0.0
    %5695 = vmatpush2.msra.mxu0 0.0
    %5696 = vmatprep.mubr.f32.mxu0 0.0
    %5697 = vmatmul.mubr.f32.gmra.mxu0 %v5630
    %v5698 = vpop.f32.mrf.mxu0
    %v5699 = vadd.f32 %v5627, %v5698
    %v5700 = vpop.f32.mrf.mxu0
    %5701 = vdwg.mxu0
    %vm5702 = vcmask 33792
    %5703 = vst.msk [vmem:[#allocation2] sm:$0x3] %vm5702, %v5699
    // Predicated region
    $region62: #{three_by_three_forward.1} parent=1 // pred_check
      _
    $region63: #{three_by_three_forward.1} parent=1 // pred_check_branch
      %5705 = sbr.rel (0) target = $region65
    $region64: #{three_by_three_forward.1} parent=1 // pred_region
      %s5707 = ssub.s32 32, 32
      %5708 = vsyncadd [#allocation3], %s5707
      %s5710 = sshll.u32 [#allocation2], 4
      %s5711 = int_to_ptr.vmem [resolvable:$true] %s5710
      %5713 = dma.vmem_to_hbm [thread:$0]  %s5711, 32, %s15, [#allocation3]
    $region65: #{three_by_three_forward.1} parent=1 // pred_fallthru
      _
    // Predicated region
    $region66: #{three_by_three_forward.1} parent=1 // pred_check
      _
    $region67: #{three_by_three_forward.1} parent=1 // pred_check_branch
      %5715 = sbr.rel (0) target = $region69
    $region68: #{three_by_three_forward.1} parent=1 // pred_region
      %5716 = dma.done [#allocation3], 32
    $region69: #{three_by_three_forward.1} parent=1 // pred_fallthru
      _
    %5717 = vsyncpa [#allocation3], 1

</llo_original>
